<compile_context>
chip_gen: v5e
topology: v5e:2x2
jax: 0.10.0
libtpu: 0.0.40
codegen_flags: <defaults>
</compile_context>

<pallas_src>
import functools

import jax
import jax.numpy as jnp
from jax import lax
from jax.experimental import pallas as pl
from jax.experimental.pallas import tpu as pltpu


def _encoder_block_kernel(x_ref, w1_ref, b1_ref, w2_ref, b2_ref, o_ref, h_ref,
                          *, H, W, Cin, Ch, Cout, R1, R2):
    """One batch element per grid step.

    x_ref : (H, W, Cin)         input image (VMEM, batch dim squeezed)
    w1_ref: (9*Cin, Ch)         conv1 weights, im2col-reshaped (dy, dx, cin)
    b1_ref: (1, Ch)             conv1 bias
    w2_ref: (9*Ch, Cout)        conv2 weights, im2col-reshaped
    b2_ref: (1, Cout)           conv2 bias
    o_ref : (H-4, W-4, Cout)    output image
    h_ref : (H-2, W-2, Ch)      VMEM scratch holding conv1 activations
    """
    H1, W1 = H - 2, W - 2          # after conv1 (3x3 valid)
    H2, W2 = H - 4, W - 4          # after conv2 (3x3 valid)

    w1 = w1_ref[...]               # (9*Cin, Ch)
    w2 = w2_ref[...]               # (9*Ch, Cout)
    b1 = b1_ref[...]               # (1, Ch)  -- broadcast in the add
    b2 = b2_ref[...]               # (1, Cout)

    def _im2col(rows, r, w_out, cin):
        # rows: (r+2, w_out+2, cin)  ->  (r*w_out, 9*cin), tap order (dy,dx,cin)
        pieces = []
        for dy in range(3):
            for dx in range(3):
                pieces.append(rows[dy:dy + r, dx:dx + w_out, :])
        patch = jnp.concatenate(pieces, axis=-1)       # (r, w_out, 9*cin)
        return patch.reshape(r * w_out, 9 * cin)

    # ---- conv1 (3x3 valid) + bias + ReLU -> scratch, in row blocks ----------
    nb1 = (H1 + R1 - 1) // R1
    def conv1_body(b, carry):
        r0 = jnp.minimum(b * R1, H1 - R1)              # clamp last block
        rows = x_ref[pl.ds(r0, R1 + 2)]                # (R1+2, W, Cin)
        m = _im2col(rows, R1, W1, Cin)                 # (R1*W1, 9*Cin)
        y = jnp.dot(m, w1, preferred_element_type=jnp.float32) + b1
        y = jnp.maximum(y, 0.0)
        h_ref[pl.ds(r0, R1)] = y.reshape(R1, W1, Ch)
        return carry
    lax.fori_loop(0, nb1, conv1_body, 0)

    # ---- conv2 (3x3 valid) + bias + ReLU + residual -> output, row blocks ---
    nb2 = (H2 + R2 - 1) // R2
    def conv2_body(b, carry):
        r0 = jnp.minimum(b * R2, H2 - R2)
        rows = h_ref[pl.ds(r0, R2 + 2)]                # (R2+2, W1, Ch)
        m = _im2col(rows, R2, W2, Ch)                  # (R2*W2, 9*Ch)
        y = jnp.dot(m, w2, preferred_element_type=jnp.float32) + b2
        y = jnp.maximum(y, 0.0).reshape(R2, W2, Cout)
        # residual path (default config): identity, cropped [2:H-2, 2:W-2]
        y = y + x_ref[pl.ds(r0 + 2, R2), pl.ds(2, W2), :]
        o_ref[pl.ds(r0, R2)] = y.astype(o_ref.dtype)
        return carry
    lax.fori_loop(0, nb2, conv2_body, 0)


def scalogram_encoder_block(x_nchw, w1_oihw, b1, w2_oihw, b2):
    """Forward pass of ScalogramEncoderBlock (default args) on TPU via Pallas.

    x_nchw:  (N, Cin, H, W) float32 (PyTorch NCHW convention)
    w1_oihw: (Ch, Cin, 3, 3), b1: (Ch,)
    w2_oihw: (Cout, Ch, 3, 3), b2: (Cout,)
    returns: (N, Cout, H-4, W-4) float32
    """
    N, Cin, H, W = x_nchw.shape
    Ch = w1_oihw.shape[0]
    Cout = w2_oihw.shape[0]
    assert Cin == Cout, "default residual path requires in_channels == out_channels"
    assert H >= 5 and W >= 5, "need at least one valid output position"
    H1, W1 = H - 2, W - 2
    H2, W2 = H - 4, W - 4

    # NHWC input; weights im2col-reshaped to (9*Cin, Cout') with (dy, dx, cin)
    # row order so they match the kernel's patch layout.
    x = jnp.transpose(x_nchw, (0, 2, 3, 1)).astype(jnp.float32)          # NHWC
    w1k = jnp.transpose(w1_oihw, (2, 3, 1, 0)).reshape(9 * Cin, Ch).astype(jnp.float32)
    w2k = jnp.transpose(w2_oihw, (2, 3, 1, 0)).reshape(9 * Ch, Cout).astype(jnp.float32)
    b1k = b1.reshape(1, Ch).astype(jnp.float32)
    b2k = b2.reshape(1, Cout).astype(jnp.float32)

    # Row-block sizes: batch enough output rows per matmul so M = rows*width
    # approaches the 256-wide MXU, capped by the number of rows available.
    R1 = min(H1, max(1, -(-256 // W1)))
    R2 = min(H2, max(1, -(-256 // W2)))

    kernel = functools.partial(_encoder_block_kernel,
                               H=H, W=W, Cin=Cin, Ch=Ch, Cout=Cout,
                               R1=R1, R2=R2)

    out_nhwc = pl.pallas_call(
        kernel,
        out_shape=jax.ShapeDtypeStruct((N, H2, W2, Cout), jnp.float32),
        grid_spec=pltpu.PrefetchScalarGridSpec(
            num_scalar_prefetch=0,
            grid=(N,),
            in_specs=[
                pl.BlockSpec((None, H, W, Cin), lambda b: (b, 0, 0, 0)),
                pl.BlockSpec((9 * Cin, Ch), lambda b: (0, 0)),
                pl.BlockSpec((1, Ch), lambda b: (0, 0)),
                pl.BlockSpec((9 * Ch, Cout), lambda b: (0, 0)),
                pl.BlockSpec((1, Cout), lambda b: (0, 0)),
            ],
            out_specs=pl.BlockSpec((None, H2, W2, Cout), lambda b: (b, 0, 0, 0)),
            scratch_shapes=[pltpu.VMEM((H1, W1, Ch), jnp.float32)],
        ),
        compiler_params=pltpu.CompilerParams(
            dimension_semantics=("parallel",),        # batch iters independent
            vmem_limit_bytes=64 * 1024 * 1024),
    )(x, w1k, b1k, w2k, b2k)

    return jnp.transpose(out_nhwc, (0, 3, 1, 2))                         # NCHW


def _reference_nchw(x, w1, b1, w2, b2):
    """Pure-JAX reference matching the PyTorch forward (default config)."""
    dn = ("NCHW", "OIHW", "NCHW")
    h = jax.lax.conv_general_dilated(x, w1, (1, 1), "VALID", dimension_numbers=dn)
    h = jax.nn.relu(h + b1[None, :, None, None])
    y = jax.lax.conv_general_dilated(h, w2, (1, 1), "VALID", dimension_numbers=dn)
    y = jax.nn.relu(y + b2[None, :, None, None])
    return y + x[:, :, 2:-2, 2:-2]


if __name__ == "__main__":
    # Small shapes consistent with the module (scaled-down channel count).
    N, C, H, W = 2, 8, 16, 16
    key = jax.random.PRNGKey(0)
    kx, kw1, kb1, kw2, kb2 = jax.random.split(key, 5)

    x = jax.random.normal(kx, (N, C, H, W), dtype=jnp.float32)
    w1 = jax.random.normal(kw1, (C, C, 3, 3), dtype=jnp.float32) * 0.1
    b1 = jax.random.normal(kb1, (C,), dtype=jnp.float32) * 0.1
    w2 = jax.random.normal(kw2, (C, C, 3, 3), dtype=jnp.float32) * 0.1
    b2 = jax.random.normal(kb2, (C,), dtype=jnp.float32) * 0.1

    out = jax.block_until_ready(scalogram_encoder_block(x, w1, b1, w2, b2))
    ref = jax.block_until_ready(_reference_nchw(x, w1, b1, w2, b2))
    assert out.shape == (N, C, H - 4, W - 4), out.shape
    assert jnp.allclose(out, ref, rtol=1e-4, atol=1e-4), float(jnp.max(jnp.abs(out - ref)))

    # TODO(synk): ActivationWriter is a logging/registration hook with no compute;
    # BatchNorm/Dropout/pooling/padding branches are disabled under the default config.
    print("KERNEL_OK")
</pallas_src>

<mosaic_0001>
module attributes {stable_mosaic.version = 11 : i64} {
  func.func @_encoder_block_kernel(%arg0: i32, %arg1: memref<1x16x16x8xf32, #tpu.memory_space<vmem>>, %arg2: memref<72x8xf32, #tpu.memory_space<vmem>>, %arg3: memref<1x8xf32, #tpu.memory_space<vmem>>, %arg4: memref<72x8xf32, #tpu.memory_space<vmem>>, %arg5: memref<1x8xf32, #tpu.memory_space<vmem>>, %arg6: memref<1x12x12x8xf32, #tpu.memory_space<vmem>>, %arg7: memref<14x14x8xf32, #tpu.memory_space<vmem>>) attributes {dimension_semantics = [#tpu.dimension_semantics<parallel>], iteration_bounds = array<i64: 2>, scalar_prefetch = 0 : i64, scratch_operands = 1 : i64, tpu.core_type = #tpu.core_type<tc>, window_params = [{transform_indices = @transform_0, window_bounds = array<i64: 1, 16, 16, 8>}, {pipeline_mode = #tpu.pipeline_mode<synchronous>, transform_indices = @transform_1, window_bounds = array<i64: 72, 8>}, {pipeline_mode = #tpu.pipeline_mode<synchronous>, transform_indices = @transform_2, window_bounds = array<i64: 1, 8>}, {pipeline_mode = #tpu.pipeline_mode<synchronous>, transform_indices = @transform_3, window_bounds = array<i64: 72, 8>}, {pipeline_mode = #tpu.pipeline_mode<synchronous>, transform_indices = @transform_4, window_bounds = array<i64: 1, 8>}, {transform_indices = @transform_5, window_bounds = array<i64: 1, 12, 12, 8>}]} {
    %c0 = arith.constant 0 : index
    %c0_0 = arith.constant 0 : index
    %0 = vector.load %arg2[%c0, %c0_0] : memref<72x8xf32, #tpu.memory_space<vmem>>, vector<72x8xf32>
    %c0_1 = arith.constant 0 : index
    %c0_2 = arith.constant 0 : index
    %1 = vector.load %arg4[%c0_1, %c0_2] : memref<72x8xf32, #tpu.memory_space<vmem>>, vector<72x8xf32>
    %c0_3 = arith.constant 0 : index
    %c0_4 = arith.constant 0 : index
    %2 = vector.load %arg3[%c0_3, %c0_4] : memref<1x8xf32, #tpu.memory_space<vmem>>, vector<1x8xf32>
    %c0_5 = arith.constant 0 : index
    %c0_6 = arith.constant 0 : index
    %3 = vector.load %arg5[%c0_5, %c0_6] : memref<1x8xf32, #tpu.memory_space<vmem>>, vector<1x8xf32>
    %c0_i32 = arith.constant 0 : i32
    %c14_i32 = arith.constant 14 : i32
    %4 = arith.muli %c0_i32, %c14_i32 : i32
    %c0_i32_7 = arith.constant 0 : i32
    %5 = arith.minsi %4, %c0_i32_7 : i32
    %c0_8 = arith.constant 0 : index
    %6 = arith.index_cast %5 : i32 to index
    %c0_9 = arith.constant 0 : index
    %c0_10 = arith.constant 0 : index
    %7 = vector.load %arg1[%c0_8, %6, %c0_9, %c0_10] : memref<1x16x16x8xf32, #tpu.memory_space<vmem>>, vector<1x16x16x8xf32>
    %8 = vector.shape_cast %7 : vector<1x16x16x8xf32> to vector<16x16x8xf32>
    %9 = vector.extract_strided_slice %8 {offsets = [0, 0, 0], sizes = [14, 14, 8], strides = [1, 1, 1]} : vector<16x16x8xf32> to vector<14x14x8xf32>
    %10 = vector.extract_strided_slice %8 {offsets = [0, 1, 0], sizes = [14, 14, 8], strides = [1, 1, 1]} : vector<16x16x8xf32> to vector<14x14x8xf32>
    %11 = vector.extract_strided_slice %8 {offsets = [0, 2, 0], sizes = [14, 14, 8], strides = [1, 1, 1]} : vector<16x16x8xf32> to vector<14x14x8xf32>
    %12 = vector.extract_strided_slice %8 {offsets = [1, 0, 0], sizes = [14, 14, 8], strides = [1, 1, 1]} : vector<16x16x8xf32> to vector<14x14x8xf32>
    %13 = vector.extract_strided_slice %8 {offsets = [1, 1, 0], sizes = [14, 14, 8], strides = [1, 1, 1]} : vector<16x16x8xf32> to vector<14x14x8xf32>
    %14 = vector.extract_strided_slice %8 {offsets = [1, 2, 0], sizes = [14, 14, 8], strides = [1, 1, 1]} : vector<16x16x8xf32> to vector<14x14x8xf32>
    %15 = vector.extract_strided_slice %8 {offsets = [2, 0, 0], sizes = [14, 14, 8], strides = [1, 1, 1]} : vector<16x16x8xf32> to vector<14x14x8xf32>
    %16 = vector.extract_strided_slice %8 {offsets = [2, 1, 0], sizes = [14, 14, 8], strides = [1, 1, 1]} : vector<16x16x8xf32> to vector<14x14x8xf32>
    %17 = vector.extract_strided_slice %8 {offsets = [2, 2, 0], sizes = [14, 14, 8], strides = [1, 1, 1]} : vector<16x16x8xf32> to vector<14x14x8xf32>
    %18 = tpu.concatenate %9, %10, %11, %12, %13, %14, %15, %16, %17 in 2 : vector<14x14x8xf32>, vector<14x14x8xf32>, vector<14x14x8xf32>, vector<14x14x8xf32>, vector<14x14x8xf32>, vector<14x14x8xf32>, vector<14x14x8xf32>, vector<14x14x8xf32>, vector<14x14x8xf32> -> vector<14x14x72xf32>
    %19 = vector.shape_cast %18 : vector<14x14x72xf32> to vector<196x72xf32>
    %cst = arith.constant dense<0.000000e+00> : vector<196x8xf32>
    %20 = tpu.matmul %19, %0, %cst {dimension_numbers = #tpu.dot_dimension_numbers<[1], [0], [0], [1], [0, 0, 1, 1], [], []>} : vector<196x72xf32>, vector<72x8xf32>, vector<196x8xf32> -> vector<196x8xf32>
    %21 = vector.broadcast %2 : vector<1x8xf32> to vector<196x8xf32>
    %22 = arith.addf %20, %21 : vector<196x8xf32>
    %cst_11 = arith.constant 0.000000e+00 : f32
    %23 = vector.broadcast %cst_11 : f32 to vector<196x8xf32>
    %24 = arith.maximumf %22, %23 : vector<196x8xf32>
    %25 = vector.shape_cast %24 : vector<196x8xf32> to vector<14x14x8xf32>
    %26 = arith.index_cast %5 : i32 to index
    %c0_12 = arith.constant 0 : index
    %c0_13 = arith.constant 0 : index
    %27 = vector.load %arg7[%26, %c0_12, %c0_13] : memref<14x14x8xf32, #tpu.memory_space<vmem>>, vector<14x14x8xf32>
    tpu.vector_store %arg7[%26, %c0_12, %c0_13], %25 {strides = array<i32>} : memref<14x14x8xf32, #tpu.memory_space<vmem>>, vector<14x14x8xf32>,
    %c1_i32 = arith.constant 1 : i32
    %c0_i32_14 = arith.constant 0 : i32
    %c12_i32 = arith.constant 12 : i32
    %28 = arith.muli %c0_i32_14, %c12_i32 : i32
    %c0_i32_15 = arith.constant 0 : i32
    %29 = arith.minsi %28, %c0_i32_15 : i32
    %30 = arith.index_cast %29 : i32 to index
    %c0_16 = arith.constant 0 : index
    %c0_17 = arith.constant 0 : index
    %31 = vector.load %arg7[%30, %c0_16, %c0_17] : memref<14x14x8xf32, #tpu.memory_space<vmem>>, vector<14x14x8xf32>
    %32 = vector.extract_strided_slice %31 {offsets = [0, 0, 0], sizes = [12, 12, 8], strides = [1, 1, 1]} : vector<14x14x8xf32> to vector<12x12x8xf32>
    %33 = vector.extract_strided_slice %31 {offsets = [0, 1, 0], sizes = [12, 12, 8], strides = [1, 1, 1]} : vector<14x14x8xf32> to vector<12x12x8xf32>
    %34 = vector.extract_strided_slice %31 {offsets = [0, 2, 0], sizes = [12, 12, 8], strides = [1, 1, 1]} : vector<14x14x8xf32> to vector<12x12x8xf32>
    %35 = vector.extract_strided_slice %31 {offsets = [1, 0, 0], sizes = [12, 12, 8], strides = [1, 1, 1]} : vector<14x14x8xf32> to vector<12x12x8xf32>
    %36 = vector.extract_strided_slice %31 {offsets = [1, 1, 0], sizes = [12, 12, 8], strides = [1, 1, 1]} : vector<14x14x8xf32> to vector<12x12x8xf32>
    %37 = vector.extract_strided_slice %31 {offsets = [1, 2, 0], sizes = [12, 12, 8], strides = [1, 1, 1]} : vector<14x14x8xf32> to vector<12x12x8xf32>
    %38 = vector.extract_strided_slice %31 {offsets = [2, 0, 0], sizes = [12, 12, 8], strides = [1, 1, 1]} : vector<14x14x8xf32> to vector<12x12x8xf32>
    %39 = vector.extract_strided_slice %31 {offsets = [2, 1, 0], sizes = [12, 12, 8], strides = [1, 1, 1]} : vector<14x14x8xf32> to vector<12x12x8xf32>
    %40 = vector.extract_strided_slice %31 {offsets = [2, 2, 0], sizes = [12, 12, 8], strides = [1, 1, 1]} : vector<14x14x8xf32> to vector<12x12x8xf32>
    %41 = tpu.concatenate %32, %33, %34, %35, %36, %37, %38, %39, %40 in 2 : vector<12x12x8xf32>, vector<12x12x8xf32>, vector<12x12x8xf32>, vector<12x12x8xf32>, vector<12x12x8xf32>, vector<12x12x8xf32>, vector<12x12x8xf32>, vector<12x12x8xf32>, vector<12x12x8xf32> -> vector<12x12x72xf32>
    %42 = vector.shape_cast %41 : vector<12x12x72xf32> to vector<144x72xf32>
    %cst_18 = arith.constant dense<0.000000e+00> : vector<144x8xf32>
    %43 = tpu.matmul %42, %1, %cst_18 {dimension_numbers = #tpu.dot_dimension_numbers<[1], [0], [0], [1], [0, 0, 1, 1], [], []>} : vector<144x72xf32>, vector<72x8xf32>, vector<144x8xf32> -> vector<144x8xf32>
    %44 = vector.broadcast %3 : vector<1x8xf32> to vector<144x8xf32>
    %45 = arith.addf %43, %44 : vector<144x8xf32>
    %cst_19 = arith.constant 0.000000e+00 : f32
    %46 = vector.broadcast %cst_19 : f32 to vector<144x8xf32>
    %47 = arith.maximumf %45, %46 : vector<144x8xf32>
    %48 = vector.shape_cast %47 : vector<144x8xf32> to vector<12x12x8xf32>
    %c2_i32 = arith.constant 2 : i32
    %49 = arith.addi %29, %c2_i32 : i32
    %c0_20 = arith.constant 0 : index
    %50 = arith.index_cast %49 : i32 to index
    %c2 = arith.constant 2 : index
    %c0_21 = arith.constant 0 : index
    %51 = vector.load %arg1[%c0_20, %50, %c2, %c0_21] : memref<1x16x16x8xf32, #tpu.memory_space<vmem>>, vector<1x12x12x8xf32>
    %52 = vector.shape_cast %51 : vector<1x12x12x8xf32> to vector<12x12x8xf32>
    %53 = arith.addf %48, %52 : vector<12x12x8xf32>
    %c0_22 = arith.constant 0 : index
    %54 = arith.index_cast %29 : i32 to index
    %c0_23 = arith.constant 0 : index
    %c0_24 = arith.constant 0 : index
    %55 = vector.load %arg6[%c0_22, %54, %c0_23, %c0_24] : memref<1x12x12x8xf32, #tpu.memory_space<vmem>>, vector<1x12x12x8xf32>
    %56 = vector.shape_cast %55 : vector<1x12x12x8xf32> to vector<12x12x8xf32>
    %57 = vector.shape_cast %53 : vector<12x12x8xf32> to vector<1x12x12x8xf32>
    tpu.vector_store %arg6[%c0_22, %54, %c0_23, %c0_24], %57 {strides = array<i32>} : memref<1x12x12x8xf32, #tpu.memory_space<vmem>>, vector<1x12x12x8xf32>,
    %c1_i32_25 = arith.constant 1 : i32
    return
  }
  func.func @transform_0(%arg0: i32) -> (i32, i32, i32, i32) {
    %c0_i32 = arith.constant 0 : i32
    %c0_i32_0 = arith.constant 0 : i32
    %c0_i32_1 = arith.constant 0 : i32
    %c0_i32_2 = arith.constant 0 : i32
    return %arg0, %c0_i32, %c0_i32_0, %c0_i32_1 : i32, i32, i32, i32
  }
  func.func @transform_1(%arg0: i32) -> (i32, i32) {
    %c0_i32 = arith.constant 0 : i32
    %c0_i32_0 = arith.constant 0 : i32
    %c0_i32_1 = arith.constant 0 : i32
    return %c0_i32, %c0_i32_0 : i32, i32
  }
  func.func @transform_2(%arg0: i32) -> (i32, i32) {
    %c0_i32 = arith.constant 0 : i32
    %c0_i32_0 = arith.constant 0 : i32
    %c0_i32_1 = arith.constant 0 : i32
    return %c0_i32, %c0_i32_0 : i32, i32
  }
  func.func @transform_3(%arg0: i32) -> (i32, i32) {
    %c0_i32 = arith.constant 0 : i32
    %c0_i32_0 = arith.constant 0 : i32
    %c0_i32_1 = arith.constant 0 : i32
    return %c0_i32, %c0_i32_0 : i32, i32
  }
  func.func @transform_4(%arg0: i32) -> (i32, i32) {
    %c0_i32 = arith.constant 0 : i32
    %c0_i32_0 = arith.constant 0 : i32
    %c0_i32_1 = arith.constant 0 : i32
    return %c0_i32, %c0_i32_0 : i32, i32
  }
  func.func @transform_5(%arg0: i32) -> (i32, i32, i32, i32) {
    %c0_i32 = arith.constant 0 : i32
    %c0_i32_0 = arith.constant 0 : i32
    %c0_i32_1 = arith.constant 0 : i32
    %c0_i32_2 = arith.constant 0 : i32
    return %arg0, %c0_i32, %c0_i32_0, %c0_i32_1 : i32, i32, i32, i32
  }
}

</mosaic_0001>

<llo_original>
// kernel: tpu_custom_call.1
$region0: #{tpu_custom_call.1}
  #allocation0 [shape = 'u32[]', space=smem, size = 0x4, offset = 0x4, fixed_abs, tag = 'smem constant byte address 0x4 - core index']
  #allocation1 [shape = 'u32[72,128]{1,0:T(1,128)}', space=vmem, size = 0x9000, scoped, tag = 'internal scratch']
  #allocation2 [shape = 'f32[14,14,8]{2,1,0:T(8,128)}', space=vmem, size = 0x1c000, scoped, tag = 'scratch operand']
  %s0 = inlined_call_operand.vmem [shape: f32[2,16,16,8], index: 0, kind: input, shape index: {}]
  %s1 = inlined_call_operand.vmem [shape: f32[72,8], index: 1, kind: input, shape index: {}]
  %s2 = inlined_call_operand.vmem [shape: f32[1,8], index: 2, kind: input, shape index: {}]
  %s3 = inlined_call_operand.vmem [shape: f32[72,8], index: 3, kind: input, shape index: {}]
  %s4 = inlined_call_operand.vmem [shape: f32[1,8], index: 4, kind: input, shape index: {}]
  %s5 = inlined_call_operand.vmem [shape: f32[2,12,12,8], index: 5, kind: output, shape index: {}]
  %s6 = sld [smem:[#allocation0]]
  $region53: #{tpu_custom_call.1} parent=0
    _
  %s8 = ssub.s32 1, %s6
  %s9 = scalar_select 0, %s8, %s6
  loop: start=0, step=1, limit=4
  $region2: #{tpu_custom_call.1} parent=0 // loop_pre_header
    _
  $region3: #{tpu_custom_call.1} parent=0 // loop_header
    %s11 = sphi 0, %s15
    %p12 = scmp.ge.s32.totalorder %s11, 4
    %s21 = sphi 0, %s23
    %s24 = sphi 0, %s21
    %s25 = sphi 0, %s24
    %s41 = sphi 0, %s25
    %s45 = sphi 0, %s45
    %s47 = sphi 0, %s45
    %s48 = sphi 0, %s47
    %s62 = sphi 0, %s48
    %s66 = sphi 0, %s66
    %s68 = sphi 0, %s66
    %s69 = sphi 0, %s68
    %s83 = sphi 0, %s69
    %s87 = sphi 0, %s87
    %s89 = sphi 0, %s87
    %s90 = sphi 0, %s89
    %s104 = sphi 0, %s90
    %s108 = sphi 0, %s108
    %s110 = sphi 0, %s108
    %s111 = sphi 0, %s110
    %s125 = sphi 0, %s111
    %s131 = sphi 0, %s133
    %s134 = sphi 0, %s131
    %s135 = sphi 0, %s134
    %s151 = sphi 0, %s135
  $region4: #{tpu_custom_call.1} parent=0 // loop_header_branch
    %14 = sbr.rel (%p12) target = $region8
  $region5: #{tpu_custom_call.1} parent=0 // loop_body
    %s16 = ssub.s32 %s11, 1
    %s17 = ssub.s32 %s11, 2
    %s18 = sadd.s32 %s11, 1
    %s19 = ssub.s32 %s11, %s18
    %p20 = scmp.eq.s32.totalorder %s19, 0
    %s22 = sadd.s32 %s21, 1
    %s23 = scalar_select %p20, %s21, %s22
    %p26 = pneg %p20
    %p27 = scmp.eq.s32.totalorder %s11, 1
    %p28 = por %p26, %p27
    %p29 = scmp.ne.s32.totalorder %s21, %s24
    %p30 = scmp.eq.s32.totalorder %s11, 0
    %p31 = por %p29, %p30
    %p32 = scmp.ne.s32.totalorder %s21, %s24
    %p33 = scmp.eq.s32.totalorder %s16, 1
    %p34 = por %p32, %p33
    %p35 = scmp.ne.s32.totalorder %s24, %s25
    %p36 = scmp.eq.s32.totalorder %s16, 0
    %p37 = por %p35, %p36
    %p38 = scmp.ne.s32.totalorder %s24, %s25
    %p39 = scmp.eq.s32.totalorder %s17, 1
    %p40 = por %p38, %p39
    %p42 = scmp.ne.s32.totalorder %s25, %s41
    %p43 = scmp.eq.s32.totalorder %s17, 0
    %p44 = por %p42, %p43
    %s46 = sadd.s32 %s45, 1
    %p49 = scmp.eq.s32.totalorder %s11, 1
    %p50 = scmp.ne.s32.totalorder %s45, %s47
    %p51 = scmp.eq.s32.totalorder %s11, 0
    %p52 = por %p50, %p51
    %p53 = scmp.ne.s32.totalorder %s45, %s47
    %p54 = scmp.eq.s32.totalorder %s16, 1
    %p55 = por %p53, %p54
    %p56 = scmp.ne.s32.totalorder %s47, %s48
    %p57 = scmp.eq.s32.totalorder %s16, 0
    %p58 = por %p56, %p57
    %p59 = scmp.ne.s32.totalorder %s47, %s48
    %p60 = scmp.eq.s32.totalorder %s17, 1
    %p61 = por %p59, %p60
    %p63 = scmp.ne.s32.totalorder %s48, %s62
    %p64 = scmp.eq.s32.totalorder %s17, 0
    %p65 = por %p63, %p64
    %s67 = sadd.s32 %s66, 1
    %p70 = scmp.eq.s32.totalorder %s11, 1
    %p71 = scmp.ne.s32.totalorder %s66, %s68
    %p72 = scmp.eq.s32.totalorder %s11, 0
    %p73 = por %p71, %p72
    %p74 = scmp.ne.s32.totalorder %s66, %s68
    %p75 = scmp.eq.s32.totalorder %s16, 1
    %p76 = por %p74, %p75
    %p77 = scmp.ne.s32.totalorder %s68, %s69
    %p78 = scmp.eq.s32.totalorder %s16, 0
    %p79 = por %p77, %p78
    %p80 = scmp.ne.s32.totalorder %s68, %s69
    %p81 = scmp.eq.s32.totalorder %s17, 1
    %p82 = por %p80, %p81
    %p84 = scmp.ne.s32.totalorder %s69, %s83
    %p85 = scmp.eq.s32.totalorder %s17, 0
    %p86 = por %p84, %p85
    %s88 = sadd.s32 %s87, 1
    %p91 = scmp.eq.s32.totalorder %s11, 1
    %p92 = scmp.ne.s32.totalorder %s87, %s89
    %p93 = scmp.eq.s32.totalorder %s11, 0
    %p94 = por %p92, %p93
    %p95 = scmp.ne.s32.totalorder %s87, %s89
    %p96 = scmp.eq.s32.totalorder %s16, 1
    %p97 = por %p95, %p96
    %p98 = scmp.ne.s32.totalorder %s89, %s90
    %p99 = scmp.eq.s32.totalorder %s16, 0
    %p100 = por %p98, %p99
    %p101 = scmp.ne.s32.totalorder %s89, %s90
    %p102 = scmp.eq.s32.totalorder %s17, 1
    %p103 = por %p101, %p102
    %p105 = scmp.ne.s32.totalorder %s90, %s104
    %p106 = scmp.eq.s32.totalorder %s17, 0
    %p107 = por %p105, %p106
    %s109 = sadd.s32 %s108, 1
    %p112 = scmp.eq.s32.totalorder %s11, 1
    %p113 = scmp.ne.s32.totalorder %s108, %s110
    %p114 = scmp.eq.s32.totalorder %s11, 0
    %p115 = por %p113, %p114
    %p116 = scmp.ne.s32.totalorder %s108, %s110
    %p117 = scmp.eq.s32.totalorder %s16, 1
    %p118 = por %p116, %p117
    %p119 = scmp.ne.s32.totalorder %s110, %s111
    %p120 = scmp.eq.s32.totalorder %s16, 0
    %p121 = por %p119, %p120
    %p122 = scmp.ne.s32.totalorder %s110, %s111
    %p123 = scmp.eq.s32.totalorder %s17, 1
    %p124 = por %p122, %p123
    %p126 = scmp.ne.s32.totalorder %s111, %s125
    %p127 = scmp.eq.s32.totalorder %s17, 0
    %p128 = por %p126, %p127
    %s129 = ssub.s32 %s11, %s18
    %p130 = scmp.eq.s32.totalorder %s129, 0
    %s132 = sadd.s32 %s131, 1
    %s133 = scalar_select %p130, %s131, %s132
    %p136 = pneg %p130
    %p137 = scmp.eq.s32.totalorder %s11, 1
    %p138 = por %p136, %p137
    %p139 = scmp.ne.s32.totalorder %s131, %s134
    %p140 = scmp.eq.s32.totalorder %s11, 0
    %p141 = por %p139, %p140
    %p142 = scmp.ne.s32.totalorder %s131, %s134
    %p143 = scmp.eq.s32.totalorder %s16, 1
    %p144 = por %p142, %p143
    %p145 = scmp.ne.s32.totalorder %s134, %s135
    %p146 = scmp.eq.s32.totalorder %s16, 0
    %p147 = por %p145, %p146
    %p148 = scmp.ne.s32.totalorder %s134, %s135
    %p149 = scmp.eq.s32.totalorder %s17, 1
    %p150 = por %p148, %p149
    %p152 = scmp.ne.s32.totalorder %s135, %s151
    %p153 = scmp.eq.s32.totalorder %s17, 0
    %p154 = por %p152, %p153
    %p155 = scmp.le.s32.totalorder 1, %s11
    %p156 = scmp.lt.s32.totalorder %s11, 3
    %p157 = pnand %p155, %p156
    %p158 = pneg %p157
    // Predicated region
    $region9: #{tpu_custom_call.1} parent=5 // pred_check
      _
    $region10: #{tpu_custom_call.1} parent=5 // pred_check_branch
      %160 = sbr.rel (%p157) target = $region12
    $region11: #{tpu_custom_call.1} parent=5 // pred_region
      %s161 = ssub.s32 %s11, 1
      // Predicated region
      $region13: #{tpu_custom_call.1} parent=11 // pred_check
        %p162 = pneg %p58
      $region14: #{tpu_custom_call.1} parent=11 // pred_check_branch
        %164 = sbr.rel (%p162) target = $region16
      $region15: #{tpu_custom_call.1} parent=11 // pred_region
        _
      $region16: #{tpu_custom_call.1} parent=11 // pred_fallthru
        _
      // Predicated region
      $region17: #{tpu_custom_call.1} parent=11 // pred_check
        %p165 = pneg %p79
      $region18: #{tpu_custom_call.1} parent=11 // pred_check_branch
        %167 = sbr.rel (%p165) target = $region20
      $region19: #{tpu_custom_call.1} parent=11 // pred_region
        _
      $region20: #{tpu_custom_call.1} parent=11 // pred_fallthru
        _
      // Predicated region
      $region21: #{tpu_custom_call.1} parent=11 // pred_check
        %p168 = pneg %p100
      $region22: #{tpu_custom_call.1} parent=11 // pred_check_branch
        %170 = sbr.rel (%p168) target = $region24
      $region23: #{tpu_custom_call.1} parent=11 // pred_region
        _
      $region24: #{tpu_custom_call.1} parent=11 // pred_fallthru
        _
      // Predicated region
      $region25: #{tpu_custom_call.1} parent=11 // pred_check
        %p171 = pneg %p121
      $region26: #{tpu_custom_call.1} parent=11 // pred_check_branch
        %173 = sbr.rel (%p171) target = $region28
      $region27: #{tpu_custom_call.1} parent=11 // pred_region
        _
      $region28: #{tpu_custom_call.1} parent=11 // pred_fallthru
        _
    $region12: #{tpu_custom_call.1} parent=5 // pred_fallthru
      _
    %p174 = scmp.lt.s32.totalorder %s11, 2
    // Predicated region
    $region29: #{tpu_custom_call.1} parent=5 // pred_check
      %p175 = pneg %p174
    $region30: #{tpu_custom_call.1} parent=5 // pred_check_branch
      %177 = sbr.rel (%p175) target = $region32
    $region31: #{tpu_custom_call.1} parent=5 // pred_region
      // Predicated region
      $region33: #{tpu_custom_call.1} parent=31 // pred_check
        %p178 = pneg %p31
      $region34: #{tpu_custom_call.1} parent=31 // pred_check_branch
        %180 = sbr.rel (%p178) target = $region36
      $region35: #{tpu_custom_call.1} parent=31 // pred_region
        %p181 = scmp.lt.s32.totalorder %s11, 1
        %s182 = scalar_select %p181, %s11, 1
        %s183 = smul.addr %s182, 32
        %s184 = smul.addr %s183, 8
        %s185 = scalar_lea.vmem %s0, %s184
      $region36: #{tpu_custom_call.1} parent=31 // pred_fallthru
        _
    $region32: #{tpu_custom_call.1} parent=5 // pred_fallthru
      _
    %p186 = scmp.le.s32.totalorder 1, %s11
    %p187 = scmp.lt.s32.totalorder %s11, 3
    %p188 = pnand %p186, %p187
    %p189 = pneg %p188
    // Predicated region
    $region37: #{tpu_custom_call.1} parent=5 // pred_check
      _
    $region38: #{tpu_custom_call.1} parent=5 // pred_check_branch
      %191 = sbr.rel (%p188) target = $region40
    $region39: #{tpu_custom_call.1} parent=5 // pred_region
      %s192 = ssub.s32 %s11, 1
      %p193 = scmp.lt.s32.totalorder %s16, 1
      %s194 = scalar_select %p193, %s16, 1
      %s195 = smul.addr %s194, 32
      %s196 = smul.addr %s195, 8
      %s197 = scalar_lea.vmem %s0, %s196
      %p198 = pneg %p37
      %p199 = pneg %p34
      %p200 = pneg %p58
      %p201 = pneg %p55
      %p202 = pneg %p79
      %p203 = pneg %p76
      %p204 = pneg %p100
      %p205 = pneg %p97
      %p206 = pneg %p121
      %p207 = pneg %p118
      %p208 = pneg %p147
      %p209 = pneg %p144
      %p210 = scmp.lt.s32.totalorder %s16, 1
      %s211 = scalar_select %p210, %s16, 1
      %s212 = smul.addr %s211, 24
      %s213 = smul.addr %s212, 8
      %s214 = scalar_lea.vmem %s5, %s213
      %p215 = scmp.lt.s32.totalorder %s16, 1
      %s216 = scalar_select %p215, %s16, 1
      %s217 = smul.addr %s216, 32
      %s218 = smul.addr %s217, 8
      %s219 = scalar_lea.vmem %s0, %s218
      %p220 = scmp.lt.s32.totalorder %s16, 1
      %s221 = scalar_select %p220, %s16, 1
      %s222 = smul.addr %s221, 24
      %s223 = smul.addr %s222, 8
      %s224 = scalar_lea.vmem %s5, %s223
      %v225 = vld [vmem:[%s1] sm:$0xff]
      %v226 = vld [vmem:[%s1 + $0x8] sm:$0xff]
      %v227 = vld [vmem:[%s1 + $0x10] sm:$0xff]
      %v228 = vld [vmem:[%s1 + $0x18] sm:$0xff]
      %v229 = vld [vmem:[%s1 + $0x20] sm:$0xff]
      %v230 = vld [vmem:[%s1 + $0x28] sm:$0xff]
      %v231 = vld [vmem:[%s1 + $0x30] sm:$0xff]
      %v232 = vld [vmem:[%s1 + $0x38] sm:$0xff]
      %v233 = vld [vmem:[%s1 + $0x40] sm:$0xff]
      %v234 = vld [vmem:[%s3] sm:$0xff]
      %v235 = vld [vmem:[%s3 + $0x8] sm:$0xff]
      %v236 = vld [vmem:[%s3 + $0x10] sm:$0xff]
      %v237 = vld [vmem:[%s3 + $0x18] sm:$0xff]
      %v238 = vld [vmem:[%s3 + $0x20] sm:$0xff]
      %v239 = vld [vmem:[%s3 + $0x28] sm:$0xff]
      %v240 = vld [vmem:[%s3 + $0x30] sm:$0xff]
      %v241 = vld [vmem:[%s3 + $0x38] sm:$0xff]
      %v242 = vld [vmem:[%s3 + $0x40] sm:$0xff]
      %v243 = vld [vmem:[%s2] sm:$0x1]
      %v244 = vld [vmem:[%s4] sm:$0x1]
      %v245 = vld [vmem:[%s219] sm:$0xff]
      %v246 = vld [vmem:[%s219 + $0x8] sm:$0xff]
      %v247 = vld [vmem:[%s219 + $0x10] sm:$0xff]
      %v248 = vld [vmem:[%s219 + $0x18] sm:$0xff]
      %v249 = vld [vmem:[%s219 + $0x20] sm:$0xff]
      %v250 = vld [vmem:[%s219 + $0x28] sm:$0xff]
      %v251 = vld [vmem:[%s219 + $0x30] sm:$0xff]
      %v252 = vld [vmem:[%s219 + $0x38] sm:$0xff]
      %v253 = vld [vmem:[%s219 + $0x40] sm:$0xff]
      %v254 = vld [vmem:[%s219 + $0x48] sm:$0xff]
      %v255 = vld [vmem:[%s219 + $0x50] sm:$0xff]
      %v256 = vld [vmem:[%s219 + $0x58] sm:$0xff]
      %v257 = vld [vmem:[%s219 + $0x60] sm:$0xff]
      %v258 = vld [vmem:[%s219 + $0x68] sm:$0xff]
      %v259 = vld [vmem:[%s219 + $0x70] sm:$0xff]
      %v260 = vld [vmem:[%s219 + $0x78] sm:$0xff]
      %v261 = vld [vmem:[%s219 + $0x80] sm:$0xff]
      %v262 = vld [vmem:[%s219 + $0x88] sm:$0xff]
      %v263 = vld [vmem:[%s219 + $0x90] sm:$0xff]
      %v264 = vld [vmem:[%s219 + $0x98] sm:$0xff]
      %v265 = vld [vmem:[%s219 + $0xa0] sm:$0xff]
      %v266 = vld [vmem:[%s219 + $0xa8] sm:$0xff]
      %v267 = vld [vmem:[%s219 + $0xb0] sm:$0xff]
      %v268 = vld [vmem:[%s219 + $0xb8] sm:$0xff]
      %v269 = vld [vmem:[%s219 + $0xc0] sm:$0xff]
      %v270 = vld [vmem:[%s219 + $0xc8] sm:$0xff]
      %v271 = vld [vmem:[%s219 + $0xd0] sm:$0xff]
      %v272 = vld [vmem:[%s219 + $0xd8] sm:$0xff]
      %v273 = vld [vmem:[%s219 + $0xe0] sm:$0xff]
      %v274 = vld [vmem:[%s219 + $0xe8] sm:$0xff]
      %v275 = vld [vmem:[%s219 + $0xf0] sm:$0xff]
      %v276 = vld [vmem:[%s219 + $0xf8] sm:$0xff]
      %vm305 = vcmask 1046528
      %v306 = vrot.slane %v245, 1
      %v307 = vrot.slane %v246, 1
      %v308 = vsel %vm305, %v306, %v307
      %v309 = vrot.slane %v247, 1
      %v310 = vrot.slane %v248, 1
      %v311 = vsel %vm305, %v309, %v310
      %v312 = vrot.slane %v249, 1
      %v313 = vrot.slane %v250, 1
      %v314 = vsel %vm305, %v312, %v313
      %v315 = vrot.slane %v251, 1
      %v316 = vrot.slane %v252, 1
      %v317 = vsel %vm305, %v315, %v316
      %v318 = vrot.slane %v253, 1
      %v319 = vrot.slane %v254, 1
      %v320 = vsel %vm305, %v318, %v319
      %v321 = vrot.slane %v255, 1
      %v322 = vrot.slane %v256, 1
      %v323 = vsel %vm305, %v321, %v322
      %v324 = vrot.slane %v257, 1
      %v325 = vrot.slane %v258, 1
      %v326 = vsel %vm305, %v324, %v325
      %v327 = vrot.slane %v259, 1
      %v328 = vrot.slane %v260, 1
      %v329 = vsel %vm305, %v327, %v328
      %v330 = vrot.slane %v261, 1
      %v331 = vrot.slane %v262, 1
      %v332 = vsel %vm305, %v330, %v331
      %v333 = vrot.slane %v263, 1
      %v334 = vrot.slane %v264, 1
      %v335 = vsel %vm305, %v333, %v334
      %v336 = vrot.slane %v265, 1
      %v337 = vrot.slane %v266, 1
      %v338 = vsel %vm305, %v336, %v337
      %v339 = vrot.slane %v267, 1
      %v340 = vrot.slane %v268, 1
      %v341 = vsel %vm305, %v339, %v340
      %v342 = vrot.slane %v269, 1
      %v343 = vrot.slane %v270, 1
      %v344 = vsel %vm305, %v342, %v343
      %v345 = vrot.slane %v271, 1
      %v346 = vrot.slane %v272, 1
      %v347 = vsel %vm305, %v345, %v346
      %348 = vrot.lane.b32.xlu0 %v308, 8
      %v349 = vpop.permute.xlu0 %348
      %350 = vrot.lane.b32.xlu0 %v307, 8
      %v351 = vpop.permute.xlu0 %350
      %352 = vrot.lane.b32.xlu0 %v311, 8
      %v353 = vpop.permute.xlu0 %352
      %354 = vrot.lane.b32.xlu0 %v310, 8
      %v355 = vpop.permute.xlu0 %354
      %356 = vrot.lane.b32.xlu0 %v314, 8
      %v357 = vpop.permute.xlu0 %356
      %358 = vrot.lane.b32.xlu0 %v313, 8
      %v359 = vpop.permute.xlu0 %358
      %360 = vrot.lane.b32.xlu0 %v317, 8
      %v361 = vpop.permute.xlu0 %360
      %362 = vrot.lane.b32.xlu0 %v316, 8
      %v363 = vpop.permute.xlu0 %362
      %364 = vrot.lane.b32.xlu0 %v320, 8
      %v365 = vpop.permute.xlu0 %364
      %366 = vrot.lane.b32.xlu0 %v319, 8
      %v367 = vpop.permute.xlu0 %366
      %368 = vrot.lane.b32.xlu0 %v323, 8
      %v369 = vpop.permute.xlu0 %368
      %370 = vrot.lane.b32.xlu0 %v322, 8
      %v371 = vpop.permute.xlu0 %370
      %372 = vrot.lane.b32.xlu0 %v326, 8
      %v373 = vpop.permute.xlu0 %372
      %374 = vrot.lane.b32.xlu0 %v325, 8
      %v375 = vpop.permute.xlu0 %374
      %376 = vrot.lane.b32.xlu0 %v329, 8
      %v377 = vpop.permute.xlu0 %376
      %378 = vrot.lane.b32.xlu0 %v328, 8
      %v379 = vpop.permute.xlu0 %378
      %380 = vrot.lane.b32.xlu0 %v332, 8
      %v381 = vpop.permute.xlu0 %380
      %382 = vrot.lane.b32.xlu0 %v331, 8
      %v383 = vpop.permute.xlu0 %382
      %384 = vrot.lane.b32.xlu0 %v335, 8
      %v385 = vpop.permute.xlu0 %384
      %386 = vrot.lane.b32.xlu0 %v334, 8
      %v387 = vpop.permute.xlu0 %386
      %388 = vrot.lane.b32.xlu0 %v338, 8
      %v389 = vpop.permute.xlu0 %388
      %390 = vrot.lane.b32.xlu0 %v337, 8
      %v391 = vpop.permute.xlu0 %390
      %392 = vrot.lane.b32.xlu0 %v341, 8
      %v393 = vpop.permute.xlu0 %392
      %394 = vrot.lane.b32.xlu0 %v340, 8
      %v395 = vpop.permute.xlu0 %394
      %396 = vrot.lane.b32.xlu0 %v344, 8
      %v397 = vpop.permute.xlu0 %396
      %398 = vrot.lane.b32.xlu0 %v343, 8
      %v399 = vpop.permute.xlu0 %398
      %400 = vrot.lane.b32.xlu0 %v347, 8
      %v401 = vpop.permute.xlu0 %400
      %402 = vrot.lane.b32.xlu0 %v346, 8
      %v403 = vpop.permute.xlu0 %402
      %vm432 = vcmask 1045504
      %v433 = vrot.slane %v245, 2
      %v434 = vrot.slane %v246, 2
      %v435 = vsel %vm432, %v433, %v434
      %v436 = vrot.slane %v247, 2
      %v437 = vrot.slane %v248, 2
      %v438 = vsel %vm432, %v436, %v437
      %v439 = vrot.slane %v249, 2
      %v440 = vrot.slane %v250, 2
      %v441 = vsel %vm432, %v439, %v440
      %v442 = vrot.slane %v251, 2
      %v443 = vrot.slane %v252, 2
      %v444 = vsel %vm432, %v442, %v443
      %v445 = vrot.slane %v253, 2
      %v446 = vrot.slane %v254, 2
      %v447 = vsel %vm432, %v445, %v446
      %v448 = vrot.slane %v255, 2
      %v449 = vrot.slane %v256, 2
      %v450 = vsel %vm432, %v448, %v449
      %v451 = vrot.slane %v257, 2
      %v452 = vrot.slane %v258, 2
      %v453 = vsel %vm432, %v451, %v452
      %v454 = vrot.slane %v259, 2
      %v455 = vrot.slane %v260, 2
      %v456 = vsel %vm432, %v454, %v455
      %v457 = vrot.slane %v261, 2
      %v458 = vrot.slane %v262, 2
      %v459 = vsel %vm432, %v457, %v458
      %v460 = vrot.slane %v263, 2
      %v461 = vrot.slane %v264, 2
      %v462 = vsel %vm432, %v460, %v461
      %v463 = vrot.slane %v265, 2
      %v464 = vrot.slane %v266, 2
      %v465 = vsel %vm432, %v463, %v464
      %v466 = vrot.slane %v267, 2
      %v467 = vrot.slane %v268, 2
      %v468 = vsel %vm432, %v466, %v467
      %v469 = vrot.slane %v269, 2
      %v470 = vrot.slane %v270, 2
      %v471 = vsel %vm432, %v469, %v470
      %v472 = vrot.slane %v271, 2
      %v473 = vrot.slane %v272, 2
      %v474 = vsel %vm432, %v472, %v473
      %475 = vrot.lane.b32.xlu0 %v435, 16
      %v476 = vpop.permute.xlu0 %475
      %477 = vrot.lane.b32.xlu0 %v434, 16
      %v478 = vpop.permute.xlu0 %477
      %479 = vrot.lane.b32.xlu0 %v438, 16
      %v480 = vpop.permute.xlu0 %479
      %481 = vrot.lane.b32.xlu0 %v437, 16
      %v482 = vpop.permute.xlu0 %481
      %483 = vrot.lane.b32.xlu0 %v441, 16
      %v484 = vpop.permute.xlu0 %483
      %485 = vrot.lane.b32.xlu0 %v440, 16
      %v486 = vpop.permute.xlu0 %485
      %487 = vrot.lane.b32.xlu0 %v444, 16
      %v488 = vpop.permute.xlu0 %487
      %489 = vrot.lane.b32.xlu0 %v443, 16
      %v490 = vpop.permute.xlu0 %489
      %491 = vrot.lane.b32.xlu0 %v447, 16
      %v492 = vpop.permute.xlu0 %491
      %493 = vrot.lane.b32.xlu0 %v446, 16
      %v494 = vpop.permute.xlu0 %493
      %495 = vrot.lane.b32.xlu0 %v450, 16
      %v496 = vpop.permute.xlu0 %495
      %497 = vrot.lane.b32.xlu0 %v449, 16
      %v498 = vpop.permute.xlu0 %497
      %499 = vrot.lane.b32.xlu0 %v453, 16
      %v500 = vpop.permute.xlu0 %499
      %501 = vrot.lane.b32.xlu0 %v452, 16
      %v502 = vpop.permute.xlu0 %501
      %503 = vrot.lane.b32.xlu0 %v456, 16
      %v504 = vpop.permute.xlu0 %503
      %505 = vrot.lane.b32.xlu0 %v455, 16
      %v506 = vpop.permute.xlu0 %505
      %507 = vrot.lane.b32.xlu0 %v459, 16
      %v508 = vpop.permute.xlu0 %507
      %509 = vrot.lane.b32.xlu0 %v458, 16
      %v510 = vpop.permute.xlu0 %509
      %511 = vrot.lane.b32.xlu0 %v462, 16
      %v512 = vpop.permute.xlu0 %511
      %513 = vrot.lane.b32.xlu0 %v461, 16
      %v514 = vpop.permute.xlu0 %513
      %515 = vrot.lane.b32.xlu0 %v465, 16
      %v516 = vpop.permute.xlu0 %515
      %517 = vrot.lane.b32.xlu0 %v464, 16
      %v518 = vpop.permute.xlu0 %517
      %519 = vrot.lane.b32.xlu0 %v468, 16
      %v520 = vpop.permute.xlu0 %519
      %521 = vrot.lane.b32.xlu0 %v467, 16
      %v522 = vpop.permute.xlu0 %521
      %523 = vrot.lane.b32.xlu0 %v471, 16
      %v524 = vpop.permute.xlu0 %523
      %525 = vrot.lane.b32.xlu0 %v470, 16
      %v526 = vpop.permute.xlu0 %525
      %527 = vrot.lane.b32.xlu0 %v474, 16
      %v528 = vpop.permute.xlu0 %527
      %529 = vrot.lane.b32.xlu0 %v473, 16
      %v530 = vpop.permute.xlu0 %529
      %561 = vrot.lane.b32.xlu0 %v247, 24
      %v562 = vpop.permute.xlu0 %561
      %563 = vrot.lane.b32.xlu0 %v248, 24
      %v564 = vpop.permute.xlu0 %563
      %565 = vrot.lane.b32.xlu0 %v249, 24
      %v566 = vpop.permute.xlu0 %565
      %567 = vrot.lane.b32.xlu0 %v250, 24
      %v568 = vpop.permute.xlu0 %567
      %569 = vrot.lane.b32.xlu0 %v251, 24
      %v570 = vpop.permute.xlu0 %569
      %571 = vrot.lane.b32.xlu0 %v252, 24
      %v572 = vpop.permute.xlu0 %571
      %573 = vrot.lane.b32.xlu0 %v253, 24
      %v574 = vpop.permute.xlu0 %573
      %575 = vrot.lane.b32.xlu0 %v254, 24
      %v576 = vpop.permute.xlu0 %575
      %577 = vrot.lane.b32.xlu0 %v255, 24
      %v578 = vpop.permute.xlu0 %577
      %579 = vrot.lane.b32.xlu0 %v256, 24
      %v580 = vpop.permute.xlu0 %579
      %581 = vrot.lane.b32.xlu0 %v257, 24
      %v582 = vpop.permute.xlu0 %581
      %583 = vrot.lane.b32.xlu0 %v258, 24
      %v584 = vpop.permute.xlu0 %583
      %585 = vrot.lane.b32.xlu0 %v259, 24
      %v586 = vpop.permute.xlu0 %585
      %587 = vrot.lane.b32.xlu0 %v260, 24
      %v588 = vpop.permute.xlu0 %587
      %589 = vrot.lane.b32.xlu0 %v261, 24
      %v590 = vpop.permute.xlu0 %589
      %591 = vrot.lane.b32.xlu0 %v262, 24
      %v592 = vpop.permute.xlu0 %591
      %593 = vrot.lane.b32.xlu0 %v263, 24
      %v594 = vpop.permute.xlu0 %593
      %595 = vrot.lane.b32.xlu0 %v264, 24
      %v596 = vpop.permute.xlu0 %595
      %597 = vrot.lane.b32.xlu0 %v265, 24
      %v598 = vpop.permute.xlu0 %597
      %599 = vrot.lane.b32.xlu0 %v266, 24
      %v600 = vpop.permute.xlu0 %599
      %601 = vrot.lane.b32.xlu0 %v267, 24
      %v602 = vpop.permute.xlu0 %601
      %603 = vrot.lane.b32.xlu0 %v268, 24
      %v604 = vpop.permute.xlu0 %603
      %605 = vrot.lane.b32.xlu0 %v269, 24
      %v606 = vpop.permute.xlu0 %605
      %607 = vrot.lane.b32.xlu0 %v270, 24
      %v608 = vpop.permute.xlu0 %607
      %609 = vrot.lane.b32.xlu0 %v271, 24
      %v610 = vpop.permute.xlu0 %609
      %611 = vrot.lane.b32.xlu0 %v272, 24
      %v612 = vpop.permute.xlu0 %611
      %613 = vrot.lane.b32.xlu0 %v273, 24
      %v614 = vpop.permute.xlu0 %613
      %615 = vrot.lane.b32.xlu0 %v274, 24
      %v616 = vpop.permute.xlu0 %615
      %v645 = vrot.slane %v273, 1
      %v646 = vrot.slane %v274, 1
      %v647 = vsel %vm305, %v645, %v646
      %648 = vrot.lane.b32.xlu0 %v311, 32
      %v649 = vpop.permute.xlu0 %648
      %650 = vrot.lane.b32.xlu0 %v310, 32
      %v651 = vpop.permute.xlu0 %650
      %652 = vrot.lane.b32.xlu0 %v314, 32
      %v653 = vpop.permute.xlu0 %652
      %654 = vrot.lane.b32.xlu0 %v313, 32
      %v655 = vpop.permute.xlu0 %654
      %656 = vrot.lane.b32.xlu0 %v317, 32
      %v657 = vpop.permute.xlu0 %656
      %658 = vrot.lane.b32.xlu0 %v316, 32
      %v659 = vpop.permute.xlu0 %658
      %660 = vrot.lane.b32.xlu0 %v320, 32
      %v661 = vpop.permute.xlu0 %660
      %662 = vrot.lane.b32.xlu0 %v319, 32
      %v663 = vpop.permute.xlu0 %662
      %664 = vrot.lane.b32.xlu0 %v323, 32
      %v665 = vpop.permute.xlu0 %664
      %666 = vrot.lane.b32.xlu0 %v322, 32
      %v667 = vpop.permute.xlu0 %666
      %668 = vrot.lane.b32.xlu0 %v326, 32
      %v669 = vpop.permute.xlu0 %668
      %670 = vrot.lane.b32.xlu0 %v325, 32
      %v671 = vpop.permute.xlu0 %670
      %672 = vrot.lane.b32.xlu0 %v329, 32
      %v673 = vpop.permute.xlu0 %672
      %674 = vrot.lane.b32.xlu0 %v328, 32
      %v675 = vpop.permute.xlu0 %674
      %676 = vrot.lane.b32.xlu0 %v332, 32
      %v677 = vpop.permute.xlu0 %676
      %678 = vrot.lane.b32.xlu0 %v331, 32
      %v679 = vpop.permute.xlu0 %678
      %680 = vrot.lane.b32.xlu0 %v335, 32
      %v681 = vpop.permute.xlu0 %680
      %682 = vrot.lane.b32.xlu0 %v334, 32
      %v683 = vpop.permute.xlu0 %682
      %684 = vrot.lane.b32.xlu0 %v338, 32
      %v685 = vpop.permute.xlu0 %684
      %686 = vrot.lane.b32.xlu0 %v337, 32
      %v687 = vpop.permute.xlu0 %686
      %688 = vrot.lane.b32.xlu0 %v341, 32
      %v689 = vpop.permute.xlu0 %688
      %690 = vrot.lane.b32.xlu0 %v340, 32
      %v691 = vpop.permute.xlu0 %690
      %692 = vrot.lane.b32.xlu0 %v344, 32
      %v693 = vpop.permute.xlu0 %692
      %694 = vrot.lane.b32.xlu0 %v343, 32
      %v695 = vpop.permute.xlu0 %694
      %696 = vrot.lane.b32.xlu0 %v347, 32
      %v697 = vpop.permute.xlu0 %696
      %698 = vrot.lane.b32.xlu0 %v346, 32
      %v699 = vpop.permute.xlu0 %698
      %700 = vrot.lane.b32.xlu0 %v647, 32
      %v701 = vpop.permute.xlu0 %700
      %702 = vrot.lane.b32.xlu0 %v646, 32
      %v703 = vpop.permute.xlu0 %702
      %v732 = vrot.slane %v273, 2
      %v733 = vrot.slane %v274, 2
      %v734 = vsel %vm432, %v732, %v733
      %735 = vrot.lane.b32.xlu0 %v438, 40
      %v736 = vpop.permute.xlu0 %735
      %737 = vrot.lane.b32.xlu0 %v437, 40
      %v738 = vpop.permute.xlu0 %737
      %739 = vrot.lane.b32.xlu0 %v441, 40
      %v740 = vpop.permute.xlu0 %739
      %741 = vrot.lane.b32.xlu0 %v440, 40
      %v742 = vpop.permute.xlu0 %741
      %743 = vrot.lane.b32.xlu0 %v444, 40
      %v744 = vpop.permute.xlu0 %743
      %745 = vrot.lane.b32.xlu0 %v443, 40
      %v746 = vpop.permute.xlu0 %745
      %747 = vrot.lane.b32.xlu0 %v447, 40
      %v748 = vpop.permute.xlu0 %747
      %749 = vrot.lane.b32.xlu0 %v446, 40
      %v750 = vpop.permute.xlu0 %749
      %751 = vrot.lane.b32.xlu0 %v450, 40
      %v752 = vpop.permute.xlu0 %751
      %753 = vrot.lane.b32.xlu0 %v449, 40
      %v754 = vpop.permute.xlu0 %753
      %755 = vrot.lane.b32.xlu0 %v453, 40
      %v756 = vpop.permute.xlu0 %755
      %757 = vrot.lane.b32.xlu0 %v452, 40
      %v758 = vpop.permute.xlu0 %757
      %759 = vrot.lane.b32.xlu0 %v456, 40
      %v760 = vpop.permute.xlu0 %759
      %761 = vrot.lane.b32.xlu0 %v455, 40
      %v762 = vpop.permute.xlu0 %761
      %763 = vrot.lane.b32.xlu0 %v459, 40
      %v764 = vpop.permute.xlu0 %763
      %765 = vrot.lane.b32.xlu0 %v458, 40
      %v766 = vpop.permute.xlu0 %765
      %767 = vrot.lane.b32.xlu0 %v462, 40
      %v768 = vpop.permute.xlu0 %767
      %769 = vrot.lane.b32.xlu0 %v461, 40
      %v770 = vpop.permute.xlu0 %769
      %771 = vrot.lane.b32.xlu0 %v465, 40
      %v772 = vpop.permute.xlu0 %771
      %773 = vrot.lane.b32.xlu0 %v464, 40
      %v774 = vpop.permute.xlu0 %773
      %775 = vrot.lane.b32.xlu0 %v468, 40
      %v776 = vpop.permute.xlu0 %775
      %777 = vrot.lane.b32.xlu0 %v467, 40
      %v778 = vpop.permute.xlu0 %777
      %779 = vrot.lane.b32.xlu0 %v471, 40
      %v780 = vpop.permute.xlu0 %779
      %781 = vrot.lane.b32.xlu0 %v470, 40
      %v782 = vpop.permute.xlu0 %781
      %783 = vrot.lane.b32.xlu0 %v474, 40
      %v784 = vpop.permute.xlu0 %783
      %785 = vrot.lane.b32.xlu0 %v473, 40
      %v786 = vpop.permute.xlu0 %785
      %787 = vrot.lane.b32.xlu0 %v734, 40
      %v788 = vpop.permute.xlu0 %787
      %789 = vrot.lane.b32.xlu0 %v733, 40
      %v790 = vpop.permute.xlu0 %789
      %821 = vrot.lane.b32.xlu0 %v249, 48
      %v822 = vpop.permute.xlu0 %821
      %823 = vrot.lane.b32.xlu0 %v250, 48
      %v824 = vpop.permute.xlu0 %823
      %825 = vrot.lane.b32.xlu0 %v251, 48
      %v826 = vpop.permute.xlu0 %825
      %827 = vrot.lane.b32.xlu0 %v252, 48
      %v828 = vpop.permute.xlu0 %827
      %829 = vrot.lane.b32.xlu0 %v253, 48
      %v830 = vpop.permute.xlu0 %829
      %831 = vrot.lane.b32.xlu0 %v254, 48
      %v832 = vpop.permute.xlu0 %831
      %833 = vrot.lane.b32.xlu0 %v255, 48
      %v834 = vpop.permute.xlu0 %833
      %835 = vrot.lane.b32.xlu0 %v256, 48
      %v836 = vpop.permute.xlu0 %835
      %837 = vrot.lane.b32.xlu0 %v257, 48
      %v838 = vpop.permute.xlu0 %837
      %839 = vrot.lane.b32.xlu0 %v258, 48
      %v840 = vpop.permute.xlu0 %839
      %841 = vrot.lane.b32.xlu0 %v259, 48
      %v842 = vpop.permute.xlu0 %841
      %843 = vrot.lane.b32.xlu0 %v260, 48
      %v844 = vpop.permute.xlu0 %843
      %845 = vrot.lane.b32.xlu0 %v261, 48
      %v846 = vpop.permute.xlu0 %845
      %847 = vrot.lane.b32.xlu0 %v262, 48
      %v848 = vpop.permute.xlu0 %847
      %849 = vrot.lane.b32.xlu0 %v263, 48
      %v850 = vpop.permute.xlu0 %849
      %851 = vrot.lane.b32.xlu0 %v264, 48
      %v852 = vpop.permute.xlu0 %851
      %853 = vrot.lane.b32.xlu0 %v265, 48
      %v854 = vpop.permute.xlu0 %853
      %855 = vrot.lane.b32.xlu0 %v266, 48
      %v856 = vpop.permute.xlu0 %855
      %857 = vrot.lane.b32.xlu0 %v267, 48
      %v858 = vpop.permute.xlu0 %857
      %859 = vrot.lane.b32.xlu0 %v268, 48
      %v860 = vpop.permute.xlu0 %859
      %861 = vrot.lane.b32.xlu0 %v269, 48
      %v862 = vpop.permute.xlu0 %861
      %863 = vrot.lane.b32.xlu0 %v270, 48
      %v864 = vpop.permute.xlu0 %863
      %865 = vrot.lane.b32.xlu0 %v271, 48
      %v866 = vpop.permute.xlu0 %865
      %867 = vrot.lane.b32.xlu0 %v272, 48
      %v868 = vpop.permute.xlu0 %867
      %869 = vrot.lane.b32.xlu0 %v273, 48
      %v870 = vpop.permute.xlu0 %869
      %871 = vrot.lane.b32.xlu0 %v274, 48
      %v872 = vpop.permute.xlu0 %871
      %873 = vrot.lane.b32.xlu0 %v275, 48
      %v874 = vpop.permute.xlu0 %873
      %875 = vrot.lane.b32.xlu0 %v276, 48
      %v876 = vpop.permute.xlu0 %875
      %v905 = vrot.slane %v275, 1
      %v906 = vrot.slane %v276, 1
      %v907 = vsel %vm305, %v905, %v906
      %908 = vrot.lane.b32.xlu0 %v314, 56
      %v909 = vpop.permute.xlu0 %908
      %910 = vrot.lane.b32.xlu0 %v313, 56
      %v911 = vpop.permute.xlu0 %910
      %912 = vrot.lane.b32.xlu0 %v317, 56
      %v913 = vpop.permute.xlu0 %912
      %914 = vrot.lane.b32.xlu0 %v316, 56
      %v915 = vpop.permute.xlu0 %914
      %916 = vrot.lane.b32.xlu0 %v320, 56
      %v917 = vpop.permute.xlu0 %916
      %918 = vrot.lane.b32.xlu0 %v319, 56
      %v919 = vpop.permute.xlu0 %918
      %920 = vrot.lane.b32.xlu0 %v323, 56
      %v921 = vpop.permute.xlu0 %920
      %922 = vrot.lane.b32.xlu0 %v322, 56
      %v923 = vpop.permute.xlu0 %922
      %924 = vrot.lane.b32.xlu0 %v326, 56
      %v925 = vpop.permute.xlu0 %924
      %926 = vrot.lane.b32.xlu0 %v325, 56
      %v927 = vpop.permute.xlu0 %926
      %928 = vrot.lane.b32.xlu0 %v329, 56
      %v929 = vpop.permute.xlu0 %928
      %930 = vrot.lane.b32.xlu0 %v328, 56
      %v931 = vpop.permute.xlu0 %930
      %932 = vrot.lane.b32.xlu0 %v332, 56
      %v933 = vpop.permute.xlu0 %932
      %934 = vrot.lane.b32.xlu0 %v331, 56
      %v935 = vpop.permute.xlu0 %934
      %936 = vrot.lane.b32.xlu0 %v335, 56
      %v937 = vpop.permute.xlu0 %936
      %938 = vrot.lane.b32.xlu0 %v334, 56
      %v939 = vpop.permute.xlu0 %938
      %940 = vrot.lane.b32.xlu0 %v338, 56
      %v941 = vpop.permute.xlu0 %940
      %942 = vrot.lane.b32.xlu0 %v337, 56
      %v943 = vpop.permute.xlu0 %942
      %944 = vrot.lane.b32.xlu0 %v341, 56
      %v945 = vpop.permute.xlu0 %944
      %946 = vrot.lane.b32.xlu0 %v340, 56
      %v947 = vpop.permute.xlu0 %946
      %948 = vrot.lane.b32.xlu0 %v344, 56
      %v949 = vpop.permute.xlu0 %948
      %950 = vrot.lane.b32.xlu0 %v343, 56
      %v951 = vpop.permute.xlu0 %950
      %952 = vrot.lane.b32.xlu0 %v347, 56
      %v953 = vpop.permute.xlu0 %952
      %954 = vrot.lane.b32.xlu0 %v346, 56
      %v955 = vpop.permute.xlu0 %954
      %956 = vrot.lane.b32.xlu0 %v647, 56
      %v957 = vpop.permute.xlu0 %956
      %958 = vrot.lane.b32.xlu0 %v646, 56
      %v959 = vpop.permute.xlu0 %958
      %960 = vrot.lane.b32.xlu0 %v907, 56
      %v961 = vpop.permute.xlu0 %960
      %962 = vrot.lane.b32.xlu0 %v906, 56
      %v963 = vpop.permute.xlu0 %962
      %v992 = vrot.slane %v275, 2
      %v993 = vrot.slane %v276, 2
      %v994 = vsel %vm432, %v992, %v993
      %995 = vrot.lane.b32.xlu0 %v441, 64
      %v996 = vpop.permute.xlu0 %995
      %997 = vrot.lane.b32.xlu0 %v440, 64
      %v998 = vpop.permute.xlu0 %997
      %999 = vrot.lane.b32.xlu0 %v444, 64
      %v1000 = vpop.permute.xlu0 %999
      %1001 = vrot.lane.b32.xlu0 %v443, 64
      %v1002 = vpop.permute.xlu0 %1001
      %1003 = vrot.lane.b32.xlu0 %v447, 64
      %v1004 = vpop.permute.xlu0 %1003
      %1005 = vrot.lane.b32.xlu0 %v446, 64
      %v1006 = vpop.permute.xlu0 %1005
      %1007 = vrot.lane.b32.xlu0 %v450, 64
      %v1008 = vpop.permute.xlu0 %1007
      %1009 = vrot.lane.b32.xlu0 %v449, 64
      %v1010 = vpop.permute.xlu0 %1009
      %1011 = vrot.lane.b32.xlu0 %v453, 64
      %v1012 = vpop.permute.xlu0 %1011
      %1013 = vrot.lane.b32.xlu0 %v452, 64
      %v1014 = vpop.permute.xlu0 %1013
      %1015 = vrot.lane.b32.xlu0 %v456, 64
      %v1016 = vpop.permute.xlu0 %1015
      %1017 = vrot.lane.b32.xlu0 %v455, 64
      %v1018 = vpop.permute.xlu0 %1017
      %1019 = vrot.lane.b32.xlu0 %v459, 64
      %v1020 = vpop.permute.xlu0 %1019
      %1021 = vrot.lane.b32.xlu0 %v458, 64
      %v1022 = vpop.permute.xlu0 %1021
      %1023 = vrot.lane.b32.xlu0 %v462, 64
      %v1024 = vpop.permute.xlu0 %1023
      %1025 = vrot.lane.b32.xlu0 %v461, 64
      %v1026 = vpop.permute.xlu0 %1025
      %1027 = vrot.lane.b32.xlu0 %v465, 64
      %v1028 = vpop.permute.xlu0 %1027
      %1029 = vrot.lane.b32.xlu0 %v464, 64
      %v1030 = vpop.permute.xlu0 %1029
      %1031 = vrot.lane.b32.xlu0 %v468, 64
      %v1032 = vpop.permute.xlu0 %1031
      %1033 = vrot.lane.b32.xlu0 %v467, 64
      %v1034 = vpop.permute.xlu0 %1033
      %1035 = vrot.lane.b32.xlu0 %v471, 64
      %v1036 = vpop.permute.xlu0 %1035
      %1037 = vrot.lane.b32.xlu0 %v470, 64
      %v1038 = vpop.permute.xlu0 %1037
      %1039 = vrot.lane.b32.xlu0 %v474, 64
      %v1040 = vpop.permute.xlu0 %1039
      %1041 = vrot.lane.b32.xlu0 %v473, 64
      %v1042 = vpop.permute.xlu0 %1041
      %1043 = vrot.lane.b32.xlu0 %v734, 64
      %v1044 = vpop.permute.xlu0 %1043
      %1045 = vrot.lane.b32.xlu0 %v733, 64
      %v1046 = vpop.permute.xlu0 %1045
      %1047 = vrot.lane.b32.xlu0 %v994, 64
      %v1048 = vpop.permute.xlu0 %1047
      %1049 = vrot.lane.b32.xlu0 %v993, 64
      %v1050 = vpop.permute.xlu0 %1049
      %vm1079 = vcmask 64512
      %v1080 = vsel %vm1079, %v245, %v349
      %v1081 = vsel %vm1079, %v246, %v351
      %v1082 = vsel %vm1079, %v247, %v353
      %v1083 = vsel %vm1079, %v248, %v355
      %v1084 = vsel %vm1079, %v249, %v357
      %v1085 = vsel %vm1079, %v250, %v359
      %v1086 = vsel %vm1079, %v251, %v361
      %v1087 = vsel %vm1079, %v252, %v363
      %v1088 = vsel %vm1079, %v253, %v365
      %v1089 = vsel %vm1079, %v254, %v367
      %v1090 = vsel %vm1079, %v255, %v369
      %v1091 = vsel %vm1079, %v256, %v371
      %v1092 = vsel %vm1079, %v257, %v373
      %v1093 = vsel %vm1079, %v258, %v375
      %v1094 = vsel %vm1079, %v259, %v377
      %v1095 = vsel %vm1079, %v260, %v379
      %v1096 = vsel %vm1079, %v261, %v381
      %v1097 = vsel %vm1079, %v262, %v383
      %v1098 = vsel %vm1079, %v263, %v385
      %v1099 = vsel %vm1079, %v264, %v387
      %v1100 = vsel %vm1079, %v265, %v389
      %v1101 = vsel %vm1079, %v266, %v391
      %v1102 = vsel %vm1079, %v267, %v393
      %v1103 = vsel %vm1079, %v268, %v395
      %v1104 = vsel %vm1079, %v269, %v397
      %v1105 = vsel %vm1079, %v270, %v399
      %v1106 = vsel %vm1079, %v271, %v401
      %v1107 = vsel %vm1079, %v272, %v403
      %vm1108 = vcmask 130048
      %v1109 = vsel %vm1108, %v1080, %v476
      %v1110 = vsel %vm1108, %v1081, %v478
      %v1111 = vsel %vm1108, %v1082, %v480
      %v1112 = vsel %vm1108, %v1083, %v482
      %v1113 = vsel %vm1108, %v1084, %v484
      %v1114 = vsel %vm1108, %v1085, %v486
      %v1115 = vsel %vm1108, %v1086, %v488
      %v1116 = vsel %vm1108, %v1087, %v490
      %v1117 = vsel %vm1108, %v1088, %v492
      %v1118 = vsel %vm1108, %v1089, %v494
      %v1119 = vsel %vm1108, %v1090, %v496
      %v1120 = vsel %vm1108, %v1091, %v498
      %v1121 = vsel %vm1108, %v1092, %v500
      %v1122 = vsel %vm1108, %v1093, %v502
      %v1123 = vsel %vm1108, %v1094, %v504
      %v1124 = vsel %vm1108, %v1095, %v506
      %v1125 = vsel %vm1108, %v1096, %v508
      %v1126 = vsel %vm1108, %v1097, %v510
      %v1127 = vsel %vm1108, %v1098, %v512
      %v1128 = vsel %vm1108, %v1099, %v514
      %v1129 = vsel %vm1108, %v1100, %v516
      %v1130 = vsel %vm1108, %v1101, %v518
      %v1131 = vsel %vm1108, %v1102, %v520
      %v1132 = vsel %vm1108, %v1103, %v522
      %v1133 = vsel %vm1108, %v1104, %v524
      %v1134 = vsel %vm1108, %v1105, %v526
      %v1135 = vsel %vm1108, %v1106, %v528
      %v1136 = vsel %vm1108, %v1107, %v530
      %vm1137 = vcmask 195584
      %v1138 = vsel %vm1137, %v1109, %v562
      %v1139 = vsel %vm1137, %v1110, %v564
      %v1140 = vsel %vm1137, %v1111, %v566
      %v1141 = vsel %vm1137, %v1112, %v568
      %v1142 = vsel %vm1137, %v1113, %v570
      %v1143 = vsel %vm1137, %v1114, %v572
      %v1144 = vsel %vm1137, %v1115, %v574
      %v1145 = vsel %vm1137, %v1116, %v576
      %v1146 = vsel %vm1137, %v1117, %v578
      %v1147 = vsel %vm1137, %v1118, %v580
      %v1148 = vsel %vm1137, %v1119, %v582
      %v1149 = vsel %vm1137, %v1120, %v584
      %v1150 = vsel %vm1137, %v1121, %v586
      %v1151 = vsel %vm1137, %v1122, %v588
      %v1152 = vsel %vm1137, %v1123, %v590
      %v1153 = vsel %vm1137, %v1124, %v592
      %v1154 = vsel %vm1137, %v1125, %v594
      %v1155 = vsel %vm1137, %v1126, %v596
      %v1156 = vsel %vm1137, %v1127, %v598
      %v1157 = vsel %vm1137, %v1128, %v600
      %v1158 = vsel %vm1137, %v1129, %v602
      %v1159 = vsel %vm1137, %v1130, %v604
      %v1160 = vsel %vm1137, %v1131, %v606
      %v1161 = vsel %vm1137, %v1132, %v608
      %v1162 = vsel %vm1137, %v1133, %v610
      %v1163 = vsel %vm1137, %v1134, %v612
      %v1164 = vsel %vm1137, %v1135, %v614
      %v1165 = vsel %vm1137, %v1136, %v616
      %vm1166 = vcmask 261120
      %v1167 = vsel %vm1166, %v1138, %v649
      %v1168 = vsel %vm1166, %v1139, %v651
      %v1169 = vsel %vm1166, %v1140, %v653
      %v1170 = vsel %vm1166, %v1141, %v655
      %v1171 = vsel %vm1166, %v1142, %v657
      %v1172 = vsel %vm1166, %v1143, %v659
      %v1173 = vsel %vm1166, %v1144, %v661
      %v1174 = vsel %vm1166, %v1145, %v663
      %v1175 = vsel %vm1166, %v1146, %v665
      %v1176 = vsel %vm1166, %v1147, %v667
      %v1177 = vsel %vm1166, %v1148, %v669
      %v1178 = vsel %vm1166, %v1149, %v671
      %v1179 = vsel %vm1166, %v1150, %v673
      %v1180 = vsel %vm1166, %v1151, %v675
      %v1181 = vsel %vm1166, %v1152, %v677
      %v1182 = vsel %vm1166, %v1153, %v679
      %v1183 = vsel %vm1166, %v1154, %v681
      %v1184 = vsel %vm1166, %v1155, %v683
      %v1185 = vsel %vm1166, %v1156, %v685
      %v1186 = vsel %vm1166, %v1157, %v687
      %v1187 = vsel %vm1166, %v1158, %v689
      %v1188 = vsel %vm1166, %v1159, %v691
      %v1189 = vsel %vm1166, %v1160, %v693
      %v1190 = vsel %vm1166, %v1161, %v695
      %v1191 = vsel %vm1166, %v1162, %v697
      %v1192 = vsel %vm1166, %v1163, %v699
      %v1193 = vsel %vm1166, %v1164, %v701
      %v1194 = vsel %vm1166, %v1165, %v703
      %vm1195 = vcmask 326656
      %v1196 = vsel %vm1195, %v1167, %v736
      %v1197 = vsel %vm1195, %v1168, %v738
      %v1198 = vsel %vm1195, %v1169, %v740
      %v1199 = vsel %vm1195, %v1170, %v742
      %v1200 = vsel %vm1195, %v1171, %v744
      %v1201 = vsel %vm1195, %v1172, %v746
      %v1202 = vsel %vm1195, %v1173, %v748
      %v1203 = vsel %vm1195, %v1174, %v750
      %v1204 = vsel %vm1195, %v1175, %v752
      %v1205 = vsel %vm1195, %v1176, %v754
      %v1206 = vsel %vm1195, %v1177, %v756
      %v1207 = vsel %vm1195, %v1178, %v758
      %v1208 = vsel %vm1195, %v1179, %v760
      %v1209 = vsel %vm1195, %v1180, %v762
      %v1210 = vsel %vm1195, %v1181, %v764
      %v1211 = vsel %vm1195, %v1182, %v766
      %v1212 = vsel %vm1195, %v1183, %v768
      %v1213 = vsel %vm1195, %v1184, %v770
      %v1214 = vsel %vm1195, %v1185, %v772
      %v1215 = vsel %vm1195, %v1186, %v774
      %v1216 = vsel %vm1195, %v1187, %v776
      %v1217 = vsel %vm1195, %v1188, %v778
      %v1218 = vsel %vm1195, %v1189, %v780
      %v1219 = vsel %vm1195, %v1190, %v782
      %v1220 = vsel %vm1195, %v1191, %v784
      %v1221 = vsel %vm1195, %v1192, %v786
      %v1222 = vsel %vm1195, %v1193, %v788
      %v1223 = vsel %vm1195, %v1194, %v790
      %vm1224 = vcmask 392192
      %v1225 = vsel %vm1224, %v1196, %v822
      %v1226 = vsel %vm1224, %v1197, %v824
      %v1227 = vsel %vm1224, %v1198, %v826
      %v1228 = vsel %vm1224, %v1199, %v828
      %v1229 = vsel %vm1224, %v1200, %v830
      %v1230 = vsel %vm1224, %v1201, %v832
      %v1231 = vsel %vm1224, %v1202, %v834
      %v1232 = vsel %vm1224, %v1203, %v836
      %v1233 = vsel %vm1224, %v1204, %v838
      %v1234 = vsel %vm1224, %v1205, %v840
      %v1235 = vsel %vm1224, %v1206, %v842
      %v1236 = vsel %vm1224, %v1207, %v844
      %v1237 = vsel %vm1224, %v1208, %v846
      %v1238 = vsel %vm1224, %v1209, %v848
      %v1239 = vsel %vm1224, %v1210, %v850
      %v1240 = vsel %vm1224, %v1211, %v852
      %v1241 = vsel %vm1224, %v1212, %v854
      %v1242 = vsel %vm1224, %v1213, %v856
      %v1243 = vsel %vm1224, %v1214, %v858
      %v1244 = vsel %vm1224, %v1215, %v860
      %v1245 = vsel %vm1224, %v1216, %v862
      %v1246 = vsel %vm1224, %v1217, %v864
      %v1247 = vsel %vm1224, %v1218, %v866
      %v1248 = vsel %vm1224, %v1219, %v868
      %v1249 = vsel %vm1224, %v1220, %v870
      %v1250 = vsel %vm1224, %v1221, %v872
      %v1251 = vsel %vm1224, %v1222, %v874
      %v1252 = vsel %vm1224, %v1223, %v876
      %vm1253 = vcmask 457728
      %v1254 = vsel %vm1253, %v1225, %v909
      %v1255 = vsel %vm1253, %v1226, %v911
      %v1256 = vsel %vm1253, %v1227, %v913
      %v1257 = vsel %vm1253, %v1228, %v915
      %v1258 = vsel %vm1253, %v1229, %v917
      %v1259 = vsel %vm1253, %v1230, %v919
      %v1260 = vsel %vm1253, %v1231, %v921
      %v1261 = vsel %vm1253, %v1232, %v923
      %v1262 = vsel %vm1253, %v1233, %v925
      %v1263 = vsel %vm1253, %v1234, %v927
      %v1264 = vsel %vm1253, %v1235, %v929
      %v1265 = vsel %vm1253, %v1236, %v931
      %v1266 = vsel %vm1253, %v1237, %v933
      %v1267 = vsel %vm1253, %v1238, %v935
      %v1268 = vsel %vm1253, %v1239, %v937
      %v1269 = vsel %vm1253, %v1240, %v939
      %v1270 = vsel %vm1253, %v1241, %v941
      %v1271 = vsel %vm1253, %v1242, %v943
      %v1272 = vsel %vm1253, %v1243, %v945
      %v1273 = vsel %vm1253, %v1244, %v947
      %v1274 = vsel %vm1253, %v1245, %v949
      %v1275 = vsel %vm1253, %v1246, %v951
      %v1276 = vsel %vm1253, %v1247, %v953
      %v1277 = vsel %vm1253, %v1248, %v955
      %v1278 = vsel %vm1253, %v1249, %v957
      %v1279 = vsel %vm1253, %v1250, %v959
      %v1280 = vsel %vm1253, %v1251, %v961
      %v1281 = vsel %vm1253, %v1252, %v963
      %vm1282 = vcmask 523264
      %v1283 = vsel %vm1282, %v1254, %v996
      %v1284 = vsel %vm1282, %v1255, %v998
      %v1285 = vsel %vm1282, %v1256, %v1000
      %v1286 = vsel %vm1282, %v1257, %v1002
      %v1287 = vsel %vm1282, %v1258, %v1004
      %v1288 = vsel %vm1282, %v1259, %v1006
      %v1289 = vsel %vm1282, %v1260, %v1008
      %v1290 = vsel %vm1282, %v1261, %v1010
      %v1291 = vsel %vm1282, %v1262, %v1012
      %v1292 = vsel %vm1282, %v1263, %v1014
      %v1293 = vsel %vm1282, %v1264, %v1016
      %v1294 = vsel %vm1282, %v1265, %v1018
      %v1295 = vsel %vm1282, %v1266, %v1020
      %v1296 = vsel %vm1282, %v1267, %v1022
      %v1297 = vsel %vm1282, %v1268, %v1024
      %v1298 = vsel %vm1282, %v1269, %v1026
      %v1299 = vsel %vm1282, %v1270, %v1028
      %v1300 = vsel %vm1282, %v1271, %v1030
      %v1301 = vsel %vm1282, %v1272, %v1032
      %v1302 = vsel %vm1282, %v1273, %v1034
      %v1303 = vsel %vm1282, %v1274, %v1036
      %v1304 = vsel %vm1282, %v1275, %v1038
      %v1305 = vsel %vm1282, %v1276, %v1040
      %v1306 = vsel %vm1282, %v1277, %v1042
      %v1307 = vsel %vm1282, %v1278, %v1044
      %v1308 = vsel %vm1282, %v1279, %v1046
      %v1309 = vsel %vm1282, %v1280, %v1048
      %v1310 = vsel %vm1282, %v1281, %v1050
      %v1339 = vrot.slane %v1283, 2
      %v1340 = vrot.slane %v1283, 4
      %v1341 = vrot.slane %v1283, 6
      %v1342 = vrot.slane %v1284, 2
      %v1343 = vrot.slane %v1284, 4
      %v1344 = vrot.slane %v1285, 2
      %v1345 = vrot.slane %v1285, 4
      %v1346 = vrot.slane %v1285, 6
      %v1347 = vrot.slane %v1286, 2
      %v1348 = vrot.slane %v1286, 4
      %v1349 = vrot.slane %v1287, 2
      %v1350 = vrot.slane %v1287, 4
      %v1351 = vrot.slane %v1287, 6
      %v1352 = vrot.slane %v1288, 2
      %v1353 = vrot.slane %v1288, 4
      %v1354 = vrot.slane %v1289, 2
      %v1355 = vrot.slane %v1289, 4
      %v1356 = vrot.slane %v1289, 6
      %v1357 = vrot.slane %v1290, 2
      %v1358 = vrot.slane %v1290, 4
      %v1359 = vrot.slane %v1291, 2
      %v1360 = vrot.slane %v1291, 4
      %v1361 = vrot.slane %v1291, 6
      %v1362 = vrot.slane %v1292, 2
      %v1363 = vrot.slane %v1292, 4
      %v1364 = vrot.slane %v1293, 2
      %v1365 = vrot.slane %v1293, 4
      %v1366 = vrot.slane %v1293, 6
      %v1367 = vrot.slane %v1294, 2
      %v1368 = vrot.slane %v1294, 4
      %v1369 = vrot.slane %v1295, 2
      %v1370 = vrot.slane %v1295, 4
      %v1371 = vrot.slane %v1295, 6
      %v1372 = vrot.slane %v1296, 2
      %v1373 = vrot.slane %v1296, 4
      %v1374 = vrot.slane %v1297, 2
      %v1375 = vrot.slane %v1297, 4
      %v1376 = vrot.slane %v1297, 6
      %v1377 = vrot.slane %v1298, 2
      %v1378 = vrot.slane %v1298, 4
      %v1379 = vrot.slane %v1299, 2
      %v1380 = vrot.slane %v1299, 4
      %v1381 = vrot.slane %v1299, 6
      %v1382 = vrot.slane %v1300, 2
      %v1383 = vrot.slane %v1300, 4
      %v1384 = vrot.slane %v1301, 2
      %v1385 = vrot.slane %v1301, 4
      %v1386 = vrot.slane %v1301, 6
      %v1387 = vrot.slane %v1302, 2
      %v1388 = vrot.slane %v1302, 4
      %v1389 = vrot.slane %v1303, 2
      %v1390 = vrot.slane %v1303, 4
      %v1391 = vrot.slane %v1303, 6
      %v1392 = vrot.slane %v1304, 2
      %v1393 = vrot.slane %v1304, 4
      %v1394 = vrot.slane %v1305, 2
      %v1395 = vrot.slane %v1305, 4
      %v1396 = vrot.slane %v1305, 6
      %v1397 = vrot.slane %v1306, 2
      %v1398 = vrot.slane %v1306, 4
      %v1399 = vrot.slane %v1307, 2
      %v1400 = vrot.slane %v1307, 4
      %v1401 = vrot.slane %v1307, 6
      %v1402 = vrot.slane %v1308, 2
      %v1403 = vrot.slane %v1308, 4
      %v1404 = vrot.slane %v1309, 2
      %v1405 = vrot.slane %v1309, 4
      %v1406 = vrot.slane %v1309, 6
      %v1407 = vrot.slane %v1310, 2
      %v1408 = vrot.slane %v1310, 4
      %v1410 = vperm.slane %v243, 0
      %1412 = vst [vmem:[#allocation1] ss:$4 sm:$0xff] %v1283
      %s1413 = scalar_lea.vmem [#allocation1], 1
      %1414 = vst [vmem:[%s1413] ss:$4 sm:$0xff] %v1339
      %s1415 = scalar_lea.vmem [#allocation1], 2
      %1416 = vst [vmem:[%s1415] ss:$4 sm:$0xff] %v1340
      %s1417 = scalar_lea.vmem [#allocation1], 3
      %1418 = vst [vmem:[%s1417] ss:$4 sm:$0xff] %v1341
      %s1419 = scalar_lea.vmem [#allocation1], 32
      %1420 = vst [vmem:[%s1419] ss:$4 sm:$0xff] %v1284
      %s1421 = scalar_lea.vmem [#allocation1], 33
      %1422 = vst [vmem:[%s1421] ss:$4 sm:$0xff] %v1342
      %s1423 = scalar_lea.vmem [#allocation1], 34
      %1424 = vst [vmem:[%s1423] ss:$4 sm:$0xff] %v1343
      %s1425 = scalar_lea.vmem [#allocation1], 35
      %1426 = vst [vmem:[%s1425] ss:$4 sm:$0xff] %v1285
      %v1427 = vld.sshfl [vmem:[#allocation1] sm:$0xff pattern:$0x73625140]
      %v1428 = vld.sshfl [vmem:[#allocation1 + $0x20] sm:$0xff pattern:$0x73625140]
      %1429 = vst [vmem:[#allocation1] ss:$4 sm:$0xff] %v1344
      %1430 = vst [vmem:[%s1413] ss:$4 sm:$0xff] %v1345
      %1431 = vst [vmem:[%s1415] ss:$4 sm:$0xff] %v1346
      %1432 = vst [vmem:[%s1417] ss:$4 sm:$0xff] %v1286
      %1433 = vst [vmem:[%s1419] ss:$4 sm:$0xff] %v1347
      %1434 = vst [vmem:[%s1421] ss:$4 sm:$0xff] %v1348
      %1435 = vst [vmem:[%s1423] ss:$4 sm:$0xff] %v1287
      %1436 = vst [vmem:[%s1425] ss:$4 sm:$0xff] %v1349
      %v1437 = vld.sshfl [vmem:[#allocation1] sm:$0xff pattern:$0x73625140]
      %v1438 = vld.sshfl [vmem:[#allocation1 + $0x20] sm:$0xff pattern:$0x73625140]
      %1439 = vst [vmem:[#allocation1] ss:$4 sm:$0xff] %v1350
      %1440 = vst [vmem:[%s1413] ss:$4 sm:$0xff] %v1351
      %1441 = vst [vmem:[%s1415] ss:$4 sm:$0xff] %v1288
      %1442 = vst [vmem:[%s1417] ss:$4 sm:$0xff] %v1352
      %1443 = vst [vmem:[%s1419] ss:$4 sm:$0xff] %v1353
      %1444 = vst [vmem:[%s1421] ss:$4 sm:$0xff] %v1289
      %1445 = vst [vmem:[%s1423] ss:$4 sm:$0xff] %v1354
      %1446 = vst [vmem:[%s1425] ss:$4 sm:$0xff] %v1355
      %v1447 = vld.sshfl [vmem:[#allocation1] sm:$0xff pattern:$0x73625140]
      %v1448 = vld.sshfl [vmem:[#allocation1 + $0x20] sm:$0xff pattern:$0x73625140]
      %1449 = vst [vmem:[#allocation1] ss:$4 sm:$0xff] %v1356
      %1450 = vst [vmem:[%s1413] ss:$4 sm:$0xff] %v1290
      %1451 = vst [vmem:[%s1415] ss:$4 sm:$0xff] %v1357
      %1452 = vst [vmem:[%s1417] ss:$4 sm:$0xff] %v1358
      %1453 = vst [vmem:[%s1419] ss:$4 sm:$0xff] %v1291
      %1454 = vst [vmem:[%s1421] ss:$4 sm:$0xff] %v1359
      %1455 = vst [vmem:[%s1423] ss:$4 sm:$0xff] %v1360
      %1456 = vst [vmem:[%s1425] ss:$4 sm:$0xff] %v1361
      %v1457 = vld.sshfl [vmem:[#allocation1] sm:$0xff pattern:$0x73625140]
      %v1458 = vld.sshfl [vmem:[#allocation1 + $0x20] sm:$0xff pattern:$0x73625140]
      %1459 = vst [vmem:[#allocation1] ss:$4 sm:$0xff] %v1292
      %1460 = vst [vmem:[%s1413] ss:$4 sm:$0xff] %v1362
      %1461 = vst [vmem:[%s1415] ss:$4 sm:$0xff] %v1363
      %1462 = vst [vmem:[%s1417] ss:$4 sm:$0xff] %v1293
      %1463 = vst [vmem:[%s1419] ss:$4 sm:$0xff] %v1364
      %1464 = vst [vmem:[%s1421] ss:$4 sm:$0xff] %v1365
      %1465 = vst [vmem:[%s1423] ss:$4 sm:$0xff] %v1366
      %1466 = vst [vmem:[%s1425] ss:$4 sm:$0xff] %v1294
      %v1467 = vld.sshfl [vmem:[#allocation1] sm:$0xff pattern:$0x73625140]
      %v1468 = vld.sshfl [vmem:[#allocation1 + $0x20] sm:$0xff pattern:$0x73625140]
      %1469 = vst [vmem:[#allocation1] ss:$4 sm:$0xff] %v1367
      %1470 = vst [vmem:[%s1413] ss:$4 sm:$0xff] %v1368
      %1471 = vst [vmem:[%s1415] ss:$4 sm:$0xff] %v1295
      %1472 = vst [vmem:[%s1417] ss:$4 sm:$0xff] %v1369
      %1473 = vst [vmem:[%s1419] ss:$4 sm:$0xff] %v1370
      %1474 = vst [vmem:[%s1421] ss:$4 sm:$0xff] %v1371
      %1475 = vst [vmem:[%s1423] ss:$4 sm:$0xff] %v1296
      %1476 = vst [vmem:[%s1425] ss:$4 sm:$0xff] %v1372
      %v1477 = vld.sshfl [vmem:[#allocation1] sm:$0xff pattern:$0x73625140]
      %v1478 = vld.sshfl [vmem:[#allocation1 + $0x20] sm:$0xff pattern:$0x73625140]
      %1479 = vst [vmem:[#allocation1] ss:$4 sm:$0xff] %v1373
      %1480 = vst [vmem:[%s1413] ss:$4 sm:$0xff] %v1297
      %1481 = vst [vmem:[%s1415] ss:$4 sm:$0xff] %v1374
      %1482 = vst [vmem:[%s1417] ss:$4 sm:$0xff] %v1375
      %1483 = vst [vmem:[%s1419] ss:$4 sm:$0xff] %v1376
      %1484 = vst [vmem:[%s1421] ss:$4 sm:$0xff] %v1298
      %1485 = vst [vmem:[%s1423] ss:$4 sm:$0xff] %v1377
      %1486 = vst [vmem:[%s1425] ss:$4 sm:$0xff] %v1378
      %v1487 = vld.sshfl [vmem:[#allocation1] sm:$0xff pattern:$0x73625140]
      %v1488 = vld.sshfl [vmem:[#allocation1 + $0x20] sm:$0xff pattern:$0x73625140]
      %1489 = vst [vmem:[#allocation1] ss:$4 sm:$0xff] %v1299
      %1490 = vst [vmem:[%s1413] ss:$4 sm:$0xff] %v1379
      %1491 = vst [vmem:[%s1415] ss:$4 sm:$0xff] %v1380
      %1492 = vst [vmem:[%s1417] ss:$4 sm:$0xff] %v1381
      %1493 = vst [vmem:[%s1419] ss:$4 sm:$0xff] %v1300
      %1494 = vst [vmem:[%s1421] ss:$4 sm:$0xff] %v1382
      %1495 = vst [vmem:[%s1423] ss:$4 sm:$0xff] %v1383
      %1496 = vst [vmem:[%s1425] ss:$4 sm:$0xff] %v1301
      %v1497 = vld.sshfl [vmem:[#allocation1] sm:$0xff pattern:$0x73625140]
      %v1498 = vld.sshfl [vmem:[#allocation1 + $0x20] sm:$0xff pattern:$0x73625140]
      %1499 = vst [vmem:[#allocation1] ss:$4 sm:$0xff] %v1384
      %1500 = vst [vmem:[%s1413] ss:$4 sm:$0xff] %v1385
      %1501 = vst [vmem:[%s1415] ss:$4 sm:$0xff] %v1386
      %1502 = vst [vmem:[%s1417] ss:$4 sm:$0xff] %v1302
      %1503 = vst [vmem:[%s1419] ss:$4 sm:$0xff] %v1387
      %1504 = vst [vmem:[%s1421] ss:$4 sm:$0xff] %v1388
      %1505 = vst [vmem:[%s1423] ss:$4 sm:$0xff] %v1303
      %1506 = vst [vmem:[%s1425] ss:$4 sm:$0xff] %v1389
      %v1507 = vld.sshfl [vmem:[#allocation1] sm:$0xff pattern:$0x73625140]
      %v1508 = vld.sshfl [vmem:[#allocation1 + $0x20] sm:$0xff pattern:$0x73625140]
      %1509 = vst [vmem:[#allocation1] ss:$4 sm:$0xff] %v1390
      %1510 = vst [vmem:[%s1413] ss:$4 sm:$0xff] %v1391
      %1511 = vst [vmem:[%s1415] ss:$4 sm:$0xff] %v1304
      %1512 = vst [vmem:[%s1417] ss:$4 sm:$0xff] %v1392
      %1513 = vst [vmem:[%s1419] ss:$4 sm:$0xff] %v1393
      %1514 = vst [vmem:[%s1421] ss:$4 sm:$0xff] %v1305
      %1515 = vst [vmem:[%s1423] ss:$4 sm:$0xff] %v1394
      %1516 = vst [vmem:[%s1425] ss:$4 sm:$0xff] %v1395
      %v1517 = vld.sshfl [vmem:[#allocation1] sm:$0xff pattern:$0x73625140]
      %v1518 = vld.sshfl [vmem:[#allocation1 + $0x20] sm:$0xff pattern:$0x73625140]
      %1519 = vst [vmem:[#allocation1] ss:$4 sm:$0xff] %v1396
      %1520 = vst [vmem:[%s1413] ss:$4 sm:$0xff] %v1306
      %1521 = vst [vmem:[%s1415] ss:$4 sm:$0xff] %v1397
      %1522 = vst [vmem:[%s1417] ss:$4 sm:$0xff] %v1398
      %1523 = vst [vmem:[%s1419] ss:$4 sm:$0xff] %v1307
      %1524 = vst [vmem:[%s1421] ss:$4 sm:$0xff] %v1399
      %1525 = vst [vmem:[%s1423] ss:$4 sm:$0xff] %v1400
      %1526 = vst [vmem:[%s1425] ss:$4 sm:$0xff] %v1401
      %v1527 = vld.sshfl [vmem:[#allocation1] sm:$0xff pattern:$0x73625140]
      %v1528 = vld.sshfl [vmem:[#allocation1 + $0x20] sm:$0xff pattern:$0x73625140]
      %1529 = vst [vmem:[#allocation1] ss:$4 sm:$0xff] %v1308
      %1530 = vst [vmem:[%s1413] ss:$4 sm:$0xff] %v1402
      %1531 = vst [vmem:[%s1415] ss:$4 sm:$0xff] %v1403
      %1532 = vst [vmem:[%s1417] ss:$4 sm:$0xff] %v1309
      %1533 = vst [vmem:[%s1419] ss:$4 sm:$0xff] %v1404
      %1534 = vst [vmem:[%s1421] ss:$4 sm:$0xff] %v1405
      %1535 = vst [vmem:[%s1423] ss:$4 sm:$0xff] %v1406
      %1536 = vst [vmem:[%s1425] ss:$4 sm:$0xff] %v1310
      %v1537 = vld.sshfl [vmem:[#allocation1] sm:$0xff pattern:$0x73625140]
      %v1538 = vld.sshfl [vmem:[#allocation1 + $0x20] sm:$0xff pattern:$0x73625140]
      %1539 = vst [vmem:[#allocation1] ss:$4 sm:$0xff] %v1407
      %1540 = vst [vmem:[%s1413] ss:$4 sm:$0xff] %v1408
      %v1541 = vld.sshfl [vmem:[#allocation1] sm:$0xff pattern:$0x73625140]
      %vm1542 = vcmask 588800
      %v1543 = vsel %vm1542, %v1427, 0
      %v1545 = vsel %vm1542, %v1428, 0
      %v1547 = vsel %vm1542, %v1437, 0
      %v1549 = vsel %vm1542, %v1438, 0
      %v1551 = vsel %vm1542, %v1447, 0
      %v1553 = vsel %vm1542, %v1448, 0
      %v1555 = vsel %vm1542, %v1457, 0
      %v1557 = vsel %vm1542, %v1458, 0
      %v1559 = vsel %vm1542, %v1467, 0
      %v1561 = vsel %vm1542, %v1468, 0
      %v1563 = vsel %vm1542, %v1477, 0
      %v1565 = vsel %vm1542, %v1478, 0
      %v1567 = vsel %vm1542, %v1487, 0
      %v1569 = vsel %vm1542, %v1488, 0
      %v1571 = vsel %vm1542, %v1497, 0
      %v1573 = vsel %vm1542, %v1498, 0
      %v1575 = vsel %vm1542, %v1507, 0
      %v1577 = vsel %vm1542, %v1508, 0
      %v1579 = vsel %vm1542, %v1517, 0
      %v1581 = vsel %vm1542, %v1518, 0
      %v1583 = vsel %vm1542, %v1527, 0
      %v1585 = vsel %vm1542, %v1528, 0
      %v1587 = vsel %vm1542, %v1537, 0
      %v1589 = vsel %vm1542, %v1538, 0
      %v1591 = vsel %vm1542, %v1541, 0
      %1593 = vmatpush.msra.mxu0 0.0
      %1594 = vmatpush.msra.mxu0 0.0
      %1595 = vmatpush.msra.mxu0 0.0
      %1596 = vmatpush.msra.mxu0 0.0
      %1597 = vmatpush.msra.mxu0 0.0
      %1598 = vmatpush.msra.mxu0 0.0
      %1599 = vmatpush.msra.mxu0 0.0
      %1600 = vmatpush.msra.mxu0 %v233
      %1601 = vmatpush.msra.mxu0 %v232
      %1602 = vmatpush.msra.mxu0 %v231
      %1603 = vmatpush.msra.mxu0 %v230
      %1604 = vmatpush.msra.mxu0 %v229
      %1605 = vmatpush.msra.mxu0 %v228
      %1606 = vmatpush.msra.mxu0 %v227
      %1607 = vmatpush.msra.mxu0 %v226
      %1608 = vmatpush.msra.mxu0 %v225
      %1609 = vmatmul.f32.gmra.mxu0 %v1543
      %v1610 = vpop.f32.mrf.mxu0
      %v1611 = vadd.f32 %v1410, %v1610
      %1612 = vmatmul.f32.gmra.mxu0 %v1545
      %v1613 = vpop.f32.mrf.mxu0
      %v1614 = vadd.f32 %v1410, %v1613
      %1615 = vmatmul.f32.gmra.mxu0 %v1547
      %v1616 = vpop.f32.mrf.mxu0
      %v1617 = vadd.f32 %v1410, %v1616
      %1618 = vmatmul.f32.gmra.mxu0 %v1549
      %v1619 = vpop.f32.mrf.mxu0
      %v1620 = vadd.f32 %v1410, %v1619
      %1621 = vmatmul.f32.gmra.mxu0 %v1551
      %v1622 = vpop.f32.mrf.mxu0
      %v1623 = vadd.f32 %v1410, %v1622
      %1624 = vmatmul.f32.gmra.mxu0 %v1553
      %v1625 = vpop.f32.mrf.mxu0
      %v1626 = vadd.f32 %v1410, %v1625
      %1627 = vmatmul.f32.gmra.mxu0 %v1555
      %v1628 = vpop.f32.mrf.mxu0
      %v1629 = vadd.f32 %v1410, %v1628
      %1630 = vmatmul.f32.gmra.mxu0 %v1557
      %v1631 = vpop.f32.mrf.mxu0
      %v1632 = vadd.f32 %v1410, %v1631
      %1633 = vmatmul.f32.gmra.mxu0 %v1559
      %v1634 = vpop.f32.mrf.mxu0
      %v1635 = vadd.f32 %v1410, %v1634
      %1636 = vmatmul.f32.gmra.mxu0 %v1561
      %v1637 = vpop.f32.mrf.mxu0
      %v1638 = vadd.f32 %v1410, %v1637
      %1639 = vmatmul.f32.gmra.mxu0 %v1563
      %v1640 = vpop.f32.mrf.mxu0
      %v1641 = vadd.f32 %v1410, %v1640
      %1642 = vmatmul.f32.gmra.mxu0 %v1565
      %v1643 = vpop.f32.mrf.mxu0
      %v1644 = vadd.f32 %v1410, %v1643
      %1645 = vmatmul.f32.gmra.mxu0 %v1567
      %v1646 = vpop.f32.mrf.mxu0
      %v1647 = vadd.f32 %v1410, %v1646
      %1648 = vmatmul.f32.gmra.mxu0 %v1569
      %v1649 = vpop.f32.mrf.mxu0
      %v1650 = vadd.f32 %v1410, %v1649
      %1651 = vmatmul.f32.gmra.mxu0 %v1571
      %v1652 = vpop.f32.mrf.mxu0
      %v1653 = vadd.f32 %v1410, %v1652
      %1654 = vmatmul.f32.gmra.mxu0 %v1573
      %v1655 = vpop.f32.mrf.mxu0
      %v1656 = vadd.f32 %v1410, %v1655
      %1657 = vmatmul.f32.gmra.mxu0 %v1575
      %v1658 = vpop.f32.mrf.mxu0
      %v1659 = vadd.f32 %v1410, %v1658
      %1660 = vmatmul.f32.gmra.mxu0 %v1577
      %v1661 = vpop.f32.mrf.mxu0
      %v1662 = vadd.f32 %v1410, %v1661
      %1663 = vmatmul.f32.gmra.mxu0 %v1579
      %v1664 = vpop.f32.mrf.mxu0
      %v1665 = vadd.f32 %v1410, %v1664
      %1666 = vmatmul.f32.gmra.mxu0 %v1581
      %v1667 = vpop.f32.mrf.mxu0
      %v1668 = vadd.f32 %v1410, %v1667
      %1669 = vmatmul.f32.gmra.mxu0 %v1583
      %v1670 = vpop.f32.mrf.mxu0
      %v1671 = vadd.f32 %v1410, %v1670
      %1672 = vmatmul.f32.gmra.mxu0 %v1585
      %v1673 = vpop.f32.mrf.mxu0
      %v1674 = vadd.f32 %v1410, %v1673
      %1675 = vmatmul.f32.gmra.mxu0 %v1587
      %v1676 = vpop.f32.mrf.mxu0
      %v1677 = vadd.f32 %v1410, %v1676
      %1678 = vmatmul.f32.gmra.mxu0 %v1589
      %v1679 = vpop.f32.mrf.mxu0
      %v1680 = vadd.f32 %v1410, %v1679
      %1681 = vmatmul.f32.gmra.mxu0 %v1591
      %v1682 = vpop.f32.mrf.mxu0
      %v1683 = vadd.f32 %v1410, %v1682
      %1684 = vdwg.mxu0
      %v1685 = vmax.f32 %v1611, 0.0
      %v1686 = vmax.f32 %v1614, 0.0
      %v1687 = vmax.f32 %v1617, 0.0
      %v1688 = vmax.f32 %v1620, 0.0
      %v1689 = vmax.f32 %v1623, 0.0
      %v1690 = vmax.f32 %v1626, 0.0
      %v1691 = vmax.f32 %v1629, 0.0
      %v1692 = vmax.f32 %v1632, 0.0
      %v1693 = vmax.f32 %v1635, 0.0
      %v1694 = vmax.f32 %v1638, 0.0
      %v1695 = vmax.f32 %v1641, 0.0
      %v1696 = vmax.f32 %v1644, 0.0
      %v1697 = vmax.f32 %v1647, 0.0
      %v1698 = vmax.f32 %v1650, 0.0
      %v1699 = vmax.f32 %v1653, 0.0
      %v1700 = vmax.f32 %v1656, 0.0
      %v1701 = vmax.f32 %v1659, 0.0
      %v1702 = vmax.f32 %v1662, 0.0
      %v1703 = vmax.f32 %v1665, 0.0
      %v1704 = vmax.f32 %v1668, 0.0
      %v1705 = vmax.f32 %v1671, 0.0
      %v1706 = vmax.f32 %v1674, 0.0
      %v1707 = vmax.f32 %v1677, 0.0
      %v1708 = vmax.f32 %v1680, 0.0
      %v1709 = vmax.f32 %v1683, 0.0
      %v1735 = vrot.slane %v1685, 2
      %v1736 = vrot.slane %v1685, 4
      %v1737 = vrot.slane %v1685, 6
      %v1738 = vrot.slane %v1686, 2
      %v1739 = vrot.slane %v1686, 4
      %v1740 = vrot.slane %v1686, 6
      %v1741 = vrot.slane %v1687, 2
      %v1742 = vrot.slane %v1687, 4
      %v1743 = vrot.slane %v1687, 6
      %v1744 = vrot.slane %v1688, 2
      %v1745 = vrot.slane %v1688, 4
      %v1746 = vrot.slane %v1688, 6
      %v1747 = vrot.slane %v1689, 2
      %v1748 = vrot.slane %v1689, 4
      %v1749 = vrot.slane %v1689, 6
      %v1750 = vrot.slane %v1690, 2
      %v1751 = vrot.slane %v1690, 4
      %v1752 = vrot.slane %v1690, 6
      %v1753 = vrot.slane %v1691, 2
      %v1754 = vrot.slane %v1691, 4
      %v1755 = vrot.slane %v1691, 6
      %v1756 = vrot.slane %v1692, 2
      %v1757 = vrot.slane %v1692, 4
      %v1758 = vrot.slane %v1692, 6
      %v1759 = vrot.slane %v1693, 2
      %v1760 = vrot.slane %v1693, 4
      %v1761 = vrot.slane %v1693, 6
      %v1762 = vrot.slane %v1694, 2
      %v1763 = vrot.slane %v1694, 4
      %v1764 = vrot.slane %v1694, 6
      %v1765 = vrot.slane %v1695, 2
      %v1766 = vrot.slane %v1695, 4
      %v1767 = vrot.slane %v1695, 6
      %v1768 = vrot.slane %v1696, 2
      %v1769 = vrot.slane %v1696, 4
      %v1770 = vrot.slane %v1696, 6
      %v1771 = vrot.slane %v1697, 2
      %v1772 = vrot.slane %v1697, 4
      %v1773 = vrot.slane %v1697, 6
      %v1774 = vrot.slane %v1698, 2
      %v1775 = vrot.slane %v1698, 4
      %v1776 = vrot.slane %v1698, 6
      %v1777 = vrot.slane %v1699, 2
      %v1778 = vrot.slane %v1699, 4
      %v1779 = vrot.slane %v1699, 6
      %v1780 = vrot.slane %v1700, 2
      %v1781 = vrot.slane %v1700, 4
      %v1782 = vrot.slane %v1700, 6
      %v1783 = vrot.slane %v1701, 2
      %v1784 = vrot.slane %v1701, 4
      %v1785 = vrot.slane %v1701, 6
      %v1786 = vrot.slane %v1702, 2
      %v1787 = vrot.slane %v1702, 4
      %v1788 = vrot.slane %v1702, 6
      %v1789 = vrot.slane %v1703, 2
      %v1790 = vrot.slane %v1703, 4
      %v1791 = vrot.slane %v1703, 6
      %v1792 = vrot.slane %v1704, 2
      %v1793 = vrot.slane %v1704, 4
      %v1794 = vrot.slane %v1704, 6
      %v1795 = vrot.slane %v1705, 2
      %v1796 = vrot.slane %v1705, 4
      %v1797 = vrot.slane %v1705, 6
      %v1798 = vrot.slane %v1706, 2
      %v1799 = vrot.slane %v1706, 4
      %v1800 = vrot.slane %v1706, 6
      %v1801 = vrot.slane %v1707, 2
      %v1802 = vrot.slane %v1707, 4
      %v1803 = vrot.slane %v1707, 6
      %v1804 = vrot.slane %v1708, 2
      %v1805 = vrot.slane %v1708, 4
      %v1806 = vrot.slane %v1708, 6
      %v1807 = vrot.slane %v1709, 2
      %1808 = vst [vmem:[#allocation1] ss:$4 sm:$0xff] %v1685
      %s1809 = scalar_lea.vmem [#allocation1], 1
      %1810 = vst [vmem:[%s1809] ss:$4 sm:$0xff] %v1735
      %s1811 = scalar_lea.vmem [#allocation1], 2
      %1812 = vst [vmem:[%s1811] ss:$4 sm:$0xff] %v1736
      %s1813 = scalar_lea.vmem [#allocation1], 3
      %1814 = vst [vmem:[%s1813] ss:$4 sm:$0xff] %v1737
      %s1815 = scalar_lea.vmem [#allocation1], 32
      %1816 = vst [vmem:[%s1815] ss:$4 sm:$0xff] %v1686
      %s1817 = scalar_lea.vmem [#allocation1], 33
      %1818 = vst [vmem:[%s1817] ss:$4 sm:$0xff] %v1738
      %s1819 = scalar_lea.vmem [#allocation1], 34
      %1820 = vst [vmem:[%s1819] ss:$4 sm:$0xff] %v1739
      %v1821 = vld.sshfl [vmem:[#allocation1] sm:$0xff pattern:$0x73625140]
      %v1822 = vld.sshfl [vmem:[#allocation1 + $0x20] sm:$0xff pattern:$0x73625140]
      %1823 = vst [vmem:[#allocation1] ss:$4 sm:$0xff] %v1740
      %1824 = vst [vmem:[%s1809] ss:$4 sm:$0xff] %v1687
      %1825 = vst [vmem:[%s1811] ss:$4 sm:$0xff] %v1741
      %1826 = vst [vmem:[%s1813] ss:$4 sm:$0xff] %v1742
      %1827 = vst [vmem:[%s1815] ss:$4 sm:$0xff] %v1743
      %1828 = vst [vmem:[%s1817] ss:$4 sm:$0xff] %v1688
      %1829 = vst [vmem:[%s1819] ss:$4 sm:$0xff] %v1744
      %v1830 = vld.sshfl [vmem:[#allocation1] sm:$0xff pattern:$0x73625140]
      %v1831 = vld.sshfl [vmem:[#allocation1 + $0x20] sm:$0xff pattern:$0x73625140]
      %1832 = vst [vmem:[#allocation1] ss:$4 sm:$0xff] %v1745
      %1833 = vst [vmem:[%s1809] ss:$4 sm:$0xff] %v1746
      %1834 = vst [vmem:[%s1811] ss:$4 sm:$0xff] %v1689
      %1835 = vst [vmem:[%s1813] ss:$4 sm:$0xff] %v1747
      %1836 = vst [vmem:[%s1815] ss:$4 sm:$0xff] %v1748
      %1837 = vst [vmem:[%s1817] ss:$4 sm:$0xff] %v1749
      %1838 = vst [vmem:[%s1819] ss:$4 sm:$0xff] %v1690
      %v1839 = vld.sshfl [vmem:[#allocation1] sm:$0xff pattern:$0x73625140]
      %v1840 = vld.sshfl [vmem:[#allocation1 + $0x20] sm:$0xff pattern:$0x73625140]
      %1841 = vst [vmem:[#allocation1] ss:$4 sm:$0xff] %v1750
      %1842 = vst [vmem:[%s1809] ss:$4 sm:$0xff] %v1751
      %1843 = vst [vmem:[%s1811] ss:$4 sm:$0xff] %v1752
      %1844 = vst [vmem:[%s1813] ss:$4 sm:$0xff] %v1691
      %1845 = vst [vmem:[%s1815] ss:$4 sm:$0xff] %v1753
      %1846 = vst [vmem:[%s1817] ss:$4 sm:$0xff] %v1754
      %1847 = vst [vmem:[%s1819] ss:$4 sm:$0xff] %v1755
      %v1848 = vld.sshfl [vmem:[#allocation1] sm:$0xff pattern:$0x73625140]
      %v1849 = vld.sshfl [vmem:[#allocation1 + $0x20] sm:$0xff pattern:$0x73625140]
      %1850 = vst [vmem:[#allocation1] ss:$4 sm:$0xff] %v1692
      %1851 = vst [vmem:[%s1809] ss:$4 sm:$0xff] %v1756
      %1852 = vst [vmem:[%s1811] ss:$4 sm:$0xff] %v1757
      %1853 = vst [vmem:[%s1813] ss:$4 sm:$0xff] %v1758
      %1854 = vst [vmem:[%s1815] ss:$4 sm:$0xff] %v1693
      %1855 = vst [vmem:[%s1817] ss:$4 sm:$0xff] %v1759
      %1856 = vst [vmem:[%s1819] ss:$4 sm:$0xff] %v1760
      %v1857 = vld.sshfl [vmem:[#allocation1] sm:$0xff pattern:$0x73625140]
      %v1858 = vld.sshfl [vmem:[#allocation1 + $0x20] sm:$0xff pattern:$0x73625140]
      %1859 = vst [vmem:[#allocation1] ss:$4 sm:$0xff] %v1761
      %1860 = vst [vmem:[%s1809] ss:$4 sm:$0xff] %v1694
      %1861 = vst [vmem:[%s1811] ss:$4 sm:$0xff] %v1762
      %1862 = vst [vmem:[%s1813] ss:$4 sm:$0xff] %v1763
      %1863 = vst [vmem:[%s1815] ss:$4 sm:$0xff] %v1764
      %1864 = vst [vmem:[%s1817] ss:$4 sm:$0xff] %v1695
      %1865 = vst [vmem:[%s1819] ss:$4 sm:$0xff] %v1765
      %v1866 = vld.sshfl [vmem:[#allocation1] sm:$0xff pattern:$0x73625140]
      %v1867 = vld.sshfl [vmem:[#allocation1 + $0x20] sm:$0xff pattern:$0x73625140]
      %1868 = vst [vmem:[#allocation1] ss:$4 sm:$0xff] %v1766
      %1869 = vst [vmem:[%s1809] ss:$4 sm:$0xff] %v1767
      %1870 = vst [vmem:[%s1811] ss:$4 sm:$0xff] %v1696
      %1871 = vst [vmem:[%s1813] ss:$4 sm:$0xff] %v1768
      %1872 = vst [vmem:[%s1815] ss:$4 sm:$0xff] %v1769
      %1873 = vst [vmem:[%s1817] ss:$4 sm:$0xff] %v1770
      %1874 = vst [vmem:[%s1819] ss:$4 sm:$0xff] %v1697
      %v1875 = vld.sshfl [vmem:[#allocation1] sm:$0xff pattern:$0x73625140]
      %v1876 = vld.sshfl [vmem:[#allocation1 + $0x20] sm:$0xff pattern:$0x73625140]
      %1877 = vst [vmem:[#allocation1] ss:$4 sm:$0xff] %v1771
      %1878 = vst [vmem:[%s1809] ss:$4 sm:$0xff] %v1772
      %1879 = vst [vmem:[%s1811] ss:$4 sm:$0xff] %v1773
      %1880 = vst [vmem:[%s1813] ss:$4 sm:$0xff] %v1698
      %1881 = vst [vmem:[%s1815] ss:$4 sm:$0xff] %v1774
      %1882 = vst [vmem:[%s1817] ss:$4 sm:$0xff] %v1775
      %1883 = vst [vmem:[%s1819] ss:$4 sm:$0xff] %v1776
      %v1884 = vld.sshfl [vmem:[#allocation1] sm:$0xff pattern:$0x73625140]
      %v1885 = vld.sshfl [vmem:[#allocation1 + $0x20] sm:$0xff pattern:$0x73625140]
      %1886 = vst [vmem:[#allocation1] ss:$4 sm:$0xff] %v1699
      %1887 = vst [vmem:[%s1809] ss:$4 sm:$0xff] %v1777
      %1888 = vst [vmem:[%s1811] ss:$4 sm:$0xff] %v1778
      %1889 = vst [vmem:[%s1813] ss:$4 sm:$0xff] %v1779
      %1890 = vst [vmem:[%s1815] ss:$4 sm:$0xff] %v1700
      %1891 = vst [vmem:[%s1817] ss:$4 sm:$0xff] %v1780
      %1892 = vst [vmem:[%s1819] ss:$4 sm:$0xff] %v1781
      %v1893 = vld.sshfl [vmem:[#allocation1] sm:$0xff pattern:$0x73625140]
      %v1894 = vld.sshfl [vmem:[#allocation1 + $0x20] sm:$0xff pattern:$0x73625140]
      %1895 = vst [vmem:[#allocation1] ss:$4 sm:$0xff] %v1782
      %1896 = vst [vmem:[%s1809] ss:$4 sm:$0xff] %v1701
      %1897 = vst [vmem:[%s1811] ss:$4 sm:$0xff] %v1783
      %1898 = vst [vmem:[%s1813] ss:$4 sm:$0xff] %v1784
      %1899 = vst [vmem:[%s1815] ss:$4 sm:$0xff] %v1785
      %1900 = vst [vmem:[%s1817] ss:$4 sm:$0xff] %v1702
      %1901 = vst [vmem:[%s1819] ss:$4 sm:$0xff] %v1786
      %v1902 = vld.sshfl [vmem:[#allocation1] sm:$0xff pattern:$0x73625140]
      %v1903 = vld.sshfl [vmem:[#allocation1 + $0x20] sm:$0xff pattern:$0x73625140]
      %1904 = vst [vmem:[#allocation1] ss:$4 sm:$0xff] %v1787
      %1905 = vst [vmem:[%s1809] ss:$4 sm:$0xff] %v1788
      %1906 = vst [vmem:[%s1811] ss:$4 sm:$0xff] %v1703
      %1907 = vst [vmem:[%s1813] ss:$4 sm:$0xff] %v1789
      %1908 = vst [vmem:[%s1815] ss:$4 sm:$0xff] %v1790
      %1909 = vst [vmem:[%s1817] ss:$4 sm:$0xff] %v1791
      %1910 = vst [vmem:[%s1819] ss:$4 sm:$0xff] %v1704
      %v1911 = vld.sshfl [vmem:[#allocation1] sm:$0xff pattern:$0x73625140]
      %v1912 = vld.sshfl [vmem:[#allocation1 + $0x20] sm:$0xff pattern:$0x73625140]
      %1913 = vst [vmem:[#allocation1] ss:$4 sm:$0xff] %v1792
      %1914 = vst [vmem:[%s1809] ss:$4 sm:$0xff] %v1793
      %1915 = vst [vmem:[%s1811] ss:$4 sm:$0xff] %v1794
      %1916 = vst [vmem:[%s1813] ss:$4 sm:$0xff] %v1705
      %1917 = vst [vmem:[%s1815] ss:$4 sm:$0xff] %v1795
      %1918 = vst [vmem:[%s1817] ss:$4 sm:$0xff] %v1796
      %1919 = vst [vmem:[%s1819] ss:$4 sm:$0xff] %v1797
      %v1920 = vld.sshfl [vmem:[#allocation1] sm:$0xff pattern:$0x73625140]
      %v1921 = vld.sshfl [vmem:[#allocation1 + $0x20] sm:$0xff pattern:$0x73625140]
      %1922 = vst [vmem:[#allocation1] ss:$4 sm:$0xff] %v1706
      %1923 = vst [vmem:[%s1809] ss:$4 sm:$0xff] %v1798
      %1924 = vst [vmem:[%s1811] ss:$4 sm:$0xff] %v1799
      %1925 = vst [vmem:[%s1813] ss:$4 sm:$0xff] %v1800
      %1926 = vst [vmem:[%s1815] ss:$4 sm:$0xff] %v1707
      %1927 = vst [vmem:[%s1817] ss:$4 sm:$0xff] %v1801
      %1928 = vst [vmem:[%s1819] ss:$4 sm:$0xff] %v1802
      %v1929 = vld.sshfl [vmem:[#allocation1] sm:$0xff pattern:$0x73625140]
      %v1930 = vld.sshfl [vmem:[#allocation1 + $0x20] sm:$0xff pattern:$0x73625140]
      %1931 = vst [vmem:[#allocation1] ss:$4 sm:$0xff] %v1803
      %1932 = vst [vmem:[%s1809] ss:$4 sm:$0xff] %v1708
      %1933 = vst [vmem:[%s1811] ss:$4 sm:$0xff] %v1804
      %1934 = vst [vmem:[%s1813] ss:$4 sm:$0xff] %v1805
      %1935 = vst [vmem:[%s1815] ss:$4 sm:$0xff] %v1806
      %1936 = vst [vmem:[%s1817] ss:$4 sm:$0xff] %v1709
      %1937 = vst [vmem:[%s1819] ss:$4 sm:$0xff] %v1807
      %v1938 = vld.sshfl [vmem:[#allocation1] sm:$0xff pattern:$0x73625140]
      %v1939 = vld.sshfl [vmem:[#allocation1 + $0x20] sm:$0xff pattern:$0x73625140]
      %1968 = vst.msk [vmem:[#allocation2] sm:$0xff] %vm1079, %v1821
      %vm1969 = vcmask 62464
      %1970 = vst.msk [vmem:[#allocation2 + $0x8] sm:$0x3f] %vm1969, %v1822
      %1971 = vst.msk [vmem:[#allocation2 + $0x10] sm:$0xff] %vm1079, %v1830
      %1972 = vst.msk [vmem:[#allocation2 + $0x18] sm:$0x3f] %vm1969, %v1831
      %1973 = vst.msk [vmem:[#allocation2 + $0x20] sm:$0xff] %vm1079, %v1839
      %1974 = vst.msk [vmem:[#allocation2 + $0x28] sm:$0x3f] %vm1969, %v1840
      %1975 = vst.msk [vmem:[#allocation2 + $0x30] sm:$0xff] %vm1079, %v1848
      %1976 = vst.msk [vmem:[#allocation2 + $0x38] sm:$0x3f] %vm1969, %v1849
      %1977 = vst.msk [vmem:[#allocation2 + $0x40] sm:$0xff] %vm1079, %v1857
      %1978 = vst.msk [vmem:[#allocation2 + $0x48] sm:$0x3f] %vm1969, %v1858
      %1979 = vst.msk [vmem:[#allocation2 + $0x50] sm:$0xff] %vm1079, %v1866
      %1980 = vst.msk [vmem:[#allocation2 + $0x58] sm:$0x3f] %vm1969, %v1867
      %1981 = vst.msk [vmem:[#allocation2 + $0x60] sm:$0xff] %vm1079, %v1875
      %1982 = vst.msk [vmem:[#allocation2 + $0x68] sm:$0x3f] %vm1969, %v1876
      %1983 = vst.msk [vmem:[#allocation2 + $0x70] sm:$0xff] %vm1079, %v1884
      %1984 = vst.msk [vmem:[#allocation2 + $0x78] sm:$0x3f] %vm1969, %v1885
      %1985 = vst.msk [vmem:[#allocation2 + $0x80] sm:$0xff] %vm1079, %v1893
      %1986 = vst.msk [vmem:[#allocation2 + $0x88] sm:$0x3f] %vm1969, %v1894
      %1987 = vst.msk [vmem:[#allocation2 + $0x90] sm:$0xff] %vm1079, %v1902
      %1988 = vst.msk [vmem:[#allocation2 + $0x98] sm:$0x3f] %vm1969, %v1903
      %1989 = vst.msk [vmem:[#allocation2 + $0xa0] sm:$0xff] %vm1079, %v1911
      %1990 = vst.msk [vmem:[#allocation2 + $0xa8] sm:$0x3f] %vm1969, %v1912
      %1991 = vst.msk [vmem:[#allocation2 + $0xb0] sm:$0xff] %vm1079, %v1920
      %1992 = vst.msk [vmem:[#allocation2 + $0xb8] sm:$0x3f] %vm1969, %v1921
      %1993 = vst.msk [vmem:[#allocation2 + $0xc0] sm:$0xff] %vm1079, %v1929
      %1994 = vst.msk [vmem:[#allocation2 + $0xc8] sm:$0x3f] %vm1969, %v1930
      %1995 = vst.msk [vmem:[#allocation2 + $0xd0] sm:$0xff] %vm1079, %v1938
      %1996 = vst.msk [vmem:[#allocation2 + $0xd8] sm:$0x3f] %vm1969, %v1939
      %v1997 = vld [vmem:[#allocation2] sm:$0xff]
      %v1998 = vld [vmem:[#allocation2 + $0x8] sm:$0x3f]
      %v1999 = vld [vmem:[#allocation2 + $0x10] sm:$0xff]
      %v2000 = vld [vmem:[#allocation2 + $0x18] sm:$0x3f]
      %v2001 = vld [vmem:[#allocation2 + $0x20] sm:$0xff]
      %v2002 = vld [vmem:[#allocation2 + $0x28] sm:$0x3f]
      %v2003 = vld [vmem:[#allocation2 + $0x30] sm:$0xff]
      %v2004 = vld [vmem:[#allocation2 + $0x38] sm:$0x3f]
      %v2005 = vld [vmem:[#allocation2 + $0x40] sm:$0xff]
      %v2006 = vld [vmem:[#allocation2 + $0x48] sm:$0x3f]
      %v2007 = vld [vmem:[#allocation2 + $0x50] sm:$0xff]
      %v2008 = vld [vmem:[#allocation2 + $0x58] sm:$0x3f]
      %v2009 = vld [vmem:[#allocation2 + $0x60] sm:$0xff]
      %v2010 = vld [vmem:[#allocation2 + $0x68] sm:$0x3f]
      %v2011 = vld [vmem:[#allocation2 + $0x70] sm:$0xff]
      %v2012 = vld [vmem:[#allocation2 + $0x78] sm:$0x3f]
      %v2013 = vld [vmem:[#allocation2 + $0x80] sm:$0xff]
      %v2014 = vld [vmem:[#allocation2 + $0x88] sm:$0x3f]
      %v2015 = vld [vmem:[#allocation2 + $0x90] sm:$0xff]
      %v2016 = vld [vmem:[#allocation2 + $0x98] sm:$0x3f]
      %v2017 = vld [vmem:[#allocation2 + $0xa0] sm:$0xff]
      %v2018 = vld [vmem:[#allocation2 + $0xa8] sm:$0x3f]
      %v2019 = vld [vmem:[#allocation2 + $0xb0] sm:$0xff]
      %v2020 = vld [vmem:[#allocation2 + $0xb8] sm:$0x3f]
      %v2021 = vld [vmem:[#allocation2 + $0xc0] sm:$0xff]
      %v2022 = vld [vmem:[#allocation2 + $0xc8] sm:$0x3f]
      %v2023 = vld [vmem:[#allocation2 + $0xd0] sm:$0xff]
      %v2024 = vld [vmem:[#allocation2 + $0xd8] sm:$0x3f]
      %v2049 = vrot.slane %v1997, 1
      %v2050 = vrot.slane %v1998, 1
      %v2051 = vsel %vm305, %v2049, %v2050
      %v2052 = vrot.slane %v1999, 1
      %v2053 = vrot.slane %v2000, 1
      %v2054 = vsel %vm305, %v2052, %v2053
      %v2055 = vrot.slane %v2001, 1
      %v2056 = vrot.slane %v2002, 1
      %v2057 = vsel %vm305, %v2055, %v2056
      %v2058 = vrot.slane %v2003, 1
      %v2059 = vrot.slane %v2004, 1
      %v2060 = vsel %vm305, %v2058, %v2059
      %v2061 = vrot.slane %v2005, 1
      %v2062 = vrot.slane %v2006, 1
      %v2063 = vsel %vm305, %v2061, %v2062
      %v2064 = vrot.slane %v2007, 1
      %v2065 = vrot.slane %v2008, 1
      %v2066 = vsel %vm305, %v2064, %v2065
      %v2067 = vrot.slane %v2009, 1
      %v2068 = vrot.slane %v2010, 1
      %v2069 = vsel %vm305, %v2067, %v2068
      %v2070 = vrot.slane %v2011, 1
      %v2071 = vrot.slane %v2012, 1
      %v2072 = vsel %vm305, %v2070, %v2071
      %v2073 = vrot.slane %v2013, 1
      %v2074 = vrot.slane %v2014, 1
      %v2075 = vsel %vm305, %v2073, %v2074
      %v2076 = vrot.slane %v2015, 1
      %v2077 = vrot.slane %v2016, 1
      %v2078 = vsel %vm305, %v2076, %v2077
      %v2079 = vrot.slane %v2017, 1
      %v2080 = vrot.slane %v2018, 1
      %v2081 = vsel %vm305, %v2079, %v2080
      %v2082 = vrot.slane %v2019, 1
      %v2083 = vrot.slane %v2020, 1
      %v2084 = vsel %vm305, %v2082, %v2083
      %2085 = vrot.lane.b32.xlu0 %v2051, 8
      %v2086 = vpop.permute.xlu0 %2085
      %2087 = vrot.lane.b32.xlu0 %v2050, 8
      %v2088 = vpop.permute.xlu0 %2087
      %2089 = vrot.lane.b32.xlu0 %v2054, 8
      %v2090 = vpop.permute.xlu0 %2089
      %2091 = vrot.lane.b32.xlu0 %v2053, 8
      %v2092 = vpop.permute.xlu0 %2091
      %2093 = vrot.lane.b32.xlu0 %v2057, 8
      %v2094 = vpop.permute.xlu0 %2093
      %2095 = vrot.lane.b32.xlu0 %v2056, 8
      %v2096 = vpop.permute.xlu0 %2095
      %2097 = vrot.lane.b32.xlu0 %v2060, 8
      %v2098 = vpop.permute.xlu0 %2097
      %2099 = vrot.lane.b32.xlu0 %v2059, 8
      %v2100 = vpop.permute.xlu0 %2099
      %2101 = vrot.lane.b32.xlu0 %v2063, 8
      %v2102 = vpop.permute.xlu0 %2101
      %2103 = vrot.lane.b32.xlu0 %v2062, 8
      %v2104 = vpop.permute.xlu0 %2103
      %2105 = vrot.lane.b32.xlu0 %v2066, 8
      %v2106 = vpop.permute.xlu0 %2105
      %2107 = vrot.lane.b32.xlu0 %v2065, 8
      %v2108 = vpop.permute.xlu0 %2107
      %2109 = vrot.lane.b32.xlu0 %v2069, 8
      %v2110 = vpop.permute.xlu0 %2109
      %2111 = vrot.lane.b32.xlu0 %v2068, 8
      %v2112 = vpop.permute.xlu0 %2111
      %2113 = vrot.lane.b32.xlu0 %v2072, 8
      %v2114 = vpop.permute.xlu0 %2113
      %2115 = vrot.lane.b32.xlu0 %v2071, 8
      %v2116 = vpop.permute.xlu0 %2115
      %2117 = vrot.lane.b32.xlu0 %v2075, 8
      %v2118 = vpop.permute.xlu0 %2117
      %2119 = vrot.lane.b32.xlu0 %v2074, 8
      %v2120 = vpop.permute.xlu0 %2119
      %2121 = vrot.lane.b32.xlu0 %v2078, 8
      %v2122 = vpop.permute.xlu0 %2121
      %2123 = vrot.lane.b32.xlu0 %v2077, 8
      %v2124 = vpop.permute.xlu0 %2123
      %2125 = vrot.lane.b32.xlu0 %v2081, 8
      %v2126 = vpop.permute.xlu0 %2125
      %2127 = vrot.lane.b32.xlu0 %v2080, 8
      %v2128 = vpop.permute.xlu0 %2127
      %2129 = vrot.lane.b32.xlu0 %v2084, 8
      %v2130 = vpop.permute.xlu0 %2129
      %2131 = vrot.lane.b32.xlu0 %v2083, 8
      %v2132 = vpop.permute.xlu0 %2131
      %v2157 = vrot.slane %v1997, 2
      %v2158 = vrot.slane %v1998, 2
      %v2159 = vsel %vm432, %v2157, %v2158
      %v2160 = vrot.slane %v1999, 2
      %v2161 = vrot.slane %v2000, 2
      %v2162 = vsel %vm432, %v2160, %v2161
      %v2163 = vrot.slane %v2001, 2
      %v2164 = vrot.slane %v2002, 2
      %v2165 = vsel %vm432, %v2163, %v2164
      %v2166 = vrot.slane %v2003, 2
      %v2167 = vrot.slane %v2004, 2
      %v2168 = vsel %vm432, %v2166, %v2167
      %v2169 = vrot.slane %v2005, 2
      %v2170 = vrot.slane %v2006, 2
      %v2171 = vsel %vm432, %v2169, %v2170
      %v2172 = vrot.slane %v2007, 2
      %v2173 = vrot.slane %v2008, 2
      %v2174 = vsel %vm432, %v2172, %v2173
      %v2175 = vrot.slane %v2009, 2
      %v2176 = vrot.slane %v2010, 2
      %v2177 = vsel %vm432, %v2175, %v2176
      %v2178 = vrot.slane %v2011, 2
      %v2179 = vrot.slane %v2012, 2
      %v2180 = vsel %vm432, %v2178, %v2179
      %v2181 = vrot.slane %v2013, 2
      %v2182 = vrot.slane %v2014, 2
      %v2183 = vsel %vm432, %v2181, %v2182
      %v2184 = vrot.slane %v2015, 2
      %v2185 = vrot.slane %v2016, 2
      %v2186 = vsel %vm432, %v2184, %v2185
      %v2187 = vrot.slane %v2017, 2
      %v2188 = vrot.slane %v2018, 2
      %v2189 = vsel %vm432, %v2187, %v2188
      %v2190 = vrot.slane %v2019, 2
      %v2191 = vrot.slane %v2020, 2
      %v2192 = vsel %vm432, %v2190, %v2191
      %2193 = vrot.lane.b32.xlu0 %v2159, 16
      %v2194 = vpop.permute.xlu0 %2193
      %2195 = vrot.lane.b32.xlu0 %v2158, 16
      %v2196 = vpop.permute.xlu0 %2195
      %2197 = vrot.lane.b32.xlu0 %v2162, 16
      %v2198 = vpop.permute.xlu0 %2197
      %2199 = vrot.lane.b32.xlu0 %v2161, 16
      %v2200 = vpop.permute.xlu0 %2199
      %2201 = vrot.lane.b32.xlu0 %v2165, 16
      %v2202 = vpop.permute.xlu0 %2201
      %2203 = vrot.lane.b32.xlu0 %v2164, 16
      %v2204 = vpop.permute.xlu0 %2203
      %2205 = vrot.lane.b32.xlu0 %v2168, 16
      %v2206 = vpop.permute.xlu0 %2205
      %2207 = vrot.lane.b32.xlu0 %v2167, 16
      %v2208 = vpop.permute.xlu0 %2207
      %2209 = vrot.lane.b32.xlu0 %v2171, 16
      %v2210 = vpop.permute.xlu0 %2209
      %2211 = vrot.lane.b32.xlu0 %v2170, 16
      %v2212 = vpop.permute.xlu0 %2211
      %2213 = vrot.lane.b32.xlu0 %v2174, 16
      %v2214 = vpop.permute.xlu0 %2213
      %2215 = vrot.lane.b32.xlu0 %v2173, 16
      %v2216 = vpop.permute.xlu0 %2215
      %2217 = vrot.lane.b32.xlu0 %v2177, 16
      %v2218 = vpop.permute.xlu0 %2217
      %2219 = vrot.lane.b32.xlu0 %v2176, 16
      %v2220 = vpop.permute.xlu0 %2219
      %2221 = vrot.lane.b32.xlu0 %v2180, 16
      %v2222 = vpop.permute.xlu0 %2221
      %2223 = vrot.lane.b32.xlu0 %v2179, 16
      %v2224 = vpop.permute.xlu0 %2223
      %2225 = vrot.lane.b32.xlu0 %v2183, 16
      %v2226 = vpop.permute.xlu0 %2225
      %2227 = vrot.lane.b32.xlu0 %v2182, 16
      %v2228 = vpop.permute.xlu0 %2227
      %2229 = vrot.lane.b32.xlu0 %v2186, 16
      %v2230 = vpop.permute.xlu0 %2229
      %2231 = vrot.lane.b32.xlu0 %v2185, 16
      %v2232 = vpop.permute.xlu0 %2231
      %2233 = vrot.lane.b32.xlu0 %v2189, 16
      %v2234 = vpop.permute.xlu0 %2233
      %2235 = vrot.lane.b32.xlu0 %v2188, 16
      %v2236 = vpop.permute.xlu0 %2235
      %2237 = vrot.lane.b32.xlu0 %v2192, 16
      %v2238 = vpop.permute.xlu0 %2237
      %2239 = vrot.lane.b32.xlu0 %v2191, 16
      %v2240 = vpop.permute.xlu0 %2239
      %2267 = vrot.lane.b32.xlu0 %v1999, 24
      %v2268 = vpop.permute.xlu0 %2267
      %2269 = vrot.lane.b32.xlu0 %v2000, 24
      %v2270 = vpop.permute.xlu0 %2269
      %2271 = vrot.lane.b32.xlu0 %v2001, 24
      %v2272 = vpop.permute.xlu0 %2271
      %2273 = vrot.lane.b32.xlu0 %v2002, 24
      %v2274 = vpop.permute.xlu0 %2273
      %2275 = vrot.lane.b32.xlu0 %v2003, 24
      %v2276 = vpop.permute.xlu0 %2275
      %2277 = vrot.lane.b32.xlu0 %v2004, 24
      %v2278 = vpop.permute.xlu0 %2277
      %2279 = vrot.lane.b32.xlu0 %v2005, 24
      %v2280 = vpop.permute.xlu0 %2279
      %2281 = vrot.lane.b32.xlu0 %v2006, 24
      %v2282 = vpop.permute.xlu0 %2281
      %2283 = vrot.lane.b32.xlu0 %v2007, 24
      %v2284 = vpop.permute.xlu0 %2283
      %2285 = vrot.lane.b32.xlu0 %v2008, 24
      %v2286 = vpop.permute.xlu0 %2285
      %2287 = vrot.lane.b32.xlu0 %v2009, 24
      %v2288 = vpop.permute.xlu0 %2287
      %2289 = vrot.lane.b32.xlu0 %v2010, 24
      %v2290 = vpop.permute.xlu0 %2289
      %2291 = vrot.lane.b32.xlu0 %v2011, 24
      %v2292 = vpop.permute.xlu0 %2291
      %2293 = vrot.lane.b32.xlu0 %v2012, 24
      %v2294 = vpop.permute.xlu0 %2293
      %2295 = vrot.lane.b32.xlu0 %v2013, 24
      %v2296 = vpop.permute.xlu0 %2295
      %2297 = vrot.lane.b32.xlu0 %v2014, 24
      %v2298 = vpop.permute.xlu0 %2297
      %2299 = vrot.lane.b32.xlu0 %v2015, 24
      %v2300 = vpop.permute.xlu0 %2299
      %2301 = vrot.lane.b32.xlu0 %v2016, 24
      %v2302 = vpop.permute.xlu0 %2301
      %2303 = vrot.lane.b32.xlu0 %v2017, 24
      %v2304 = vpop.permute.xlu0 %2303
      %2305 = vrot.lane.b32.xlu0 %v2018, 24
      %v2306 = vpop.permute.xlu0 %2305
      %2307 = vrot.lane.b32.xlu0 %v2019, 24
      %v2308 = vpop.permute.xlu0 %2307
      %2309 = vrot.lane.b32.xlu0 %v2020, 24
      %v2310 = vpop.permute.xlu0 %2309
      %2311 = vrot.lane.b32.xlu0 %v2021, 24
      %v2312 = vpop.permute.xlu0 %2311
      %2313 = vrot.lane.b32.xlu0 %v2022, 24
      %v2314 = vpop.permute.xlu0 %2313
      %v2339 = vrot.slane %v2021, 1
      %v2340 = vrot.slane %v2022, 1
      %v2341 = vsel %vm305, %v2339, %v2340
      %2342 = vrot.lane.b32.xlu0 %v2054, 32
      %v2343 = vpop.permute.xlu0 %2342
      %2344 = vrot.lane.b32.xlu0 %v2053, 32
      %v2345 = vpop.permute.xlu0 %2344
      %2346 = vrot.lane.b32.xlu0 %v2057, 32
      %v2347 = vpop.permute.xlu0 %2346
      %2348 = vrot.lane.b32.xlu0 %v2056, 32
      %v2349 = vpop.permute.xlu0 %2348
      %2350 = vrot.lane.b32.xlu0 %v2060, 32
      %v2351 = vpop.permute.xlu0 %2350
      %2352 = vrot.lane.b32.xlu0 %v2059, 32
      %v2353 = vpop.permute.xlu0 %2352
      %2354 = vrot.lane.b32.xlu0 %v2063, 32
      %v2355 = vpop.permute.xlu0 %2354
      %2356 = vrot.lane.b32.xlu0 %v2062, 32
      %v2357 = vpop.permute.xlu0 %2356
      %2358 = vrot.lane.b32.xlu0 %v2066, 32
      %v2359 = vpop.permute.xlu0 %2358
      %2360 = vrot.lane.b32.xlu0 %v2065, 32
      %v2361 = vpop.permute.xlu0 %2360
      %2362 = vrot.lane.b32.xlu0 %v2069, 32
      %v2363 = vpop.permute.xlu0 %2362
      %2364 = vrot.lane.b32.xlu0 %v2068, 32
      %v2365 = vpop.permute.xlu0 %2364
      %2366 = vrot.lane.b32.xlu0 %v2072, 32
      %v2367 = vpop.permute.xlu0 %2366
      %2368 = vrot.lane.b32.xlu0 %v2071, 32
      %v2369 = vpop.permute.xlu0 %2368
      %2370 = vrot.lane.b32.xlu0 %v2075, 32
      %v2371 = vpop.permute.xlu0 %2370
      %2372 = vrot.lane.b32.xlu0 %v2074, 32
      %v2373 = vpop.permute.xlu0 %2372
      %2374 = vrot.lane.b32.xlu0 %v2078, 32
      %v2375 = vpop.permute.xlu0 %2374
      %2376 = vrot.lane.b32.xlu0 %v2077, 32
      %v2377 = vpop.permute.xlu0 %2376
      %2378 = vrot.lane.b32.xlu0 %v2081, 32
      %v2379 = vpop.permute.xlu0 %2378
      %2380 = vrot.lane.b32.xlu0 %v2080, 32
      %v2381 = vpop.permute.xlu0 %2380
      %2382 = vrot.lane.b32.xlu0 %v2084, 32
      %v2383 = vpop.permute.xlu0 %2382
      %2384 = vrot.lane.b32.xlu0 %v2083, 32
      %v2385 = vpop.permute.xlu0 %2384
      %2386 = vrot.lane.b32.xlu0 %v2341, 32
      %v2387 = vpop.permute.xlu0 %2386
      %2388 = vrot.lane.b32.xlu0 %v2340, 32
      %v2389 = vpop.permute.xlu0 %2388
      %v2414 = vrot.slane %v2021, 2
      %v2415 = vrot.slane %v2022, 2
      %v2416 = vsel %vm432, %v2414, %v2415
      %2417 = vrot.lane.b32.xlu0 %v2162, 40
      %v2418 = vpop.permute.xlu0 %2417
      %2419 = vrot.lane.b32.xlu0 %v2161, 40
      %v2420 = vpop.permute.xlu0 %2419
      %2421 = vrot.lane.b32.xlu0 %v2165, 40
      %v2422 = vpop.permute.xlu0 %2421
      %2423 = vrot.lane.b32.xlu0 %v2164, 40
      %v2424 = vpop.permute.xlu0 %2423
      %2425 = vrot.lane.b32.xlu0 %v2168, 40
      %v2426 = vpop.permute.xlu0 %2425
      %2427 = vrot.lane.b32.xlu0 %v2167, 40
      %v2428 = vpop.permute.xlu0 %2427
      %2429 = vrot.lane.b32.xlu0 %v2171, 40
      %v2430 = vpop.permute.xlu0 %2429
      %2431 = vrot.lane.b32.xlu0 %v2170, 40
      %v2432 = vpop.permute.xlu0 %2431
      %2433 = vrot.lane.b32.xlu0 %v2174, 40
      %v2434 = vpop.permute.xlu0 %2433
      %2435 = vrot.lane.b32.xlu0 %v2173, 40
      %v2436 = vpop.permute.xlu0 %2435
      %2437 = vrot.lane.b32.xlu0 %v2177, 40
      %v2438 = vpop.permute.xlu0 %2437
      %2439 = vrot.lane.b32.xlu0 %v2176, 40
      %v2440 = vpop.permute.xlu0 %2439
      %2441 = vrot.lane.b32.xlu0 %v2180, 40
      %v2442 = vpop.permute.xlu0 %2441
      %2443 = vrot.lane.b32.xlu0 %v2179, 40
      %v2444 = vpop.permute.xlu0 %2443
      %2445 = vrot.lane.b32.xlu0 %v2183, 40
      %v2446 = vpop.permute.xlu0 %2445
      %2447 = vrot.lane.b32.xlu0 %v2182, 40
      %v2448 = vpop.permute.xlu0 %2447
      %2449 = vrot.lane.b32.xlu0 %v2186, 40
      %v2450 = vpop.permute.xlu0 %2449
      %2451 = vrot.lane.b32.xlu0 %v2185, 40
      %v2452 = vpop.permute.xlu0 %2451
      %2453 = vrot.lane.b32.xlu0 %v2189, 40
      %v2454 = vpop.permute.xlu0 %2453
      %2455 = vrot.lane.b32.xlu0 %v2188, 40
      %v2456 = vpop.permute.xlu0 %2455
      %2457 = vrot.lane.b32.xlu0 %v2192, 40
      %v2458 = vpop.permute.xlu0 %2457
      %2459 = vrot.lane.b32.xlu0 %v2191, 40
      %v2460 = vpop.permute.xlu0 %2459
      %2461 = vrot.lane.b32.xlu0 %v2416, 40
      %v2462 = vpop.permute.xlu0 %2461
      %2463 = vrot.lane.b32.xlu0 %v2415, 40
      %v2464 = vpop.permute.xlu0 %2463
      %2491 = vrot.lane.b32.xlu0 %v2001, 48
      %v2492 = vpop.permute.xlu0 %2491
      %2493 = vrot.lane.b32.xlu0 %v2002, 48
      %v2494 = vpop.permute.xlu0 %2493
      %2495 = vrot.lane.b32.xlu0 %v2003, 48
      %v2496 = vpop.permute.xlu0 %2495
      %2497 = vrot.lane.b32.xlu0 %v2004, 48
      %v2498 = vpop.permute.xlu0 %2497
      %2499 = vrot.lane.b32.xlu0 %v2005, 48
      %v2500 = vpop.permute.xlu0 %2499
      %2501 = vrot.lane.b32.xlu0 %v2006, 48
      %v2502 = vpop.permute.xlu0 %2501
      %2503 = vrot.lane.b32.xlu0 %v2007, 48
      %v2504 = vpop.permute.xlu0 %2503
      %2505 = vrot.lane.b32.xlu0 %v2008, 48
      %v2506 = vpop.permute.xlu0 %2505
      %2507 = vrot.lane.b32.xlu0 %v2009, 48
      %v2508 = vpop.permute.xlu0 %2507
      %2509 = vrot.lane.b32.xlu0 %v2010, 48
      %v2510 = vpop.permute.xlu0 %2509
      %2511 = vrot.lane.b32.xlu0 %v2011, 48
      %v2512 = vpop.permute.xlu0 %2511
      %2513 = vrot.lane.b32.xlu0 %v2012, 48
      %v2514 = vpop.permute.xlu0 %2513
      %2515 = vrot.lane.b32.xlu0 %v2013, 48
      %v2516 = vpop.permute.xlu0 %2515
      %2517 = vrot.lane.b32.xlu0 %v2014, 48
      %v2518 = vpop.permute.xlu0 %2517
      %2519 = vrot.lane.b32.xlu0 %v2015, 48
      %v2520 = vpop.permute.xlu0 %2519
      %2521 = vrot.lane.b32.xlu0 %v2016, 48
      %v2522 = vpop.permute.xlu0 %2521
      %2523 = vrot.lane.b32.xlu0 %v2017, 48
      %v2524 = vpop.permute.xlu0 %2523
      %2525 = vrot.lane.b32.xlu0 %v2018, 48
      %v2526 = vpop.permute.xlu0 %2525
      %2527 = vrot.lane.b32.xlu0 %v2019, 48
      %v2528 = vpop.permute.xlu0 %2527
      %2529 = vrot.lane.b32.xlu0 %v2020, 48
      %v2530 = vpop.permute.xlu0 %2529
      %2531 = vrot.lane.b32.xlu0 %v2021, 48
      %v2532 = vpop.permute.xlu0 %2531
      %2533 = vrot.lane.b32.xlu0 %v2022, 48
      %v2534 = vpop.permute.xlu0 %2533
      %2535 = vrot.lane.b32.xlu0 %v2023, 48
      %v2536 = vpop.permute.xlu0 %2535
      %2537 = vrot.lane.b32.xlu0 %v2024, 48
      %v2538 = vpop.permute.xlu0 %2537
      %v2563 = vrot.slane %v2023, 1
      %v2564 = vrot.slane %v2024, 1
      %v2565 = vsel %vm305, %v2563, %v2564
      %2566 = vrot.lane.b32.xlu0 %v2057, 56
      %v2567 = vpop.permute.xlu0 %2566
      %2568 = vrot.lane.b32.xlu0 %v2056, 56
      %v2569 = vpop.permute.xlu0 %2568
      %2570 = vrot.lane.b32.xlu0 %v2060, 56
      %v2571 = vpop.permute.xlu0 %2570
      %2572 = vrot.lane.b32.xlu0 %v2059, 56
      %v2573 = vpop.permute.xlu0 %2572
      %2574 = vrot.lane.b32.xlu0 %v2063, 56
      %v2575 = vpop.permute.xlu0 %2574
      %2576 = vrot.lane.b32.xlu0 %v2062, 56
      %v2577 = vpop.permute.xlu0 %2576
      %2578 = vrot.lane.b32.xlu0 %v2066, 56
      %v2579 = vpop.permute.xlu0 %2578
      %2580 = vrot.lane.b32.xlu0 %v2065, 56
      %v2581 = vpop.permute.xlu0 %2580
      %2582 = vrot.lane.b32.xlu0 %v2069, 56
      %v2583 = vpop.permute.xlu0 %2582
      %2584 = vrot.lane.b32.xlu0 %v2068, 56
      %v2585 = vpop.permute.xlu0 %2584
      %2586 = vrot.lane.b32.xlu0 %v2072, 56
      %v2587 = vpop.permute.xlu0 %2586
      %2588 = vrot.lane.b32.xlu0 %v2071, 56
      %v2589 = vpop.permute.xlu0 %2588
      %2590 = vrot.lane.b32.xlu0 %v2075, 56
      %v2591 = vpop.permute.xlu0 %2590
      %2592 = vrot.lane.b32.xlu0 %v2074, 56
      %v2593 = vpop.permute.xlu0 %2592
      %2594 = vrot.lane.b32.xlu0 %v2078, 56
      %v2595 = vpop.permute.xlu0 %2594
      %2596 = vrot.lane.b32.xlu0 %v2077, 56
      %v2597 = vpop.permute.xlu0 %2596
      %2598 = vrot.lane.b32.xlu0 %v2081, 56
      %v2599 = vpop.permute.xlu0 %2598
      %2600 = vrot.lane.b32.xlu0 %v2080, 56
      %v2601 = vpop.permute.xlu0 %2600
      %2602 = vrot.lane.b32.xlu0 %v2084, 56
      %v2603 = vpop.permute.xlu0 %2602
      %2604 = vrot.lane.b32.xlu0 %v2083, 56
      %v2605 = vpop.permute.xlu0 %2604
      %2606 = vrot.lane.b32.xlu0 %v2341, 56
      %v2607 = vpop.permute.xlu0 %2606
      %2608 = vrot.lane.b32.xlu0 %v2340, 56
      %v2609 = vpop.permute.xlu0 %2608
      %2610 = vrot.lane.b32.xlu0 %v2565, 56
      %v2611 = vpop.permute.xlu0 %2610
      %2612 = vrot.lane.b32.xlu0 %v2564, 56
      %v2613 = vpop.permute.xlu0 %2612
      %v2638 = vrot.slane %v2023, 2
      %v2639 = vrot.slane %v2024, 2
      %v2640 = vsel %vm432, %v2638, %v2639
      %2641 = vrot.lane.b32.xlu0 %v2165, 64
      %v2642 = vpop.permute.xlu0 %2641
      %2643 = vrot.lane.b32.xlu0 %v2164, 64
      %v2644 = vpop.permute.xlu0 %2643
      %2645 = vrot.lane.b32.xlu0 %v2168, 64
      %v2646 = vpop.permute.xlu0 %2645
      %2647 = vrot.lane.b32.xlu0 %v2167, 64
      %v2648 = vpop.permute.xlu0 %2647
      %2649 = vrot.lane.b32.xlu0 %v2171, 64
      %v2650 = vpop.permute.xlu0 %2649
      %2651 = vrot.lane.b32.xlu0 %v2170, 64
      %v2652 = vpop.permute.xlu0 %2651
      %2653 = vrot.lane.b32.xlu0 %v2174, 64
      %v2654 = vpop.permute.xlu0 %2653
      %2655 = vrot.lane.b32.xlu0 %v2173, 64
      %v2656 = vpop.permute.xlu0 %2655
      %2657 = vrot.lane.b32.xlu0 %v2177, 64
      %v2658 = vpop.permute.xlu0 %2657
      %2659 = vrot.lane.b32.xlu0 %v2176, 64
      %v2660 = vpop.permute.xlu0 %2659
      %2661 = vrot.lane.b32.xlu0 %v2180, 64
      %v2662 = vpop.permute.xlu0 %2661
      %2663 = vrot.lane.b32.xlu0 %v2179, 64
      %v2664 = vpop.permute.xlu0 %2663
      %2665 = vrot.lane.b32.xlu0 %v2183, 64
      %v2666 = vpop.permute.xlu0 %2665
      %2667 = vrot.lane.b32.xlu0 %v2182, 64
      %v2668 = vpop.permute.xlu0 %2667
      %2669 = vrot.lane.b32.xlu0 %v2186, 64
      %v2670 = vpop.permute.xlu0 %2669
      %2671 = vrot.lane.b32.xlu0 %v2185, 64
      %v2672 = vpop.permute.xlu0 %2671
      %2673 = vrot.lane.b32.xlu0 %v2189, 64
      %v2674 = vpop.permute.xlu0 %2673
      %2675 = vrot.lane.b32.xlu0 %v2188, 64
      %v2676 = vpop.permute.xlu0 %2675
      %2677 = vrot.lane.b32.xlu0 %v2192, 64
      %v2678 = vpop.permute.xlu0 %2677
      %2679 = vrot.lane.b32.xlu0 %v2191, 64
      %v2680 = vpop.permute.xlu0 %2679
      %2681 = vrot.lane.b32.xlu0 %v2416, 64
      %v2682 = vpop.permute.xlu0 %2681
      %2683 = vrot.lane.b32.xlu0 %v2415, 64
      %v2684 = vpop.permute.xlu0 %2683
      %2685 = vrot.lane.b32.xlu0 %v2640, 64
      %v2686 = vpop.permute.xlu0 %2685
      %2687 = vrot.lane.b32.xlu0 %v2639, 64
      %v2688 = vpop.permute.xlu0 %2687
      %v2713 = vsel %vm1079, %v1997, %v2086
      %v2714 = vsel %vm1079, %v1998, %v2088
      %v2715 = vsel %vm1079, %v1999, %v2090
      %v2716 = vsel %vm1079, %v2000, %v2092
      %v2717 = vsel %vm1079, %v2001, %v2094
      %v2718 = vsel %vm1079, %v2002, %v2096
      %v2719 = vsel %vm1079, %v2003, %v2098
      %v2720 = vsel %vm1079, %v2004, %v2100
      %v2721 = vsel %vm1079, %v2005, %v2102
      %v2722 = vsel %vm1079, %v2006, %v2104
      %v2723 = vsel %vm1079, %v2007, %v2106
      %v2724 = vsel %vm1079, %v2008, %v2108
      %v2725 = vsel %vm1079, %v2009, %v2110
      %v2726 = vsel %vm1079, %v2010, %v2112
      %v2727 = vsel %vm1079, %v2011, %v2114
      %v2728 = vsel %vm1079, %v2012, %v2116
      %v2729 = vsel %vm1079, %v2013, %v2118
      %v2730 = vsel %vm1079, %v2014, %v2120
      %v2731 = vsel %vm1079, %v2015, %v2122
      %v2732 = vsel %vm1079, %v2016, %v2124
      %v2733 = vsel %vm1079, %v2017, %v2126
      %v2734 = vsel %vm1079, %v2018, %v2128
      %v2735 = vsel %vm1079, %v2019, %v2130
      %v2736 = vsel %vm1079, %v2020, %v2132
      %v2737 = vsel %vm1108, %v2713, %v2194
      %v2738 = vsel %vm1108, %v2714, %v2196
      %v2739 = vsel %vm1108, %v2715, %v2198
      %v2740 = vsel %vm1108, %v2716, %v2200
      %v2741 = vsel %vm1108, %v2717, %v2202
      %v2742 = vsel %vm1108, %v2718, %v2204
      %v2743 = vsel %vm1108, %v2719, %v2206
      %v2744 = vsel %vm1108, %v2720, %v2208
      %v2745 = vsel %vm1108, %v2721, %v2210
      %v2746 = vsel %vm1108, %v2722, %v2212
      %v2747 = vsel %vm1108, %v2723, %v2214
      %v2748 = vsel %vm1108, %v2724, %v2216
      %v2749 = vsel %vm1108, %v2725, %v2218
      %v2750 = vsel %vm1108, %v2726, %v2220
      %v2751 = vsel %vm1108, %v2727, %v2222
      %v2752 = vsel %vm1108, %v2728, %v2224
      %v2753 = vsel %vm1108, %v2729, %v2226
      %v2754 = vsel %vm1108, %v2730, %v2228
      %v2755 = vsel %vm1108, %v2731, %v2230
      %v2756 = vsel %vm1108, %v2732, %v2232
      %v2757 = vsel %vm1108, %v2733, %v2234
      %v2758 = vsel %vm1108, %v2734, %v2236
      %v2759 = vsel %vm1108, %v2735, %v2238
      %v2760 = vsel %vm1108, %v2736, %v2240
      %v2761 = vsel %vm1137, %v2737, %v2268
      %v2762 = vsel %vm1137, %v2738, %v2270
      %v2763 = vsel %vm1137, %v2739, %v2272
      %v2764 = vsel %vm1137, %v2740, %v2274
      %v2765 = vsel %vm1137, %v2741, %v2276
      %v2766 = vsel %vm1137, %v2742, %v2278
      %v2767 = vsel %vm1137, %v2743, %v2280
      %v2768 = vsel %vm1137, %v2744, %v2282
      %v2769 = vsel %vm1137, %v2745, %v2284
      %v2770 = vsel %vm1137, %v2746, %v2286
      %v2771 = vsel %vm1137, %v2747, %v2288
      %v2772 = vsel %vm1137, %v2748, %v2290
      %v2773 = vsel %vm1137, %v2749, %v2292
      %v2774 = vsel %vm1137, %v2750, %v2294
      %v2775 = vsel %vm1137, %v2751, %v2296
      %v2776 = vsel %vm1137, %v2752, %v2298
      %v2777 = vsel %vm1137, %v2753, %v2300
      %v2778 = vsel %vm1137, %v2754, %v2302
      %v2779 = vsel %vm1137, %v2755, %v2304
      %v2780 = vsel %vm1137, %v2756, %v2306
      %v2781 = vsel %vm1137, %v2757, %v2308
      %v2782 = vsel %vm1137, %v2758, %v2310
      %v2783 = vsel %vm1137, %v2759, %v2312
      %v2784 = vsel %vm1137, %v2760, %v2314
      %v2785 = vsel %vm1166, %v2761, %v2343
      %v2786 = vsel %vm1166, %v2762, %v2345
      %v2787 = vsel %vm1166, %v2763, %v2347
      %v2788 = vsel %vm1166, %v2764, %v2349
      %v2789 = vsel %vm1166, %v2765, %v2351
      %v2790 = vsel %vm1166, %v2766, %v2353
      %v2791 = vsel %vm1166, %v2767, %v2355
      %v2792 = vsel %vm1166, %v2768, %v2357
      %v2793 = vsel %vm1166, %v2769, %v2359
      %v2794 = vsel %vm1166, %v2770, %v2361
      %v2795 = vsel %vm1166, %v2771, %v2363
      %v2796 = vsel %vm1166, %v2772, %v2365
      %v2797 = vsel %vm1166, %v2773, %v2367
      %v2798 = vsel %vm1166, %v2774, %v2369
      %v2799 = vsel %vm1166, %v2775, %v2371
      %v2800 = vsel %vm1166, %v2776, %v2373
      %v2801 = vsel %vm1166, %v2777, %v2375
      %v2802 = vsel %vm1166, %v2778, %v2377
      %v2803 = vsel %vm1166, %v2779, %v2379
      %v2804 = vsel %vm1166, %v2780, %v2381
      %v2805 = vsel %vm1166, %v2781, %v2383
      %v2806 = vsel %vm1166, %v2782, %v2385
      %v2807 = vsel %vm1166, %v2783, %v2387
      %v2808 = vsel %vm1166, %v2784, %v2389
      %v2809 = vsel %vm1195, %v2785, %v2418
      %v2810 = vsel %vm1195, %v2786, %v2420
      %v2811 = vsel %vm1195, %v2787, %v2422
      %v2812 = vsel %vm1195, %v2788, %v2424
      %v2813 = vsel %vm1195, %v2789, %v2426
      %v2814 = vsel %vm1195, %v2790, %v2428
      %v2815 = vsel %vm1195, %v2791, %v2430
      %v2816 = vsel %vm1195, %v2792, %v2432
      %v2817 = vsel %vm1195, %v2793, %v2434
      %v2818 = vsel %vm1195, %v2794, %v2436
      %v2819 = vsel %vm1195, %v2795, %v2438
      %v2820 = vsel %vm1195, %v2796, %v2440
      %v2821 = vsel %vm1195, %v2797, %v2442
      %v2822 = vsel %vm1195, %v2798, %v2444
      %v2823 = vsel %vm1195, %v2799, %v2446
      %v2824 = vsel %vm1195, %v2800, %v2448
      %v2825 = vsel %vm1195, %v2801, %v2450
      %v2826 = vsel %vm1195, %v2802, %v2452
      %v2827 = vsel %vm1195, %v2803, %v2454
      %v2828 = vsel %vm1195, %v2804, %v2456
      %v2829 = vsel %vm1195, %v2805, %v2458
      %v2830 = vsel %vm1195, %v2806, %v2460
      %v2831 = vsel %vm1195, %v2807, %v2462
      %v2832 = vsel %vm1195, %v2808, %v2464
      %v2833 = vsel %vm1224, %v2809, %v2492
      %v2834 = vsel %vm1224, %v2810, %v2494
      %v2835 = vsel %vm1224, %v2811, %v2496
      %v2836 = vsel %vm1224, %v2812, %v2498
      %v2837 = vsel %vm1224, %v2813, %v2500
      %v2838 = vsel %vm1224, %v2814, %v2502
      %v2839 = vsel %vm1224, %v2815, %v2504
      %v2840 = vsel %vm1224, %v2816, %v2506
      %v2841 = vsel %vm1224, %v2817, %v2508
      %v2842 = vsel %vm1224, %v2818, %v2510
      %v2843 = vsel %vm1224, %v2819, %v2512
      %v2844 = vsel %vm1224, %v2820, %v2514
      %v2845 = vsel %vm1224, %v2821, %v2516
      %v2846 = vsel %vm1224, %v2822, %v2518
      %v2847 = vsel %vm1224, %v2823, %v2520
      %v2848 = vsel %vm1224, %v2824, %v2522
      %v2849 = vsel %vm1224, %v2825, %v2524
      %v2850 = vsel %vm1224, %v2826, %v2526
      %v2851 = vsel %vm1224, %v2827, %v2528
      %v2852 = vsel %vm1224, %v2828, %v2530
      %v2853 = vsel %vm1224, %v2829, %v2532
      %v2854 = vsel %vm1224, %v2830, %v2534
      %v2855 = vsel %vm1224, %v2831, %v2536
      %v2856 = vsel %vm1224, %v2832, %v2538
      %v2857 = vsel %vm1253, %v2833, %v2567
      %v2858 = vsel %vm1253, %v2834, %v2569
      %v2859 = vsel %vm1253, %v2835, %v2571
      %v2860 = vsel %vm1253, %v2836, %v2573
      %v2861 = vsel %vm1253, %v2837, %v2575
      %v2862 = vsel %vm1253, %v2838, %v2577
      %v2863 = vsel %vm1253, %v2839, %v2579
      %v2864 = vsel %vm1253, %v2840, %v2581
      %v2865 = vsel %vm1253, %v2841, %v2583
      %v2866 = vsel %vm1253, %v2842, %v2585
      %v2867 = vsel %vm1253, %v2843, %v2587
      %v2868 = vsel %vm1253, %v2844, %v2589
      %v2869 = vsel %vm1253, %v2845, %v2591
      %v2870 = vsel %vm1253, %v2846, %v2593
      %v2871 = vsel %vm1253, %v2847, %v2595
      %v2872 = vsel %vm1253, %v2848, %v2597
      %v2873 = vsel %vm1253, %v2849, %v2599
      %v2874 = vsel %vm1253, %v2850, %v2601
      %v2875 = vsel %vm1253, %v2851, %v2603
      %v2876 = vsel %vm1253, %v2852, %v2605
      %v2877 = vsel %vm1253, %v2853, %v2607
      %v2878 = vsel %vm1253, %v2854, %v2609
      %v2879 = vsel %vm1253, %v2855, %v2611
      %v2880 = vsel %vm1253, %v2856, %v2613
      %v2881 = vsel %vm1282, %v2857, %v2642
      %v2882 = vsel %vm1282, %v2858, %v2644
      %v2883 = vsel %vm1282, %v2859, %v2646
      %v2884 = vsel %vm1282, %v2860, %v2648
      %v2885 = vsel %vm1282, %v2861, %v2650
      %v2886 = vsel %vm1282, %v2862, %v2652
      %v2887 = vsel %vm1282, %v2863, %v2654
      %v2888 = vsel %vm1282, %v2864, %v2656
      %v2889 = vsel %vm1282, %v2865, %v2658
      %v2890 = vsel %vm1282, %v2866, %v2660
      %v2891 = vsel %vm1282, %v2867, %v2662
      %v2892 = vsel %vm1282, %v2868, %v2664
      %v2893 = vsel %vm1282, %v2869, %v2666
      %v2894 = vsel %vm1282, %v2870, %v2668
      %v2895 = vsel %vm1282, %v2871, %v2670
      %v2896 = vsel %vm1282, %v2872, %v2672
      %v2897 = vsel %vm1282, %v2873, %v2674
      %v2898 = vsel %vm1282, %v2874, %v2676
      %v2899 = vsel %vm1282, %v2875, %v2678
      %v2900 = vsel %vm1282, %v2876, %v2680
      %v2901 = vsel %vm1282, %v2877, %v2682
      %v2902 = vsel %vm1282, %v2878, %v2684
      %v2903 = vsel %vm1282, %v2879, %v2686
      %v2904 = vsel %vm1282, %v2880, %v2688
      %v2929 = vrot.slane %v2881, 4
      %v2930 = vrot.slane %v2883, 4
      %v2931 = vrot.slane %v2885, 4
      %v2932 = vrot.slane %v2887, 4
      %v2933 = vrot.slane %v2889, 4
      %v2934 = vrot.slane %v2891, 4
      %v2935 = vrot.slane %v2893, 4
      %v2936 = vrot.slane %v2895, 4
      %v2937 = vrot.slane %v2897, 4
      %v2938 = vrot.slane %v2899, 4
      %v2939 = vrot.slane %v2901, 4
      %v2940 = vrot.slane %v2903, 4
      %v2942 = vperm.slane %v244, 0
      %2944 = vst [vmem:[#allocation1] ss:$2 sm:$0xff] %v2881
      %s2945 = scalar_lea.vmem [#allocation1], 1
      %2946 = vst [vmem:[%s2945] ss:$2 sm:$0xff] %v2929
      %s2947 = scalar_lea.vmem [#allocation1], 16
      %2948 = vst [vmem:[%s2947] ss:$2 sm:$0xff] %v2882
      %s2949 = scalar_lea.vmem [#allocation1], 17
      %2950 = vst [vmem:[%s2949] ss:$2 sm:$0xff] %v2883
      %s2951 = scalar_lea.vmem [#allocation1], 32
      %2952 = vst [vmem:[%s2951] ss:$2 sm:$0xff] %v2930
      %s2953 = scalar_lea.vmem [#allocation1], 33
      %2954 = vst [vmem:[%s2953] ss:$2 sm:$0xff] %v2884
      %s2955 = scalar_lea.vmem [#allocation1], 48
      %2956 = vst [vmem:[%s2955] ss:$2 sm:$0xff] %v2885
      %s2957 = scalar_lea.vmem [#allocation1], 49
      %2958 = vst [vmem:[%s2957] ss:$2 sm:$0xff] %v2931
      %v2959 = vld.sshfl [vmem:[#allocation1] sm:$0xff pattern:$0x75316420]
      %v2960 = vld.sshfl [vmem:[#allocation1 + $0x10] sm:$0xff pattern:$0x75316420]
      %v2961 = vld.sshfl [vmem:[#allocation1 + $0x20] sm:$0xff pattern:$0x75316420]
      %v2962 = vld.sshfl [vmem:[#allocation1 + $0x30] sm:$0xff pattern:$0x75316420]
      %2963 = vst [vmem:[#allocation1] ss:$2 sm:$0xff] %v2886
      %2964 = vst [vmem:[%s2945] ss:$2 sm:$0xff] %v2887
      %2965 = vst [vmem:[%s2947] ss:$2 sm:$0xff] %v2932
      %2966 = vst [vmem:[%s2949] ss:$2 sm:$0xff] %v2888
      %2967 = vst [vmem:[%s2951] ss:$2 sm:$0xff] %v2889
      %2968 = vst [vmem:[%s2953] ss:$2 sm:$0xff] %v2933
      %2969 = vst [vmem:[%s2955] ss:$2 sm:$0xff] %v2890
      %2970 = vst [vmem:[%s2957] ss:$2 sm:$0xff] %v2891
      %v2971 = vld.sshfl [vmem:[#allocation1] sm:$0xff pattern:$0x75316420]
      %v2972 = vld.sshfl [vmem:[#allocation1 + $0x10] sm:$0xff pattern:$0x75316420]
      %v2973 = vld.sshfl [vmem:[#allocation1 + $0x20] sm:$0xff pattern:$0x75316420]
      %v2974 = vld.sshfl [vmem:[#allocation1 + $0x30] sm:$0xff pattern:$0x75316420]
      %2975 = vst [vmem:[#allocation1] ss:$2 sm:$0xff] %v2934
      %2976 = vst [vmem:[%s2945] ss:$2 sm:$0xff] %v2892
      %2977 = vst [vmem:[%s2947] ss:$2 sm:$0xff] %v2893
      %2978 = vst [vmem:[%s2949] ss:$2 sm:$0xff] %v2935
      %2979 = vst [vmem:[%s2951] ss:$2 sm:$0xff] %v2894
      %2980 = vst [vmem:[%s2953] ss:$2 sm:$0xff] %v2895
      %2981 = vst [vmem:[%s2955] ss:$2 sm:$0xff] %v2936
      %2982 = vst [vmem:[%s2957] ss:$2 sm:$0xff] %v2896
      %v2983 = vld.sshfl [vmem:[#allocation1] sm:$0xff pattern:$0x75316420]
      %v2984 = vld.sshfl [vmem:[#allocation1 + $0x10] sm:$0xff pattern:$0x75316420]
      %v2985 = vld.sshfl [vmem:[#allocation1 + $0x20] sm:$0xff pattern:$0x75316420]
      %v2986 = vld.sshfl [vmem:[#allocation1 + $0x30] sm:$0xff pattern:$0x75316420]
      %2987 = vst [vmem:[#allocation1] ss:$2 sm:$0xff] %v2897
      %2988 = vst [vmem:[%s2945] ss:$2 sm:$0xff] %v2937
      %2989 = vst [vmem:[%s2947] ss:$2 sm:$0xff] %v2898
      %2990 = vst [vmem:[%s2949] ss:$2 sm:$0xff] %v2899
      %2991 = vst [vmem:[%s2951] ss:$2 sm:$0xff] %v2938
      %2992 = vst [vmem:[%s2953] ss:$2 sm:$0xff] %v2900
      %2993 = vst [vmem:[%s2955] ss:$2 sm:$0xff] %v2901
      %2994 = vst [vmem:[%s2957] ss:$2 sm:$0xff] %v2939
      %v2995 = vld.sshfl [vmem:[#allocation1] sm:$0xff pattern:$0x75316420]
      %v2996 = vld.sshfl [vmem:[#allocation1 + $0x10] sm:$0xff pattern:$0x75316420]
      %v2997 = vld.sshfl [vmem:[#allocation1 + $0x20] sm:$0xff pattern:$0x75316420]
      %v2998 = vld.sshfl [vmem:[#allocation1 + $0x30] sm:$0xff pattern:$0x75316420]
      %2999 = vst [vmem:[#allocation1] ss:$2 sm:$0xff] %v2902
      %3000 = vst [vmem:[%s2945] ss:$2 sm:$0xff] %v2903
      %3001 = vst [vmem:[%s2947] ss:$2 sm:$0xff] %v2940
      %3002 = vst [vmem:[%s2949] ss:$2 sm:$0xff] %v2904
      %v3003 = vld.sshfl [vmem:[#allocation1] sm:$0xff pattern:$0x75316420]
      %v3004 = vld.sshfl [vmem:[#allocation1 + $0x10] sm:$0xff pattern:$0x75316420]
      %v3005 = vsel %vm1542, %v2959, 0
      %v3007 = vsel %vm1542, %v2960, 0
      %v3009 = vsel %vm1542, %v2961, 0
      %v3011 = vsel %vm1542, %v2962, 0
      %v3013 = vsel %vm1542, %v2971, 0
      %v3015 = vsel %vm1542, %v2972, 0
      %v3017 = vsel %vm1542, %v2973, 0
      %v3019 = vsel %vm1542, %v2974, 0
      %v3021 = vsel %vm1542, %v2983, 0
      %v3023 = vsel %vm1542, %v2984, 0
      %v3025 = vsel %vm1542, %v2985, 0
      %v3027 = vsel %vm1542, %v2986, 0
      %v3029 = vsel %vm1542, %v2995, 0
      %v3031 = vsel %vm1542, %v2996, 0
      %v3033 = vsel %vm1542, %v2997, 0
      %v3035 = vsel %vm1542, %v2998, 0
      %v3037 = vsel %vm1542, %v3003, 0
      %v3039 = vsel %vm1542, %v3004, 0
      %3041 = vmatpush.msra.mxu0 0.0
      %3042 = vmatpush.msra.mxu0 0.0
      %3043 = vmatpush.msra.mxu0 0.0
      %3044 = vmatpush.msra.mxu0 0.0
      %3045 = vmatpush.msra.mxu0 0.0
      %3046 = vmatpush.msra.mxu0 0.0
      %3047 = vmatpush.msra.mxu0 0.0
      %3048 = vmatpush.msra.mxu0 %v242
      %3049 = vmatpush.msra.mxu0 %v241
      %3050 = vmatpush.msra.mxu0 %v240
      %3051 = vmatpush.msra.mxu0 %v239
      %3052 = vmatpush.msra.mxu0 %v238
      %3053 = vmatpush.msra.mxu0 %v237
      %3054 = vmatpush.msra.mxu0 %v236
      %3055 = vmatpush.msra.mxu0 %v235
      %3056 = vmatpush.msra.mxu0 %v234
      %3057 = vmatmul.f32.gmra.mxu0 %v3005
      %v3058 = vpop.f32.mrf.mxu0
      %v3059 = vadd.f32 %v2942, %v3058
      %3060 = vmatmul.f32.gmra.mxu0 %v3007
      %v3061 = vpop.f32.mrf.mxu0
      %v3062 = vadd.f32 %v2942, %v3061
      %3063 = vmatmul.f32.gmra.mxu0 %v3009
      %v3064 = vpop.f32.mrf.mxu0
      %v3065 = vadd.f32 %v2942, %v3064
      %3066 = vmatmul.f32.gmra.mxu0 %v3011
      %v3067 = vpop.f32.mrf.mxu0
      %v3068 = vadd.f32 %v2942, %v3067
      %3069 = vmatmul.f32.gmra.mxu0 %v3013
      %v3070 = vpop.f32.mrf.mxu0
      %v3071 = vadd.f32 %v2942, %v3070
      %3072 = vmatmul.f32.gmra.mxu0 %v3015
      %v3073 = vpop.f32.mrf.mxu0
      %v3074 = vadd.f32 %v2942, %v3073
      %3075 = vmatmul.f32.gmra.mxu0 %v3017
      %v3076 = vpop.f32.mrf.mxu0
      %v3077 = vadd.f32 %v2942, %v3076
      %3078 = vmatmul.f32.gmra.mxu0 %v3019
      %v3079 = vpop.f32.mrf.mxu0
      %v3080 = vadd.f32 %v2942, %v3079
      %3081 = vmatmul.f32.gmra.mxu0 %v3021
      %v3082 = vpop.f32.mrf.mxu0
      %v3083 = vadd.f32 %v2942, %v3082
      %3084 = vmatmul.f32.gmra.mxu0 %v3023
      %v3085 = vpop.f32.mrf.mxu0
      %v3086 = vadd.f32 %v2942, %v3085
      %3087 = vmatmul.f32.gmra.mxu0 %v3025
      %v3088 = vpop.f32.mrf.mxu0
      %v3089 = vadd.f32 %v2942, %v3088
      %3090 = vmatmul.f32.gmra.mxu0 %v3027
      %v3091 = vpop.f32.mrf.mxu0
      %v3092 = vadd.f32 %v2942, %v3091
      %3093 = vmatmul.f32.gmra.mxu0 %v3029
      %v3094 = vpop.f32.mrf.mxu0
      %v3095 = vadd.f32 %v2942, %v3094
      %3096 = vmatmul.f32.gmra.mxu0 %v3031
      %v3097 = vpop.f32.mrf.mxu0
      %v3098 = vadd.f32 %v2942, %v3097
      %3099 = vmatmul.f32.gmra.mxu0 %v3033
      %v3100 = vpop.f32.mrf.mxu0
      %v3101 = vadd.f32 %v2942, %v3100
      %3102 = vmatmul.f32.gmra.mxu0 %v3035
      %v3103 = vpop.f32.mrf.mxu0
      %v3104 = vadd.f32 %v2942, %v3103
      %3105 = vmatmul.f32.gmra.mxu0 %v3037
      %v3106 = vpop.f32.mrf.mxu0
      %v3107 = vadd.f32 %v2942, %v3106
      %3108 = vmatmul.f32.gmra.mxu0 %v3039
      %v3109 = vpop.f32.mrf.mxu0
      %v3110 = vadd.f32 %v2942, %v3109
      %3111 = vdwg.mxu0
      %v3112 = vmax.f32 %v3059, 0.0
      %v3113 = vmax.f32 %v3062, 0.0
      %v3114 = vmax.f32 %v3065, 0.0
      %v3115 = vmax.f32 %v3068, 0.0
      %v3116 = vmax.f32 %v3071, 0.0
      %v3117 = vmax.f32 %v3074, 0.0
      %v3118 = vmax.f32 %v3077, 0.0
      %v3119 = vmax.f32 %v3080, 0.0
      %v3120 = vmax.f32 %v3083, 0.0
      %v3121 = vmax.f32 %v3086, 0.0
      %v3122 = vmax.f32 %v3089, 0.0
      %v3123 = vmax.f32 %v3092, 0.0
      %v3124 = vmax.f32 %v3095, 0.0
      %v3125 = vmax.f32 %v3098, 0.0
      %v3126 = vmax.f32 %v3101, 0.0
      %v3127 = vmax.f32 %v3104, 0.0
      %v3128 = vmax.f32 %v3107, 0.0
      %v3129 = vmax.f32 %v3110, 0.0
      %v3148 = vrot.slane %v3112, 4
      %v3149 = vrot.slane %v3113, 4
      %v3150 = vrot.slane %v3114, 4
      %v3151 = vrot.slane %v3115, 4
      %v3152 = vrot.slane %v3116, 4
      %v3153 = vrot.slane %v3117, 4
      %v3154 = vrot.slane %v3118, 4
      %v3155 = vrot.slane %v3119, 4
      %v3156 = vrot.slane %v3120, 4
      %v3157 = vrot.slane %v3121, 4
      %v3158 = vrot.slane %v3122, 4
      %v3159 = vrot.slane %v3123, 4
      %v3160 = vrot.slane %v3124, 4
      %v3161 = vrot.slane %v3125, 4
      %v3162 = vrot.slane %v3126, 4
      %v3163 = vrot.slane %v3127, 4
      %v3164 = vrot.slane %v3128, 4
      %v3165 = vrot.slane %v3129, 4
      %s3184 = scalar_lea.vmem %s219, 32
      %v3185 = vld [vmem:[%s3184 + $0x2] sm:$0xff]
      %v3186 = vld [vmem:[%s3184 + $0xa] sm:$0xf]
      %v3187 = vld [vmem:[%s3184 + $0x12] sm:$0xff]
      %v3188 = vld [vmem:[%s3184 + $0x1a] sm:$0xf]
      %v3189 = vld [vmem:[%s3184 + $0x22] sm:$0xff]
      %v3190 = vld [vmem:[%s3184 + $0x2a] sm:$0xf]
      %v3191 = vld [vmem:[%s3184 + $0x32] sm:$0xff]
      %v3192 = vld [vmem:[%s3184 + $0x3a] sm:$0xf]
      %v3193 = vld [vmem:[%s3184 + $0x42] sm:$0xff]
      %v3194 = vld [vmem:[%s3184 + $0x4a] sm:$0xf]
      %v3195 = vld [vmem:[%s3184 + $0x52] sm:$0xff]
      %v3196 = vld [vmem:[%s3184 + $0x5a] sm:$0xf]
      %v3197 = vld [vmem:[%s3184 + $0x62] sm:$0xff]
      %v3198 = vld [vmem:[%s3184 + $0x6a] sm:$0xf]
      %v3199 = vld [vmem:[%s3184 + $0x72] sm:$0xff]
      %v3200 = vld [vmem:[%s3184 + $0x7a] sm:$0xf]
      %v3201 = vld [vmem:[%s3184 + $0x82] sm:$0xff]
      %v3202 = vld [vmem:[%s3184 + $0x8a] sm:$0xf]
      %v3203 = vld [vmem:[%s3184 + $0x92] sm:$0xff]
      %v3204 = vld [vmem:[%s3184 + $0x9a] sm:$0xf]
      %v3205 = vld [vmem:[%s3184 + $0xa2] sm:$0xff]
      %v3206 = vld [vmem:[%s3184 + $0xaa] sm:$0xf]
      %v3207 = vld [vmem:[%s3184 + $0xb2] sm:$0xff]
      %v3208 = vld [vmem:[%s3184 + $0xba] sm:$0xf]
      %v3221 = vrot.slane %v3185, 4
      %v3222 = vrot.slane %v3187, 4
      %v3223 = vrot.slane %v3189, 4
      %v3224 = vrot.slane %v3191, 4
      %v3225 = vrot.slane %v3193, 4
      %v3226 = vrot.slane %v3195, 4
      %v3227 = vrot.slane %v3197, 4
      %v3228 = vrot.slane %v3199, 4
      %v3229 = vrot.slane %v3201, 4
      %v3230 = vrot.slane %v3203, 4
      %v3231 = vrot.slane %v3205, 4
      %v3232 = vrot.slane %v3207, 4
      %v3245 = vadd.f32 %v3112, %v3185
      %v3246 = vadd.f32 %v3148, %v3221
      %v3247 = vadd.f32 %v3113, %v3186
      %v3248 = vadd.f32 %v3149, %v3187
      %v3249 = vadd.f32 %v3114, %v3222
      %v3250 = vadd.f32 %v3150, %v3188
      %v3251 = vadd.f32 %v3115, %v3189
      %v3252 = vadd.f32 %v3151, %v3223
      %v3253 = vadd.f32 %v3116, %v3190
      %v3254 = vadd.f32 %v3152, %v3191
      %v3255 = vadd.f32 %v3117, %v3224
      %v3256 = vadd.f32 %v3153, %v3192
      %v3257 = vadd.f32 %v3118, %v3193
      %v3258 = vadd.f32 %v3154, %v3225
      %v3259 = vadd.f32 %v3119, %v3194
      %v3260 = vadd.f32 %v3155, %v3195
      %v3261 = vadd.f32 %v3120, %v3226
      %v3262 = vadd.f32 %v3156, %v3196
      %v3263 = vadd.f32 %v3121, %v3197
      %v3264 = vadd.f32 %v3157, %v3227
      %v3265 = vadd.f32 %v3122, %v3198
      %v3266 = vadd.f32 %v3158, %v3199
      %v3267 = vadd.f32 %v3123, %v3228
      %v3268 = vadd.f32 %v3159, %v3200
      %v3269 = vadd.f32 %v3124, %v3201
      %v3270 = vadd.f32 %v3160, %v3229
      %v3271 = vadd.f32 %v3125, %v3202
      %v3272 = vadd.f32 %v3161, %v3203
      %v3273 = vadd.f32 %v3126, %v3230
      %v3274 = vadd.f32 %v3162, %v3204
      %v3275 = vadd.f32 %v3127, %v3205
      %v3276 = vadd.f32 %v3163, %v3231
      %v3277 = vadd.f32 %v3128, %v3206
      %v3278 = vadd.f32 %v3164, %v3207
      %v3279 = vadd.f32 %v3129, %v3232
      %v3280 = vadd.f32 %v3165, %v3208
      %3317 = vst [vmem:[#allocation1] ss:$2 sm:$0xff] %v3245
      %s3318 = scalar_lea.vmem [#allocation1], 1
      %3319 = vst [vmem:[%s3318] ss:$2 sm:$0xff] %v3246
      %s3320 = scalar_lea.vmem [#allocation1], 16
      %3321 = vst [vmem:[%s3320] ss:$2 sm:$0xff] %v3247
      %v3322 = vld.sshfl [vmem:[#allocation1] sm:$0xff pattern:$0x75316420]
      %v3323 = vld.sshfl [vmem:[#allocation1 + $0x10] sm:$0xff pattern:$0x75316420]
      %s3324 = scalar_lea.vmem [#allocation1], 32
      %3325 = vst [vmem:[%s3324] ss:$2 sm:$0xff] %v3248
      %s3326 = scalar_lea.vmem [#allocation1], 33
      %3327 = vst [vmem:[%s3326] ss:$2 sm:$0xff] %v3249
      %s3328 = scalar_lea.vmem [#allocation1], 48
      %3329 = vst [vmem:[%s3328] ss:$2 sm:$0xff] %v3250
      %v3330 = vld.sshfl [vmem:[#allocation1 + $0x20] sm:$0xff pattern:$0x75316420]
      %v3331 = vld.sshfl [vmem:[#allocation1 + $0x30] sm:$0xff pattern:$0x75316420]
      %3332 = vst [vmem:[#allocation1] ss:$2 sm:$0xff] %v3251
      %3333 = vst [vmem:[%s3318] ss:$2 sm:$0xff] %v3252
      %3334 = vst [vmem:[%s3320] ss:$2 sm:$0xff] %v3253
      %v3335 = vld.sshfl [vmem:[#allocation1] sm:$0xff pattern:$0x75316420]
      %v3336 = vld.sshfl [vmem:[#allocation1 + $0x10] sm:$0xff pattern:$0x75316420]
      %3337 = vst [vmem:[%s3324] ss:$2 sm:$0xff] %v3254
      %3338 = vst [vmem:[%s3326] ss:$2 sm:$0xff] %v3255
      %3339 = vst [vmem:[%s3328] ss:$2 sm:$0xff] %v3256
      %v3340 = vld.sshfl [vmem:[#allocation1 + $0x20] sm:$0xff pattern:$0x75316420]
      %v3341 = vld.sshfl [vmem:[#allocation1 + $0x30] sm:$0xff pattern:$0x75316420]
      %3342 = vst [vmem:[#allocation1] ss:$2 sm:$0xff] %v3257
      %3343 = vst [vmem:[%s3318] ss:$2 sm:$0xff] %v3258
      %3344 = vst [vmem:[%s3320] ss:$2 sm:$0xff] %v3259
      %v3345 = vld.sshfl [vmem:[#allocation1] sm:$0xff pattern:$0x75316420]
      %v3346 = vld.sshfl [vmem:[#allocation1 + $0x10] sm:$0xff pattern:$0x75316420]
      %3347 = vst [vmem:[%s3324] ss:$2 sm:$0xff] %v3260
      %3348 = vst [vmem:[%s3326] ss:$2 sm:$0xff] %v3261
      %3349 = vst [vmem:[%s3328] ss:$2 sm:$0xff] %v3262
      %v3350 = vld.sshfl [vmem:[#allocation1 + $0x20] sm:$0xff pattern:$0x75316420]
      %v3351 = vld.sshfl [vmem:[#allocation1 + $0x30] sm:$0xff pattern:$0x75316420]
      %3352 = vst [vmem:[#allocation1] ss:$2 sm:$0xff] %v3263
      %3353 = vst [vmem:[%s3318] ss:$2 sm:$0xff] %v3264
      %3354 = vst [vmem:[%s3320] ss:$2 sm:$0xff] %v3265
      %v3355 = vld.sshfl [vmem:[#allocation1] sm:$0xff pattern:$0x75316420]
      %v3356 = vld.sshfl [vmem:[#allocation1 + $0x10] sm:$0xff pattern:$0x75316420]
      %3357 = vst [vmem:[%s3324] ss:$2 sm:$0xff] %v3266
      %3358 = vst [vmem:[%s3326] ss:$2 sm:$0xff] %v3267
      %3359 = vst [vmem:[%s3328] ss:$2 sm:$0xff] %v3268
      %v3360 = vld.sshfl [vmem:[#allocation1 + $0x20] sm:$0xff pattern:$0x75316420]
      %v3361 = vld.sshfl [vmem:[#allocation1 + $0x30] sm:$0xff pattern:$0x75316420]
      %3362 = vst [vmem:[#allocation1] ss:$2 sm:$0xff] %v3269
      %3363 = vst [vmem:[%s3318] ss:$2 sm:$0xff] %v3270
      %3364 = vst [vmem:[%s3320] ss:$2 sm:$0xff] %v3271
      %v3365 = vld.sshfl [vmem:[#allocation1] sm:$0xff pattern:$0x75316420]
      %v3366 = vld.sshfl [vmem:[#allocation1 + $0x10] sm:$0xff pattern:$0x75316420]
      %3367 = vst [vmem:[%s3324] ss:$2 sm:$0xff] %v3272
      %3368 = vst [vmem:[%s3326] ss:$2 sm:$0xff] %v3273
      %3369 = vst [vmem:[%s3328] ss:$2 sm:$0xff] %v3274
      %v3370 = vld.sshfl [vmem:[#allocation1 + $0x20] sm:$0xff pattern:$0x75316420]
      %v3371 = vld.sshfl [vmem:[#allocation1 + $0x30] sm:$0xff pattern:$0x75316420]
      %3372 = vst [vmem:[#allocation1] ss:$2 sm:$0xff] %v3275
      %3373 = vst [vmem:[%s3318] ss:$2 sm:$0xff] %v3276
      %3374 = vst [vmem:[%s3320] ss:$2 sm:$0xff] %v3277
      %v3375 = vld.sshfl [vmem:[#allocation1] sm:$0xff pattern:$0x75316420]
      %v3376 = vld.sshfl [vmem:[#allocation1 + $0x10] sm:$0xff pattern:$0x75316420]
      %3377 = vst [vmem:[%s3324] ss:$2 sm:$0xff] %v3278
      %3378 = vst [vmem:[%s3326] ss:$2 sm:$0xff] %v3279
      %3379 = vst [vmem:[%s3328] ss:$2 sm:$0xff] %v3280
      %v3380 = vld.sshfl [vmem:[#allocation1 + $0x20] sm:$0xff pattern:$0x75316420]
      %v3381 = vld.sshfl [vmem:[#allocation1 + $0x30] sm:$0xff pattern:$0x75316420]
      %3406 = vst.msk [vmem:[%s224] sm:$0xff] %vm1079, %v3322
      %vm3407 = vcmask 60416
      %3408 = vst.msk [vmem:[%s224 + $0x8] sm:$0xf] %vm3407, %v3323
      %3409 = vst.msk [vmem:[%s224 + $0x10] sm:$0xff] %vm1079, %v3330
      %3410 = vst.msk [vmem:[%s224 + $0x18] sm:$0xf] %vm3407, %v3331
      %3411 = vst.msk [vmem:[%s224 + $0x20] sm:$0xff] %vm1079, %v3335
      %3412 = vst.msk [vmem:[%s224 + $0x28] sm:$0xf] %vm3407, %v3336
      %3413 = vst.msk [vmem:[%s224 + $0x30] sm:$0xff] %vm1079, %v3340
      %3414 = vst.msk [vmem:[%s224 + $0x38] sm:$0xf] %vm3407, %v3341
      %3415 = vst.msk [vmem:[%s224 + $0x40] sm:$0xff] %vm1079, %v3345
      %3416 = vst.msk [vmem:[%s224 + $0x48] sm:$0xf] %vm3407, %v3346
      %3417 = vst.msk [vmem:[%s224 + $0x50] sm:$0xff] %vm1079, %v3350
      %3418 = vst.msk [vmem:[%s224 + $0x58] sm:$0xf] %vm3407, %v3351
      %3419 = vst.msk [vmem:[%s224 + $0x60] sm:$0xff] %vm1079, %v3355
      %3420 = vst.msk [vmem:[%s224 + $0x68] sm:$0xf] %vm3407, %v3356
      %3421 = vst.msk [vmem:[%s224 + $0x70] sm:$0xff] %vm1079, %v3360
      %3422 = vst.msk [vmem:[%s224 + $0x78] sm:$0xf] %vm3407, %v3361
      %3423 = vst.msk [vmem:[%s224 + $0x80] sm:$0xff] %vm1079, %v3365
      %3424 = vst.msk [vmem:[%s224 + $0x88] sm:$0xf] %vm3407, %v3366
      %3425 = vst.msk [vmem:[%s224 + $0x90] sm:$0xff] %vm1079, %v3370
      %3426 = vst.msk [vmem:[%s224 + $0x98] sm:$0xf] %vm3407, %v3371
      %3427 = vst.msk [vmem:[%s224 + $0xa0] sm:$0xff] %vm1079, %v3375
      %3428 = vst.msk [vmem:[%s224 + $0xa8] sm:$0xf] %vm3407, %v3376
      %3429 = vst.msk [vmem:[%s224 + $0xb0] sm:$0xff] %vm1079, %v3380
      %3430 = vst.msk [vmem:[%s224 + $0xb8] sm:$0xf] %vm3407, %v3381
      %p3431 = scmp.lt.s32.totalorder %s16, 1
      %s3432 = scalar_select %p3431, %s16, 1
      %s3433 = smul.addr %s3432, 24
      %s3434 = smul.addr %s3433, 8
      %s3435 = scalar_lea.vmem %s5, %s3434
      // Predicated region
      $region41: #{tpu_custom_call.1} parent=39 // pred_check
        %p3436 = pneg %p144
      $region42: #{tpu_custom_call.1} parent=39 // pred_check_branch
        %3438 = sbr.rel (%p3436) target = $region44
      $region43: #{tpu_custom_call.1} parent=39 // pred_region
        _
      $region44: #{tpu_custom_call.1} parent=39 // pred_fallthru
        _
    $region40: #{tpu_custom_call.1} parent=5 // pred_fallthru
      _
    %p3439 = scmp.le.s32.totalorder 2, %s11
    // Predicated region
    $region45: #{tpu_custom_call.1} parent=5 // pred_check
      %p3440 = pneg %p3439
    $region46: #{tpu_custom_call.1} parent=5 // pred_check_branch
      %3442 = sbr.rel (%p3440) target = $region48
    $region47: #{tpu_custom_call.1} parent=5 // pred_region
      %s3443 = ssub.s32 %s11, 2
      // Predicated region
      $region49: #{tpu_custom_call.1} parent=47 // pred_check
        %p3444 = pneg %p150
      $region50: #{tpu_custom_call.1} parent=47 // pred_check_branch
        %3446 = sbr.rel (%p3444) target = $region52
      $region51: #{tpu_custom_call.1} parent=47 // pred_region
        %p3447 = scmp.lt.s32.totalorder %s17, 1
        %s3448 = scalar_select %p3447, %s17, 1
        %s3449 = smul.addr %s3448, 24
        %s3450 = smul.addr %s3449, 8
        %s3451 = scalar_lea.vmem %s5, %s3450
      $region52: #{tpu_custom_call.1} parent=47 // pred_fallthru
        _
    $region48: #{tpu_custom_call.1} parent=5 // pred_fallthru
      _
  $region6: #{tpu_custom_call.1} parent=0 // loop_footer
    %s15 = sadd.s32 1, %s11
  $region7: #{tpu_custom_call.1} parent=0 // loop_footer_branch
    %10 = sbr.rel target = $region3
  $region8: #{tpu_custom_call.1} parent=0 // loop_exit
    _

</llo_original>
